<compile_context>
chip_gen: v6e
topology: v6e:2x2x1
jax: 0.10.0
libtpu: 0.0.40
codegen_flags: <defaults>
</compile_context>

<pallas_src>
import functools

import jax
import jax.numpy as jnp
from jax import lax
from jax.experimental import pallas as pl
from jax.experimental.pallas import tpu as pltpu


def _layer_spec(node_dim, edge_dim, reid_dim, edges_in_dim=6):
    """(name, out_dim, in_dim) for every Linear, in packing order."""
    return (
        ("lin", node_dim, reid_dim),
        ("e1", edge_dim, edges_in_dim),
        ("e2", edge_dim, edge_dim),
        ("ge1", edge_dim, 2 * node_dim + 2 * edge_dim),
        ("ge2", edge_dim, edge_dim),
        ("gn1", node_dim, node_dim + edge_dim),
        ("gn2", node_dim, node_dim),
        ("c1", edge_dim, edge_dim),
        ("c2", 1, edge_dim),
    )


def _param_offsets(spec):
    off, r = {}, 0
    for name, o, f in spec:
        off[name] = (r, o, f)
        r += o
    return off, r


def pack_params(params, node_dim, edge_dim, reid_dim):
    """Pack all torch-layout (out, in) weights + biases into ONE f32 buffer.

    One row block per layer; the bias is stored as column `in_dim` of that block.
    Call ONCE (outside the per-frame jitted path) — weights do not change per frame.
    """
    spec = _layer_spec(node_dim, edge_dim, reid_dim)
    lane_width = ((max(f for _, _, f in spec) + 1 + 127) // 128) * 128
    blocks = []
    for name, o, f in spec:
        w = params[name + "_w"].astype(jnp.float32)      # (out, in)
        b = params[name + "_b"].astype(jnp.float32)      # (out,)
        blk = jnp.zeros((o, lane_width), jnp.float32)
        blk = blk.at[:, :f].set(w).at[:, f].set(b)
        blocks.append(blk)
    p = jnp.concatenate(blocks, axis=0)
    pad = (-p.shape[0]) % 8
    if pad:
        p = jnp.concatenate([p, jnp.zeros((pad, lane_width), jnp.float32)], 0)
    return p


def _pack_data(track_feat, curr_feat, track_box, curr_box, track_t, curr_t, b_pad):
    """Per-frame packed input: (R + 5 [row-padded to 8], A + B_pad) f32.

    Rows: [0:R) reid features, [R:R+4) xyxy box, [R+4] timestamp.
    Columns: A real tracks, then B_pad boxes (padded boxes get zero features and
    dummy valid geometry w = h = 1 so log / div stay finite)."""
    f32 = jnp.float32
    a, r = track_feat.shape
    b = curr_feat.shape[0]
    padb = b_pad - b
    cf = jnp.concatenate([curr_feat, jnp.zeros((padb, r), f32)], 0)
    dummy_box = jnp.tile(jnp.array([[0.0, 0.0, 1.0, 1.0]], f32), (padb, 1))
    cb = jnp.concatenate([curr_box, dummy_box], 0)
    ct = jnp.concatenate([curr_t.reshape(b, 1), jnp.zeros((padb, 1), f32)], 0)
    b_rows = jnp.concatenate([cf, cb, ct], axis=1)                     # (B_pad, R+5)
    a_rows = jnp.concatenate([track_feat, track_box, track_t.reshape(a, 1)], axis=1)
    data = jnp.concatenate([a_rows, b_rows], axis=0).T                 # (R+5, A+B_pad)
    rpad = (-data.shape[0]) % 8
    if rpad:
        data = jnp.concatenate([data, jnp.zeros((rpad, data.shape[1]), f32)], 0)
    return data


def assignment_kernel(off, num_steps, A, B, B_pad, R,
                      data_ref, tna_ref, param_ref, out_ref):
    f32, bf16 = jnp.float32, jnp.bfloat16
    EW = A * B_pad            # edge lane width (multiple of 128)
    NW = A + B_pad            # node lane width (tracks then boxes)

    def dot(a, b):
        # bf16 operands, f32 accumulation (MXU-native on v5e/v6e/v7x).
        return jnp.dot(a.astype(bf16), b.astype(bf16), preferred_element_type=f32)

    # ---- weights: torch layout (out, in), bias in column `in_dim`; loaded once ----
    def wb(name):
        r, o, f = off[name]
        return param_ref[r:r + o, 0:f], param_ref[r:r + o, f:f + 1]

    W_lin, b_lin = wb("lin")
    W_e1, b_e1 = wb("e1")
    W_e2, b_e2 = wb("e2")
    W_ge1, b_ge1 = wb("ge1")
    W_ge2, b_ge2 = wb("ge2")
    W_gn1, b_gn1 = wb("gn1")
    W_gn2, b_gn2 = wb("gn2")
    W_c1, b_c1 = wb("c1")
    W_c2, b_c2 = wb("c2")

    N = W_lin.shape[0]        # node_dim
    E = W_e2.shape[0]         # edge_dim

    # Split first-layer weights by input block -> partial matmuls, no lane concat.
    Wge1_a = W_ge1[:, 0:N]
    Wge1_b = W_ge1[:, N:2 * N]
    Wge1_u = W_ge1[:, 2 * N:2 * N + E]
    Wge1_f = W_ge1[:, 2 * N + E:2 * N + 2 * E]
    Wgn1_n = W_gn1[:, 0:N]
    Wgn1_m = W_gn1[:, N:N + E]

    X_feat = data_ref[0:R, :]            # (R, NW) reid features (entity per lane)
    X_geo = data_ref[R:R + 5, :]         # (5, NW) rows: x1, y1, x2, y2, t
    geo_a = X_geo[:, 0:A]                # (5, A)
    geo_b = X_geo[:, A:NW]               # (5, B_pad)

    # ---- per-entity geometry rows ----
    cx_a = 0.5 * (geo_a[0:1] + geo_a[2:3]); cy_a = 0.5 * (geo_a[1:2] + geo_a[3:4])
    w_a = geo_a[2:3] - geo_a[0:1]; h_a = geo_a[3:4] - geo_a[1:2]; t_a = geo_a[4:5]
    cx_b = 0.5 * (geo_b[0:1] + geo_b[2:3]); cy_b = 0.5 * (geo_b[1:2] + geo_b[3:4])
    w_b = geo_b[2:3] - geo_b[0:1]; h_b = geo_b[3:4] - geo_b[1:2]; t_b = geo_b[4:5]

    # ---- reid distance: direct cosine-similarity matmul (tiny; kept in f32) ----
    # TODO(synk): load_distance_fn(distance_metric) unspecified; cosine distance assumed.
    ta = tna_ref[...]                                                  # (A, R) natural layout
    ta_n = ta * lax.rsqrt(jnp.sum(ta * ta, axis=1, keepdims=True) + 1e-12)
    fb = X_feat[:, A:NW]                                               # (R, B_pad)
    fb_n = fb * lax.rsqrt(jnp.sum(fb * fb, axis=0, keepdims=True) + 1e-12)
    sim = jnp.dot(ta_n, fb_n, preferred_element_type=f32)              # (A, B_pad)

    # ---- fixed per-edge features, built block-by-block (block i = track i) ----
    blocks = []
    for i in range(A):
        cxa, cya = cx_a[:, i:i + 1], cy_a[:, i:i + 1]
        wa, ha, tai = w_a[:, i:i + 1], h_a[:, i:i + 1], t_a[:, i:i + 1]
        h_sum = ha + h_b
        blocks.append(jnp.concatenate([
            2.0 * (cx_b - cxa) / h_sum,          # x_norm
            2.0 * (cy_b - cya) / h_sum,          # y_norm
            jnp.log(wa / w_b),                   # w_norm
            jnp.log(ha / h_b),                   # h_norm
            t_b - tai,                           # t_norm
            1.0 - sim[i:i + 1, :],               # reid distance
        ], axis=0))                              # (6, B_pad)
    feat6 = jnp.concatenate(blocks, axis=1)      # (6, EW)

    # edge_in_mlp: first layer as ONE matmul over the stacked feature block
    e_pre0 = dot(W_e1[:, 0:6], feat6) + b_e1
    fixed_T = jnp.maximum(dot(W_e2, jnp.maximum(e_pre0, 0.0)) + b_e2, 0.0)   # (E, EW)

    # ---- initial node embeddings: tracks + boxes fused in one matmul ----
    nodes_T = jnp.maximum(dot(W_lin, X_feat) + b_lin, 0.0)                    # (N, NW)

    # ---- loop invariants hoisted ----
    fixed_contrib = dot(Wge1_f, fixed_T) + b_ge1                              # (E, EW)
    box_mask = (lax.broadcasted_iota(jnp.int32, (1, B_pad), 1) < B).astype(f32)
    edge_mask = jnp.concatenate([box_mask] * A, axis=1)                       # (1, EW)
    b_ge2B = jnp.broadcast_to(b_ge2, (E, EW))
    b_gn1B = jnp.broadcast_to(b_gn1, (N, NW))
    b_gn2B = jnp.broadcast_to(b_gn2, (N, NW))
    b_c1B = jnp.broadcast_to(b_c1, (E, EW))
    b_c2B = jnp.broadcast_to(b_c2, (1, EW))

    # ---- neural message passing (unrolled; num_steps is small) ----
    upd_T = fixed_T
    for s in range(num_steps):
        # edge update: W_ge1 @ [a_rep; b_rep; updatable; fixed] as partial matmuls;
        # the node->edge gather is a per-track lane-broadcast (no selection matrix).
        Ca = dot(Wge1_a, nodes_T[:, 0:A])                                     # (E, A)
        Cb = dot(Wge1_b, nodes_T[:, A:NW])                                    # (E, B_pad)
        ab = jnp.concatenate([Ca[:, i:i + 1] + Cb for i in range(A)], axis=1)  # (E, EW)
        e_pre = dot(Wge1_u, upd_T) + fixed_contrib + ab
        upd_T = jnp.maximum(dot(W_ge2, jnp.maximum(e_pre, 0.0)) + b_ge2B, 0.0)

        # edge -> node aggregation: block-wise sums (no dense AGG matrix).
        upd_m = upd_T * edge_mask                      # zero padded-box columns
        msg_a = jnp.concatenate(
            [jnp.sum(upd_m[:, i * B_pad:(i + 1) * B_pad], axis=1, keepdims=True)
             for i in range(A)], axis=1)               # (E, A)  message to tracks
        msg_b = upd_m[:, 0:B_pad]
        for i in range(1, A):
            msg_b = msg_b + upd_m[:, i * B_pad:(i + 1) * B_pad]  # (E, B_pad) to boxes
        msg_T = jnp.concatenate([msg_a, msg_b], axis=1)          # (E, NW)

        # node update: shared node MLP, both sides in one fused matmul
        n_pre = dot(Wgn1_n, nodes_T) + dot(Wgn1_m, msg_T) + b_gn1B
        nodes_T = jnp.maximum(dot(W_gn2, jnp.maximum(n_pre, 0.0)) + b_gn2B, 0.0)

        # per-step classifier -> write the lane-dense logit row directly
        hc = jnp.maximum(dot(W_c1, upd_T) + b_c1B, 0.0)
        out_ref[s:s + 1, :] = dot(W_c2, hc) + b_c2B                           # (1, EW)


@functools.partial(jax.jit, static_argnames=("num_steps", "node_dim", "edge_dim"))
def assignment_similarity_net(packed_params, track_features, current_features,
                              track_boxes, current_boxes, track_time, current_time,
                              num_steps, node_dim, edge_dim):
    f32 = jnp.float32
    A, R = track_features.shape
    B = current_features.shape[0]
    B_pad = ((B + 127) // 128) * 128          # lane-dense edge blocks / output
    spec = _layer_spec(node_dim, edge_dim, R)
    off, _ = _param_offsets(spec)

    data = _pack_data(track_features.astype(f32), current_features.astype(f32),
                      track_boxes.astype(f32), current_boxes.astype(f32),
                      track_time.astype(f32), current_time.astype(f32), B_pad)
    tnat = track_features.astype(f32)         # (A, R) natural layout for the cosine matmul

    kern = functools.partial(assignment_kernel, off, num_steps, A, B, B_pad, R)
    vmem = pl.BlockSpec(memory_space=pltpu.MemorySpace.VMEM)
    out = pl.pallas_call(
        kern,
        out_shape=jax.ShapeDtypeStruct((num_steps, A * B_pad), f32),
        in_specs=[vmem, vmem, vmem],
        out_specs=vmem,
    )(data, tnat, packed_params)
    # train-mode output: (num_steps, num_tracks, num_boxes); drop padded boxes.
    return out.reshape(num_steps, A, B_pad)[:, :, :B]


def init_params(key, node_dim, edge_dim, reid_dim):
    """torch nn.Linear-style init; weights kept in torch layout (out, in)."""
    spec = _layer_spec(node_dim, edge_dim, reid_dim)
    keys = jax.random.split(key, len(spec))
    p = {}
    for k, (name, o, f) in zip(keys, spec):
        kw, kb = jax.random.split(k)
        bound = f ** -0.5
        p[name + "_w"] = jax.random.uniform(kw, (o, f), jnp.float32, -bound, bound)
        p[name + "_b"] = jax.random.uniform(kb, (o,), jnp.float32, -bound, bound)
    return p


if __name__ == "__main__":
    node_dim, edge_dim, reid_dim, num_steps = 32, 16, 32, 3
    num_tracks, num_boxes = 6, 8

    key = jax.random.PRNGKey(0)
    kp, kf1, kf2, kb1, kb2 = jax.random.split(key, 5)

    params = init_params(kp, node_dim, edge_dim, reid_dim)
    # Weight packing hoisted out of the per-frame path (done once).
    packed_params = pack_params(params, node_dim, edge_dim, reid_dim)

    track_features = jax.random.normal(kf1, (num_tracks, reid_dim), jnp.float32)
    current_features = jax.random.normal(kf2, (num_boxes, reid_dim), jnp.float32)

    def make_boxes(k, n):
        k1, k2 = jax.random.split(k)
        xy = jax.random.uniform(k1, (n, 2), jnp.float32, 0.0, 50.0)
        wh = jax.random.uniform(k2, (n, 2), jnp.float32, 10.0, 40.0)
        return jnp.concatenate([xy, xy + wh], axis=-1)   # xyxy, valid (w, h > 0)

    track_boxes = make_boxes(kb1, num_tracks)
    current_boxes = make_boxes(kb2, num_boxes)
    track_time = jnp.arange(num_tracks, dtype=jnp.float32)
    current_time = jnp.full((num_boxes,), float(num_tracks), jnp.float32)

    logits = assignment_similarity_net(
        packed_params, track_features, current_features,
        track_boxes, current_boxes, track_time, current_time,
        num_steps=num_steps, node_dim=node_dim, edge_dim=edge_dim)
    logits = jax.block_until_ready(logits)

    assert logits.shape == (num_steps, num_tracks, num_boxes)
    assert bool(jnp.all(jnp.isfinite(logits)))
    print("KERNEL_OK")
</pallas_src>

<mosaic_0001>
module attributes {stable_mosaic.version = 11 : i64} {
  func.func @assignment_kernel(%arg0: memref<40x134xf32, #tpu.memory_space<vmem>>, %arg1: memref<6x32xf32, #tpu.memory_space<vmem>>, %arg2: memref<184x128xf32, #tpu.memory_space<vmem>>, %arg3: memref<3x768xf32, #tpu.memory_space<vmem>>) attributes {dimension_semantics = [], scalar_prefetch = 0 : i64, scratch_operands = 0 : i64, tpu.core_type = #tpu.core_type<tc>} {
    %c0 = arith.constant 0 : index
    %c0_0 = arith.constant 0 : index
    %0 = vector.load %arg2[%c0, %c0_0] : memref<184x128xf32, #tpu.memory_space<vmem>>, vector<32x32xf32>
    %c0_1 = arith.constant 0 : index
    %c32 = arith.constant 32 : index
    %1 = vector.load %arg2[%c0_1, %c32] : memref<184x128xf32, #tpu.memory_space<vmem>>, vector<32x1xf32>
    %c32_2 = arith.constant 32 : index
    %c0_3 = arith.constant 0 : index
    %2 = vector.load %arg2[%c32_2, %c0_3] : memref<184x128xf32, #tpu.memory_space<vmem>>, vector<16x6xf32>
    %c32_4 = arith.constant 32 : index
    %c6 = arith.constant 6 : index
    %3 = vector.load %arg2[%c32_4, %c6] : memref<184x128xf32, #tpu.memory_space<vmem>>, vector<16x1xf32>
    %c48 = arith.constant 48 : index
    %c0_5 = arith.constant 0 : index
    %4 = vector.load %arg2[%c48, %c0_5] : memref<184x128xf32, #tpu.memory_space<vmem>>, vector<16x16xf32>
    %c48_6 = arith.constant 48 : index
    %c16 = arith.constant 16 : index
    %5 = vector.load %arg2[%c48_6, %c16] : memref<184x128xf32, #tpu.memory_space<vmem>>, vector<16x1xf32>
    %c64 = arith.constant 64 : index
    %c0_7 = arith.constant 0 : index
    %6 = vector.load %arg2[%c64, %c0_7] : memref<184x128xf32, #tpu.memory_space<vmem>>, vector<16x96xf32>
    %c64_8 = arith.constant 64 : index
    %c96 = arith.constant 96 : index
    %7 = vector.load %arg2[%c64_8, %c96] : memref<184x128xf32, #tpu.memory_space<vmem>>, vector<16x1xf32>
    %c80 = arith.constant 80 : index
    %c0_9 = arith.constant 0 : index
    %8 = vector.load %arg2[%c80, %c0_9] : memref<184x128xf32, #tpu.memory_space<vmem>>, vector<16x16xf32>
    %c80_10 = arith.constant 80 : index
    %c16_11 = arith.constant 16 : index
    %9 = vector.load %arg2[%c80_10, %c16_11] : memref<184x128xf32, #tpu.memory_space<vmem>>, vector<16x1xf32>
    %c96_12 = arith.constant 96 : index
    %c0_13 = arith.constant 0 : index
    %10 = vector.load %arg2[%c96_12, %c0_13] : memref<184x128xf32, #tpu.memory_space<vmem>>, vector<32x48xf32>
    %c96_14 = arith.constant 96 : index
    %c48_15 = arith.constant 48 : index
    %11 = vector.load %arg2[%c96_14, %c48_15] : memref<184x128xf32, #tpu.memory_space<vmem>>, vector<32x1xf32>
    %c128 = arith.constant 128 : index
    %c0_16 = arith.constant 0 : index
    %12 = vector.load %arg2[%c128, %c0_16] : memref<184x128xf32, #tpu.memory_space<vmem>>, vector<32x32xf32>
    %c128_17 = arith.constant 128 : index
    %c32_18 = arith.constant 32 : index
    %13 = vector.load %arg2[%c128_17, %c32_18] : memref<184x128xf32, #tpu.memory_space<vmem>>, vector<32x1xf32>
    %c160 = arith.constant 160 : index
    %c0_19 = arith.constant 0 : index
    %14 = vector.load %arg2[%c160, %c0_19] : memref<184x128xf32, #tpu.memory_space<vmem>>, vector<16x16xf32>
    %c160_20 = arith.constant 160 : index
    %c16_21 = arith.constant 16 : index
    %15 = vector.load %arg2[%c160_20, %c16_21] : memref<184x128xf32, #tpu.memory_space<vmem>>, vector<16x1xf32>
    %c176 = arith.constant 176 : index
    %c0_22 = arith.constant 0 : index
    %16 = vector.load %arg2[%c176, %c0_22] : memref<184x128xf32, #tpu.memory_space<vmem>>, vector<1x16xf32>
    %c176_23 = arith.constant 176 : index
    %c16_24 = arith.constant 16 : index
    %17 = vector.load %arg2[%c176_23, %c16_24] : memref<184x128xf32, #tpu.memory_space<vmem>>, vector<1x1xf32>
    %18 = vector.extract_strided_slice %6 {offsets = [0, 0], sizes = [16, 32], strides = [1, 1]} : vector<16x96xf32> to vector<16x32xf32>
    %19 = vector.extract_strided_slice %6 {offsets = [0, 32], sizes = [16, 32], strides = [1, 1]} : vector<16x96xf32> to vector<16x32xf32>
    %20 = vector.extract_strided_slice %6 {offsets = [0, 64], sizes = [16, 16], strides = [1, 1]} : vector<16x96xf32> to vector<16x16xf32>
    %21 = vector.extract_strided_slice %6 {offsets = [0, 80], sizes = [16, 16], strides = [1, 1]} : vector<16x96xf32> to vector<16x16xf32>
    %22 = vector.extract_strided_slice %10 {offsets = [0, 0], sizes = [32, 32], strides = [1, 1]} : vector<32x48xf32> to vector<32x32xf32>
    %23 = vector.extract_strided_slice %10 {offsets = [0, 32], sizes = [32, 16], strides = [1, 1]} : vector<32x48xf32> to vector<32x16xf32>
    %c0_25 = arith.constant 0 : index
    %c0_26 = arith.constant 0 : index
    %24 = vector.load %arg0[%c0_25, %c0_26] : memref<40x134xf32, #tpu.memory_space<vmem>>, vector<32x134xf32>
    %c32_27 = arith.constant 32 : index
    %c0_28 = arith.constant 0 : index
    %25 = vector.load %arg0[%c32_27, %c0_28] : memref<40x134xf32, #tpu.memory_space<vmem>>, vector<5x134xf32>
    %26 = vector.extract_strided_slice %25 {offsets = [0, 0], sizes = [5, 6], strides = [1, 1]} : vector<5x134xf32> to vector<5x6xf32>
    %27 = vector.extract_strided_slice %25 {offsets = [0, 6], sizes = [5, 128], strides = [1, 1]} : vector<5x134xf32> to vector<5x128xf32>
    %28 = vector.extract_strided_slice %26 {offsets = [0, 0], sizes = [1, 6], strides = [1, 1]} : vector<5x6xf32> to vector<1x6xf32>
    %29 = vector.extract_strided_slice %26 {offsets = [2, 0], sizes = [1, 6], strides = [1, 1]} : vector<5x6xf32> to vector<1x6xf32>
    %30 = arith.addf %28, %29 : vector<1x6xf32>
    %cst = arith.constant 5.000000e-01 : f32
    %31 = vector.broadcast %cst : f32 to vector<1x6xf32>
    %32 = arith.mulf %31, %30 : vector<1x6xf32>
    %33 = vector.extract_strided_slice %26 {offsets = [1, 0], sizes = [1, 6], strides = [1, 1]} : vector<5x6xf32> to vector<1x6xf32>
    %34 = vector.extract_strided_slice %26 {offsets = [3, 0], sizes = [1, 6], strides = [1, 1]} : vector<5x6xf32> to vector<1x6xf32>
    %35 = arith.addf %33, %34 : vector<1x6xf32>
    %cst_29 = arith.constant 5.000000e-01 : f32
    %36 = vector.broadcast %cst_29 : f32 to vector<1x6xf32>
    %37 = arith.mulf %36, %35 : vector<1x6xf32>
    %38 = vector.extract_strided_slice %26 {offsets = [2, 0], sizes = [1, 6], strides = [1, 1]} : vector<5x6xf32> to vector<1x6xf32>
    %39 = vector.extract_strided_slice %26 {offsets = [0, 0], sizes = [1, 6], strides = [1, 1]} : vector<5x6xf32> to vector<1x6xf32>
    %40 = arith.subf %38, %39 : vector<1x6xf32>
    %41 = vector.extract_strided_slice %26 {offsets = [3, 0], sizes = [1, 6], strides = [1, 1]} : vector<5x6xf32> to vector<1x6xf32>
    %42 = vector.extract_strided_slice %26 {offsets = [1, 0], sizes = [1, 6], strides = [1, 1]} : vector<5x6xf32> to vector<1x6xf32>
    %43 = arith.subf %41, %42 : vector<1x6xf32>
    %44 = vector.extract_strided_slice %26 {offsets = [4, 0], sizes = [1, 6], strides = [1, 1]} : vector<5x6xf32> to vector<1x6xf32>
    %45 = vector.extract_strided_slice %27 {offsets = [0, 0], sizes = [1, 128], strides = [1, 1]} : vector<5x128xf32> to vector<1x128xf32>
    %46 = vector.extract_strided_slice %27 {offsets = [2, 0], sizes = [1, 128], strides = [1, 1]} : vector<5x128xf32> to vector<1x128xf32>
    %47 = arith.addf %45, %46 : vector<1x128xf32>
    %cst_30 = arith.constant 5.000000e-01 : f32
    %48 = vector.broadcast %cst_30 : f32 to vector<1x128xf32>
    %49 = arith.mulf %48, %47 : vector<1x128xf32>
    %50 = vector.extract_strided_slice %27 {offsets = [1, 0], sizes = [1, 128], strides = [1, 1]} : vector<5x128xf32> to vector<1x128xf32>
    %51 = vector.extract_strided_slice %27 {offsets = [3, 0], sizes = [1, 128], strides = [1, 1]} : vector<5x128xf32> to vector<1x128xf32>
    %52 = arith.addf %50, %51 : vector<1x128xf32>
    %cst_31 = arith.constant 5.000000e-01 : f32
    %53 = vector.broadcast %cst_31 : f32 to vector<1x128xf32>
    %54 = arith.mulf %53, %52 : vector<1x128xf32>
    %55 = vector.extract_strided_slice %27 {offsets = [2, 0], sizes = [1, 128], strides = [1, 1]} : vector<5x128xf32> to vector<1x128xf32>
    %56 = vector.extract_strided_slice %27 {offsets = [0, 0], sizes = [1, 128], strides = [1, 1]} : vector<5x128xf32> to vector<1x128xf32>
    %57 = arith.subf %55, %56 : vector<1x128xf32>
    %58 = vector.extract_strided_slice %27 {offsets = [3, 0], sizes = [1, 128], strides = [1, 1]} : vector<5x128xf32> to vector<1x128xf32>
    %59 = vector.extract_strided_slice %27 {offsets = [1, 0], sizes = [1, 128], strides = [1, 1]} : vector<5x128xf32> to vector<1x128xf32>
    %60 = arith.subf %58, %59 : vector<1x128xf32>
    %61 = vector.extract_strided_slice %27 {offsets = [4, 0], sizes = [1, 128], strides = [1, 1]} : vector<5x128xf32> to vector<1x128xf32>
    %c0_32 = arith.constant 0 : index
    %c0_33 = arith.constant 0 : index
    %62 = vector.load %arg1[%c0_32, %c0_33] : memref<6x32xf32, #tpu.memory_space<vmem>>, vector<6x32xf32>
    %63 = arith.mulf %62, %62 : vector<6x32xf32>
    %cst_34 = arith.constant dense<0.000000e+00> : vector<6xf32>
    %64 = vector.multi_reduction <add>, %63, %cst_34 [1] : vector<6x32xf32> to vector<6xf32>
    %65 = vector.shape_cast %64 : vector<6xf32> to vector<6x1xf32>
    %cst_35 = arith.constant 9.99999996E-13 : f32
    %66 = vector.broadcast %cst_35 : f32 to vector<6x1xf32>
    %67 = arith.addf %65, %66 : vector<6x1xf32>
    %68 = math.rsqrt %67 : vector<6x1xf32>
    %69 = vector.broadcast %68 : vector<6x1xf32> to vector<6x32xf32>
    %70 = arith.mulf %62, %69 : vector<6x32xf32>
    %71 = vector.extract_strided_slice %24 {offsets = [0, 6], sizes = [32, 128], strides = [1, 1]} : vector<32x134xf32> to vector<32x128xf32>
    %72 = arith.mulf %71, %71 : vector<32x128xf32>
    %cst_36 = arith.constant dense<0.000000e+00> : vector<128xf32>
    %73 = vector.multi_reduction <add>, %72, %cst_36 [0] : vector<32x128xf32> to vector<128xf32>
    %74 = vector.shape_cast %73 : vector<128xf32> to vector<1x128xf32>
    %cst_37 = arith.constant 9.99999996E-13 : f32
    %75 = vector.broadcast %cst_37 : f32 to vector<1x128xf32>
    %76 = arith.addf %74, %75 : vector<1x128xf32>
    %77 = math.rsqrt %76 : vector<1x128xf32>
    %78 = vector.broadcast %77 : vector<1x128xf32> to vector<32x128xf32>
    %79 = arith.mulf %71, %78 : vector<32x128xf32>
    %cst_38 = arith.constant dense<0.000000e+00> : vector<6x128xf32>
    %80 = tpu.matmul %70, %79, %cst_38 {dimension_numbers = #tpu.dot_dimension_numbers<[1], [0], [0], [1], [0, 0, 1, 1], [], []>} : vector<6x32xf32>, vector<32x128xf32>, vector<6x128xf32> -> vector<6x128xf32>
    %81 = vector.extract_strided_slice %32 {offsets = [0, 0], sizes = [1, 1], strides = [1, 1]} : vector<1x6xf32> to vector<1x1xf32>
    %82 = vector.extract_strided_slice %37 {offsets = [0, 0], sizes = [1, 1], strides = [1, 1]} : vector<1x6xf32> to vector<1x1xf32>
    %83 = vector.extract_strided_slice %40 {offsets = [0, 0], sizes = [1, 1], strides = [1, 1]} : vector<1x6xf32> to vector<1x1xf32>
    %84 = vector.extract_strided_slice %43 {offsets = [0, 0], sizes = [1, 1], strides = [1, 1]} : vector<1x6xf32> to vector<1x1xf32>
    %85 = vector.extract_strided_slice %44 {offsets = [0, 0], sizes = [1, 1], strides = [1, 1]} : vector<1x6xf32> to vector<1x1xf32>
    %86 = vector.broadcast %84 : vector<1x1xf32> to vector<1x128xf32>
    %87 = arith.addf %86, %60 : vector<1x128xf32>
    %88 = vector.broadcast %81 : vector<1x1xf32> to vector<1x128xf32>
    %89 = arith.subf %49, %88 : vector<1x128xf32>
    %cst_39 = arith.constant 2.000000e+00 : f32
    %90 = vector.broadcast %cst_39 : f32 to vector<1x128xf32>
    %91 = arith.mulf %90, %89 : vector<1x128xf32>
    %92 = arith.divf %91, %87 : vector<1x128xf32>
    %93 = vector.broadcast %82 : vector<1x1xf32> to vector<1x128xf32>
    %94 = arith.subf %54, %93 : vector<1x128xf32>
    %cst_40 = arith.constant 2.000000e+00 : f32
    %95 = vector.broadcast %cst_40 : f32 to vector<1x128xf32>
    %96 = arith.mulf %95, %94 : vector<1x128xf32>
    %97 = arith.divf %96, %87 : vector<1x128xf32>
    %98 = vector.broadcast %83 : vector<1x1xf32> to vector<1x128xf32>
    %99 = arith.divf %98, %57 : vector<1x128xf32>
    %100 = math.log %99 : vector<1x128xf32>
    %101 = vector.broadcast %84 : vector<1x1xf32> to vector<1x128xf32>
    %102 = arith.divf %101, %60 : vector<1x128xf32>
    %103 = math.log %102 : vector<1x128xf32>
    %104 = vector.broadcast %85 : vector<1x1xf32> to vector<1x128xf32>
    %105 = arith.subf %61, %104 : vector<1x128xf32>
    %106 = vector.extract_strided_slice %80 {offsets = [0, 0], sizes = [1, 128], strides = [1, 1]} : vector<6x128xf32> to vector<1x128xf32>
    %cst_41 = arith.constant 1.000000e+00 : f32
    %107 = vector.broadcast %cst_41 : f32 to vector<1x128xf32>
    %108 = arith.subf %107, %106 : vector<1x128xf32>
    %109 = tpu.concatenate %92, %97, %100, %103, %105, %108 in 0 : vector<1x128xf32>, vector<1x128xf32>, vector<1x128xf32>, vector<1x128xf32>, vector<1x128xf32>, vector<1x128xf32> -> vector<6x128xf32>
    %110 = vector.extract_strided_slice %32 {offsets = [0, 1], sizes = [1, 1], strides = [1, 1]} : vector<1x6xf32> to vector<1x1xf32>
    %111 = vector.extract_strided_slice %37 {offsets = [0, 1], sizes = [1, 1], strides = [1, 1]} : vector<1x6xf32> to vector<1x1xf32>
    %112 = vector.extract_strided_slice %40 {offsets = [0, 1], sizes = [1, 1], strides = [1, 1]} : vector<1x6xf32> to vector<1x1xf32>
    %113 = vector.extract_strided_slice %43 {offsets = [0, 1], sizes = [1, 1], strides = [1, 1]} : vector<1x6xf32> to vector<1x1xf32>
    %114 = vector.extract_strided_slice %44 {offsets = [0, 1], sizes = [1, 1], strides = [1, 1]} : vector<1x6xf32> to vector<1x1xf32>
    %115 = vector.broadcast %113 : vector<1x1xf32> to vector<1x128xf32>
    %116 = arith.addf %115, %60 : vector<1x128xf32>
    %117 = vector.broadcast %110 : vector<1x1xf32> to vector<1x128xf32>
    %118 = arith.subf %49, %117 : vector<1x128xf32>
    %cst_42 = arith.constant 2.000000e+00 : f32
    %119 = vector.broadcast %cst_42 : f32 to vector<1x128xf32>
    %120 = arith.mulf %119, %118 : vector<1x128xf32>
    %121 = arith.divf %120, %116 : vector<1x128xf32>
    %122 = vector.broadcast %111 : vector<1x1xf32> to vector<1x128xf32>
    %123 = arith.subf %54, %122 : vector<1x128xf32>
    %cst_43 = arith.constant 2.000000e+00 : f32
    %124 = vector.broadcast %cst_43 : f32 to vector<1x128xf32>
    %125 = arith.mulf %124, %123 : vector<1x128xf32>
    %126 = arith.divf %125, %116 : vector<1x128xf32>
    %127 = vector.broadcast %112 : vector<1x1xf32> to vector<1x128xf32>
    %128 = arith.divf %127, %57 : vector<1x128xf32>
    %129 = math.log %128 : vector<1x128xf32>
    %130 = vector.broadcast %113 : vector<1x1xf32> to vector<1x128xf32>
    %131 = arith.divf %130, %60 : vector<1x128xf32>
    %132 = math.log %131 : vector<1x128xf32>
    %133 = vector.broadcast %114 : vector<1x1xf32> to vector<1x128xf32>
    %134 = arith.subf %61, %133 : vector<1x128xf32>
    %135 = vector.extract_strided_slice %80 {offsets = [1, 0], sizes = [1, 128], strides = [1, 1]} : vector<6x128xf32> to vector<1x128xf32>
    %cst_44 = arith.constant 1.000000e+00 : f32
    %136 = vector.broadcast %cst_44 : f32 to vector<1x128xf32>
    %137 = arith.subf %136, %135 : vector<1x128xf32>
    %138 = tpu.concatenate %121, %126, %129, %132, %134, %137 in 0 : vector<1x128xf32>, vector<1x128xf32>, vector<1x128xf32>, vector<1x128xf32>, vector<1x128xf32>, vector<1x128xf32> -> vector<6x128xf32>
    %139 = vector.extract_strided_slice %32 {offsets = [0, 2], sizes = [1, 1], strides = [1, 1]} : vector<1x6xf32> to vector<1x1xf32>
    %140 = vector.extract_strided_slice %37 {offsets = [0, 2], sizes = [1, 1], strides = [1, 1]} : vector<1x6xf32> to vector<1x1xf32>
    %141 = vector.extract_strided_slice %40 {offsets = [0, 2], sizes = [1, 1], strides = [1, 1]} : vector<1x6xf32> to vector<1x1xf32>
    %142 = vector.extract_strided_slice %43 {offsets = [0, 2], sizes = [1, 1], strides = [1, 1]} : vector<1x6xf32> to vector<1x1xf32>
    %143 = vector.extract_strided_slice %44 {offsets = [0, 2], sizes = [1, 1], strides = [1, 1]} : vector<1x6xf32> to vector<1x1xf32>
    %144 = vector.broadcast %142 : vector<1x1xf32> to vector<1x128xf32>
    %145 = arith.addf %144, %60 : vector<1x128xf32>
    %146 = vector.broadcast %139 : vector<1x1xf32> to vector<1x128xf32>
    %147 = arith.subf %49, %146 : vector<1x128xf32>
    %cst_45 = arith.constant 2.000000e+00 : f32
    %148 = vector.broadcast %cst_45 : f32 to vector<1x128xf32>
    %149 = arith.mulf %148, %147 : vector<1x128xf32>
    %150 = arith.divf %149, %145 : vector<1x128xf32>
    %151 = vector.broadcast %140 : vector<1x1xf32> to vector<1x128xf32>
    %152 = arith.subf %54, %151 : vector<1x128xf32>
    %cst_46 = arith.constant 2.000000e+00 : f32
    %153 = vector.broadcast %cst_46 : f32 to vector<1x128xf32>
    %154 = arith.mulf %153, %152 : vector<1x128xf32>
    %155 = arith.divf %154, %145 : vector<1x128xf32>
    %156 = vector.broadcast %141 : vector<1x1xf32> to vector<1x128xf32>
    %157 = arith.divf %156, %57 : vector<1x128xf32>
    %158 = math.log %157 : vector<1x128xf32>
    %159 = vector.broadcast %142 : vector<1x1xf32> to vector<1x128xf32>
    %160 = arith.divf %159, %60 : vector<1x128xf32>
    %161 = math.log %160 : vector<1x128xf32>
    %162 = vector.broadcast %143 : vector<1x1xf32> to vector<1x128xf32>
    %163 = arith.subf %61, %162 : vector<1x128xf32>
    %164 = vector.extract_strided_slice %80 {offsets = [2, 0], sizes = [1, 128], strides = [1, 1]} : vector<6x128xf32> to vector<1x128xf32>
    %cst_47 = arith.constant 1.000000e+00 : f32
    %165 = vector.broadcast %cst_47 : f32 to vector<1x128xf32>
    %166 = arith.subf %165, %164 : vector<1x128xf32>
    %167 = tpu.concatenate %150, %155, %158, %161, %163, %166 in 0 : vector<1x128xf32>, vector<1x128xf32>, vector<1x128xf32>, vector<1x128xf32>, vector<1x128xf32>, vector<1x128xf32> -> vector<6x128xf32>
    %168 = vector.extract_strided_slice %32 {offsets = [0, 3], sizes = [1, 1], strides = [1, 1]} : vector<1x6xf32> to vector<1x1xf32>
    %169 = vector.extract_strided_slice %37 {offsets = [0, 3], sizes = [1, 1], strides = [1, 1]} : vector<1x6xf32> to vector<1x1xf32>
    %170 = vector.extract_strided_slice %40 {offsets = [0, 3], sizes = [1, 1], strides = [1, 1]} : vector<1x6xf32> to vector<1x1xf32>
    %171 = vector.extract_strided_slice %43 {offsets = [0, 3], sizes = [1, 1], strides = [1, 1]} : vector<1x6xf32> to vector<1x1xf32>
    %172 = vector.extract_strided_slice %44 {offsets = [0, 3], sizes = [1, 1], strides = [1, 1]} : vector<1x6xf32> to vector<1x1xf32>
    %173 = vector.broadcast %171 : vector<1x1xf32> to vector<1x128xf32>
    %174 = arith.addf %173, %60 : vector<1x128xf32>
    %175 = vector.broadcast %168 : vector<1x1xf32> to vector<1x128xf32>
    %176 = arith.subf %49, %175 : vector<1x128xf32>
    %cst_48 = arith.constant 2.000000e+00 : f32
    %177 = vector.broadcast %cst_48 : f32 to vector<1x128xf32>
    %178 = arith.mulf %177, %176 : vector<1x128xf32>
    %179 = arith.divf %178, %174 : vector<1x128xf32>
    %180 = vector.broadcast %169 : vector<1x1xf32> to vector<1x128xf32>
    %181 = arith.subf %54, %180 : vector<1x128xf32>
    %cst_49 = arith.constant 2.000000e+00 : f32
    %182 = vector.broadcast %cst_49 : f32 to vector<1x128xf32>
    %183 = arith.mulf %182, %181 : vector<1x128xf32>
    %184 = arith.divf %183, %174 : vector<1x128xf32>
    %185 = vector.broadcast %170 : vector<1x1xf32> to vector<1x128xf32>
    %186 = arith.divf %185, %57 : vector<1x128xf32>
    %187 = math.log %186 : vector<1x128xf32>
    %188 = vector.broadcast %171 : vector<1x1xf32> to vector<1x128xf32>
    %189 = arith.divf %188, %60 : vector<1x128xf32>
    %190 = math.log %189 : vector<1x128xf32>
    %191 = vector.broadcast %172 : vector<1x1xf32> to vector<1x128xf32>
    %192 = arith.subf %61, %191 : vector<1x128xf32>
    %193 = vector.extract_strided_slice %80 {offsets = [3, 0], sizes = [1, 128], strides = [1, 1]} : vector<6x128xf32> to vector<1x128xf32>
    %cst_50 = arith.constant 1.000000e+00 : f32
    %194 = vector.broadcast %cst_50 : f32 to vector<1x128xf32>
    %195 = arith.subf %194, %193 : vector<1x128xf32>
    %196 = tpu.concatenate %179, %184, %187, %190, %192, %195 in 0 : vector<1x128xf32>, vector<1x128xf32>, vector<1x128xf32>, vector<1x128xf32>, vector<1x128xf32>, vector<1x128xf32> -> vector<6x128xf32>
    %197 = vector.extract_strided_slice %32 {offsets = [0, 4], sizes = [1, 1], strides = [1, 1]} : vector<1x6xf32> to vector<1x1xf32>
    %198 = vector.extract_strided_slice %37 {offsets = [0, 4], sizes = [1, 1], strides = [1, 1]} : vector<1x6xf32> to vector<1x1xf32>
    %199 = vector.extract_strided_slice %40 {offsets = [0, 4], sizes = [1, 1], strides = [1, 1]} : vector<1x6xf32> to vector<1x1xf32>
    %200 = vector.extract_strided_slice %43 {offsets = [0, 4], sizes = [1, 1], strides = [1, 1]} : vector<1x6xf32> to vector<1x1xf32>
    %201 = vector.extract_strided_slice %44 {offsets = [0, 4], sizes = [1, 1], strides = [1, 1]} : vector<1x6xf32> to vector<1x1xf32>
    %202 = vector.broadcast %200 : vector<1x1xf32> to vector<1x128xf32>
    %203 = arith.addf %202, %60 : vector<1x128xf32>
    %204 = vector.broadcast %197 : vector<1x1xf32> to vector<1x128xf32>
    %205 = arith.subf %49, %204 : vector<1x128xf32>
    %cst_51 = arith.constant 2.000000e+00 : f32
    %206 = vector.broadcast %cst_51 : f32 to vector<1x128xf32>
    %207 = arith.mulf %206, %205 : vector<1x128xf32>
    %208 = arith.divf %207, %203 : vector<1x128xf32>
    %209 = vector.broadcast %198 : vector<1x1xf32> to vector<1x128xf32>
    %210 = arith.subf %54, %209 : vector<1x128xf32>
    %cst_52 = arith.constant 2.000000e+00 : f32
    %211 = vector.broadcast %cst_52 : f32 to vector<1x128xf32>
    %212 = arith.mulf %211, %210 : vector<1x128xf32>
    %213 = arith.divf %212, %203 : vector<1x128xf32>
    %214 = vector.broadcast %199 : vector<1x1xf32> to vector<1x128xf32>
    %215 = arith.divf %214, %57 : vector<1x128xf32>
    %216 = math.log %215 : vector<1x128xf32>
    %217 = vector.broadcast %200 : vector<1x1xf32> to vector<1x128xf32>
    %218 = arith.divf %217, %60 : vector<1x128xf32>
    %219 = math.log %218 : vector<1x128xf32>
    %220 = vector.broadcast %201 : vector<1x1xf32> to vector<1x128xf32>
    %221 = arith.subf %61, %220 : vector<1x128xf32>
    %222 = vector.extract_strided_slice %80 {offsets = [4, 0], sizes = [1, 128], strides = [1, 1]} : vector<6x128xf32> to vector<1x128xf32>
    %cst_53 = arith.constant 1.000000e+00 : f32
    %223 = vector.broadcast %cst_53 : f32 to vector<1x128xf32>
    %224 = arith.subf %223, %222 : vector<1x128xf32>
    %225 = tpu.concatenate %208, %213, %216, %219, %221, %224 in 0 : vector<1x128xf32>, vector<1x128xf32>, vector<1x128xf32>, vector<1x128xf32>, vector<1x128xf32>, vector<1x128xf32> -> vector<6x128xf32>
    %226 = vector.extract_strided_slice %32 {offsets = [0, 5], sizes = [1, 1], strides = [1, 1]} : vector<1x6xf32> to vector<1x1xf32>
    %227 = vector.extract_strided_slice %37 {offsets = [0, 5], sizes = [1, 1], strides = [1, 1]} : vector<1x6xf32> to vector<1x1xf32>
    %228 = vector.extract_strided_slice %40 {offsets = [0, 5], sizes = [1, 1], strides = [1, 1]} : vector<1x6xf32> to vector<1x1xf32>
    %229 = vector.extract_strided_slice %43 {offsets = [0, 5], sizes = [1, 1], strides = [1, 1]} : vector<1x6xf32> to vector<1x1xf32>
    %230 = vector.extract_strided_slice %44 {offsets = [0, 5], sizes = [1, 1], strides = [1, 1]} : vector<1x6xf32> to vector<1x1xf32>
    %231 = vector.broadcast %229 : vector<1x1xf32> to vector<1x128xf32>
    %232 = arith.addf %231, %60 : vector<1x128xf32>
    %233 = vector.broadcast %226 : vector<1x1xf32> to vector<1x128xf32>
    %234 = arith.subf %49, %233 : vector<1x128xf32>
    %cst_54 = arith.constant 2.000000e+00 : f32
    %235 = vector.broadcast %cst_54 : f32 to vector<1x128xf32>
    %236 = arith.mulf %235, %234 : vector<1x128xf32>
    %237 = arith.divf %236, %232 : vector<1x128xf32>
    %238 = vector.broadcast %227 : vector<1x1xf32> to vector<1x128xf32>
    %239 = arith.subf %54, %238 : vector<1x128xf32>
    %cst_55 = arith.constant 2.000000e+00 : f32
    %240 = vector.broadcast %cst_55 : f32 to vector<1x128xf32>
    %241 = arith.mulf %240, %239 : vector<1x128xf32>
    %242 = arith.divf %241, %232 : vector<1x128xf32>
    %243 = vector.broadcast %228 : vector<1x1xf32> to vector<1x128xf32>
    %244 = arith.divf %243, %57 : vector<1x128xf32>
    %245 = math.log %244 : vector<1x128xf32>
    %246 = vector.broadcast %229 : vector<1x1xf32> to vector<1x128xf32>
    %247 = arith.divf %246, %60 : vector<1x128xf32>
    %248 = math.log %247 : vector<1x128xf32>
    %249 = vector.broadcast %230 : vector<1x1xf32> to vector<1x128xf32>
    %250 = arith.subf %61, %249 : vector<1x128xf32>
    %251 = vector.extract_strided_slice %80 {offsets = [5, 0], sizes = [1, 128], strides = [1, 1]} : vector<6x128xf32> to vector<1x128xf32>
    %cst_56 = arith.constant 1.000000e+00 : f32
    %252 = vector.broadcast %cst_56 : f32 to vector<1x128xf32>
    %253 = arith.subf %252, %251 : vector<1x128xf32>
    %254 = tpu.concatenate %237, %242, %245, %248, %250, %253 in 0 : vector<1x128xf32>, vector<1x128xf32>, vector<1x128xf32>, vector<1x128xf32>, vector<1x128xf32>, vector<1x128xf32> -> vector<6x128xf32>
    %255 = tpu.concatenate %109, %138, %167, %196, %225, %254 in 1 : vector<6x128xf32>, vector<6x128xf32>, vector<6x128xf32>, vector<6x128xf32>, vector<6x128xf32>, vector<6x128xf32> -> vector<6x768xf32>
    %256 = arith.truncf %2 : vector<16x6xf32> to vector<16x6xbf16>
    %257 = arith.truncf %255 : vector<6x768xf32> to vector<6x768xbf16>
    %cst_57 = arith.constant dense<0.000000e+00> : vector<16x768xf32>
    %258 = tpu.matmul %256, %257, %cst_57 {dimension_numbers = #tpu.dot_dimension_numbers<[1], [0], [0], [1], [0, 0, 1, 1], [], []>} : vector<16x6xbf16>, vector<6x768xbf16>, vector<16x768xf32> -> vector<16x768xf32>
    %259 = vector.broadcast %3 : vector<16x1xf32> to vector<16x768xf32>
    %260 = arith.addf %258, %259 : vector<16x768xf32>
    %cst_58 = arith.constant 0.000000e+00 : f32
    %261 = vector.broadcast %cst_58 : f32 to vector<16x768xf32>
    %262 = arith.maximumf %260, %261 : vector<16x768xf32>
    %263 = arith.truncf %4 : vector<16x16xf32> to vector<16x16xbf16>
    %264 = arith.truncf %262 : vector<16x768xf32> to vector<16x768xbf16>
    %cst_59 = arith.constant dense<0.000000e+00> : vector<16x768xf32>
    %265 = tpu.matmul %263, %264, %cst_59 {dimension_numbers = #tpu.dot_dimension_numbers<[1], [0], [0], [1], [0, 0, 1, 1], [], []>} : vector<16x16xbf16>, vector<16x768xbf16>, vector<16x768xf32> -> vector<16x768xf32>
    %266 = vector.broadcast %5 : vector<16x1xf32> to vector<16x768xf32>
    %267 = arith.addf %265, %266 : vector<16x768xf32>
    %cst_60 = arith.constant 0.000000e+00 : f32
    %268 = vector.broadcast %cst_60 : f32 to vector<16x768xf32>
    %269 = arith.maximumf %267, %268 : vector<16x768xf32>
    %270 = arith.truncf %0 : vector<32x32xf32> to vector<32x32xbf16>
    %271 = arith.truncf %24 : vector<32x134xf32> to vector<32x134xbf16>
    %cst_61 = arith.constant dense<0.000000e+00> : vector<32x134xf32>
    %272 = tpu.matmul %270, %271, %cst_61 {dimension_numbers = #tpu.dot_dimension_numbers<[1], [0], [0], [1], [0, 0, 1, 1], [], []>} : vector<32x32xbf16>, vector<32x134xbf16>, vector<32x134xf32> -> vector<32x134xf32>
    %273 = vector.broadcast %1 : vector<32x1xf32> to vector<32x134xf32>
    %274 = arith.addf %272, %273 : vector<32x134xf32>
    %cst_62 = arith.constant 0.000000e+00 : f32
    %275 = vector.broadcast %cst_62 : f32 to vector<32x134xf32>
    %276 = arith.maximumf %274, %275 : vector<32x134xf32>
    %277 = arith.truncf %21 : vector<16x16xf32> to vector<16x16xbf16>
    %278 = arith.truncf %269 : vector<16x768xf32> to vector<16x768xbf16>
    %cst_63 = arith.constant dense<0.000000e+00> : vector<16x768xf32>
    %279 = tpu.matmul %277, %278, %cst_63 {dimension_numbers = #tpu.dot_dimension_numbers<[1], [0], [0], [1], [0, 0, 1, 1], [], []>} : vector<16x16xbf16>, vector<16x768xbf16>, vector<16x768xf32> -> vector<16x768xf32>
    %280 = vector.broadcast %7 : vector<16x1xf32> to vector<16x768xf32>
    %281 = arith.addf %279, %280 : vector<16x768xf32>
    %282 = tpu.iota {dimensions = array<i32: 1>} : vector<1x128xi32>
    %c8_i32 = arith.constant 8 : i32
    %283 = vector.broadcast %c8_i32 : i32 to vector<1x128xi32>
    %284 = arith.cmpi slt, %282, %283 : vector<1x128xi32>
    %285 = arith.extui %284 : vector<1x128xi1> to vector<1x128xi32>
    %286 = arith.sitofp %285 : vector<1x128xi32> to vector<1x128xf32>
    %287 = tpu.concatenate %286, %286, %286, %286, %286, %286 in 1 : vector<1x128xf32>, vector<1x128xf32>, vector<1x128xf32>, vector<1x128xf32>, vector<1x128xf32>, vector<1x128xf32> -> vector<1x768xf32>
    %288 = vector.shape_cast %9 : vector<16x1xf32> to vector<16x1xf32>
    %289 = vector.broadcast %288 : vector<16x1xf32> to vector<16x768xf32>
    %290 = vector.shape_cast %11 : vector<32x1xf32> to vector<32x1xf32>
    %291 = vector.broadcast %290 : vector<32x1xf32> to vector<32x134xf32>
    %292 = vector.shape_cast %13 : vector<32x1xf32> to vector<32x1xf32>
    %293 = vector.broadcast %292 : vector<32x1xf32> to vector<32x134xf32>
    %294 = vector.shape_cast %15 : vector<16x1xf32> to vector<16x1xf32>
    %295 = vector.broadcast %294 : vector<16x1xf32> to vector<16x768xf32>
    %296 = vector.shape_cast %17 : vector<1x1xf32> to vector<1x1xf32>
    %297 = vector.broadcast %296 : vector<1x1xf32> to vector<1x768xf32>
    %298 = vector.extract_strided_slice %276 {offsets = [0, 0], sizes = [32, 6], strides = [1, 1]} : vector<32x134xf32> to vector<32x6xf32>
    %299 = arith.truncf %18 : vector<16x32xf32> to vector<16x32xbf16>
    %300 = arith.truncf %298 : vector<32x6xf32> to vector<32x6xbf16>
    %cst_64 = arith.constant dense<0.000000e+00> : vector<16x6xf32>
    %301 = tpu.matmul %299, %300, %cst_64 {dimension_numbers = #tpu.dot_dimension_numbers<[1], [0], [0], [1], [0, 0, 1, 1], [], []>} : vector<16x32xbf16>, vector<32x6xbf16>, vector<16x6xf32> -> vector<16x6xf32>
    %302 = vector.extract_strided_slice %276 {offsets = [0, 6], sizes = [32, 128], strides = [1, 1]} : vector<32x134xf32> to vector<32x128xf32>
    %303 = arith.truncf %19 : vector<16x32xf32> to vector<16x32xbf16>
    %304 = arith.truncf %302 : vector<32x128xf32> to vector<32x128xbf16>
    %cst_65 = arith.constant dense<0.000000e+00> : vector<16x128xf32>
    %305 = tpu.matmul %303, %304, %cst_65 {dimension_numbers = #tpu.dot_dimension_numbers<[1], [0], [0], [1], [0, 0, 1, 1], [], []>} : vector<16x32xbf16>, vector<32x128xbf16>, vector<16x128xf32> -> vector<16x128xf32>
    %306 = vector.extract_strided_slice %301 {offsets = [0, 0], sizes = [16, 1], strides = [1, 1]} : vector<16x6xf32> to vector<16x1xf32>
    %307 = vector.broadcast %306 : vector<16x1xf32> to vector<16x128xf32>
    %308 = arith.addf %307, %305 : vector<16x128xf32>
    %309 = vector.extract_strided_slice %301 {offsets = [0, 1], sizes = [16, 1], strides = [1, 1]} : vector<16x6xf32> to vector<16x1xf32>
    %310 = vector.broadcast %309 : vector<16x1xf32> to vector<16x128xf32>
    %311 = arith.addf %310, %305 : vector<16x128xf32>
    %312 = vector.extract_strided_slice %301 {offsets = [0, 2], sizes = [16, 1], strides = [1, 1]} : vector<16x6xf32> to vector<16x1xf32>
    %313 = vector.broadcast %312 : vector<16x1xf32> to vector<16x128xf32>
    %314 = arith.addf %313, %305 : vector<16x128xf32>
    %315 = vector.extract_strided_slice %301 {offsets = [0, 3], sizes = [16, 1], strides = [1, 1]} : vector<16x6xf32> to vector<16x1xf32>
    %316 = vector.broadcast %315 : vector<16x1xf32> to vector<16x128xf32>
    %317 = arith.addf %316, %305 : vector<16x128xf32>
    %318 = vector.extract_strided_slice %301 {offsets = [0, 4], sizes = [16, 1], strides = [1, 1]} : vector<16x6xf32> to vector<16x1xf32>
    %319 = vector.broadcast %318 : vector<16x1xf32> to vector<16x128xf32>
    %320 = arith.addf %319, %305 : vector<16x128xf32>
    %321 = vector.extract_strided_slice %301 {offsets = [0, 5], sizes = [16, 1], strides = [1, 1]} : vector<16x6xf32> to vector<16x1xf32>
    %322 = vector.broadcast %321 : vector<16x1xf32> to vector<16x128xf32>
    %323 = arith.addf %322, %305 : vector<16x128xf32>
    %324 = tpu.concatenate %308, %311, %314, %317, %320, %323 in 1 : vector<16x128xf32>, vector<16x128xf32>, vector<16x128xf32>, vector<16x128xf32>, vector<16x128xf32>, vector<16x128xf32> -> vector<16x768xf32>
    %325 = arith.truncf %20 : vector<16x16xf32> to vector<16x16xbf16>
    %326 = arith.truncf %269 : vector<16x768xf32> to vector<16x768xbf16>
    %cst_66 = arith.constant dense<0.000000e+00> : vector<16x768xf32>
    %327 = tpu.matmul %325, %326, %cst_66 {dimension_numbers = #tpu.dot_dimension_numbers<[1], [0], [0], [1], [0, 0, 1, 1], [], []>} : vector<16x16xbf16>, vector<16x768xbf16>, vector<16x768xf32> -> vector<16x768xf32>
    %328 = arith.addf %327, %281 : vector<16x768xf32>
    %329 = arith.addf %328, %324 : vector<16x768xf32>
    %cst_67 = arith.constant 0.000000e+00 : f32
    %330 = vector.broadcast %cst_67 : f32 to vector<16x768xf32>
    %331 = arith.maximumf %329, %330 : vector<16x768xf32>
    %332 = arith.truncf %8 : vector<16x16xf32> to vector<16x16xbf16>
    %333 = arith.truncf %331 : vector<16x768xf32> to vector<16x768xbf16>
    %cst_68 = arith.constant dense<0.000000e+00> : vector<16x768xf32>
    %334 = tpu.matmul %332, %333, %cst_68 {dimension_numbers = #tpu.dot_dimension_numbers<[1], [0], [0], [1], [0, 0, 1, 1], [], []>} : vector<16x16xbf16>, vector<16x768xbf16>, vector<16x768xf32> -> vector<16x768xf32>
    %335 = arith.addf %334, %289 : vector<16x768xf32>
    %cst_69 = arith.constant 0.000000e+00 : f32
    %336 = vector.broadcast %cst_69 : f32 to vector<16x768xf32>
    %337 = arith.maximumf %335, %336 : vector<16x768xf32>
    %338 = vector.broadcast %287 : vector<1x768xf32> to vector<16x768xf32>
    %339 = arith.mulf %337, %338 : vector<16x768xf32>
    %340 = vector.extract_strided_slice %339 {offsets = [0, 0], sizes = [16, 128], strides = [1, 1]} : vector<16x768xf32> to vector<16x128xf32>
    %cst_70 = arith.constant dense<0.000000e+00> : vector<16xf32>
    %341 = vector.multi_reduction <add>, %340, %cst_70 [1] : vector<16x128xf32> to vector<16xf32>
    %342 = vector.shape_cast %341 : vector<16xf32> to vector<16x1xf32>
    %343 = vector.extract_strided_slice %339 {offsets = [0, 128], sizes = [16, 128], strides = [1, 1]} : vector<16x768xf32> to vector<16x128xf32>
    %cst_71 = arith.constant dense<0.000000e+00> : vector<16xf32>
    %344 = vector.multi_reduction <add>, %343, %cst_71 [1] : vector<16x128xf32> to vector<16xf32>
    %345 = vector.shape_cast %344 : vector<16xf32> to vector<16x1xf32>
    %346 = vector.extract_strided_slice %339 {offsets = [0, 256], sizes = [16, 128], strides = [1, 1]} : vector<16x768xf32> to vector<16x128xf32>
    %cst_72 = arith.constant dense<0.000000e+00> : vector<16xf32>
    %347 = vector.multi_reduction <add>, %346, %cst_72 [1] : vector<16x128xf32> to vector<16xf32>
    %348 = vector.shape_cast %347 : vector<16xf32> to vector<16x1xf32>
    %349 = vector.extract_strided_slice %339 {offsets = [0, 384], sizes = [16, 128], strides = [1, 1]} : vector<16x768xf32> to vector<16x128xf32>
    %cst_73 = arith.constant dense<0.000000e+00> : vector<16xf32>
    %350 = vector.multi_reduction <add>, %349, %cst_73 [1] : vector<16x128xf32> to vector<16xf32>
    %351 = vector.shape_cast %350 : vector<16xf32> to vector<16x1xf32>
    %352 = vector.extract_strided_slice %339 {offsets = [0, 512], sizes = [16, 128], strides = [1, 1]} : vector<16x768xf32> to vector<16x128xf32>
    %cst_74 = arith.constant dense<0.000000e+00> : vector<16xf32>
    %353 = vector.multi_reduction <add>, %352, %cst_74 [1] : vector<16x128xf32> to vector<16xf32>
    %354 = vector.shape_cast %353 : vector<16xf32> to vector<16x1xf32>
    %355 = vector.extract_strided_slice %339 {offsets = [0, 640], sizes = [16, 128], strides = [1, 1]} : vector<16x768xf32> to vector<16x128xf32>
    %cst_75 = arith.constant dense<0.000000e+00> : vector<16xf32>
    %356 = vector.multi_reduction <add>, %355, %cst_75 [1] : vector<16x128xf32> to vector<16xf32>
    %357 = vector.shape_cast %356 : vector<16xf32> to vector<16x1xf32>
    %358 = tpu.concatenate %342, %345, %348, %351, %354, %357 in 1 : vector<16x1xf32>, vector<16x1xf32>, vector<16x1xf32>, vector<16x1xf32>, vector<16x1xf32>, vector<16x1xf32> -> vector<16x6xf32>
    %359 = vector.extract_strided_slice %339 {offsets = [0, 0], sizes = [16, 128], strides = [1, 1]} : vector<16x768xf32> to vector<16x128xf32>
    %360 = vector.extract_strided_slice %339 {offsets = [0, 128], sizes = [16, 128], strides = [1, 1]} : vector<16x768xf32> to vector<16x128xf32>
    %361 = arith.addf %359, %360 : vector<16x128xf32>
    %362 = vector.extract_strided_slice %339 {offsets = [0, 256], sizes = [16, 128], strides = [1, 1]} : vector<16x768xf32> to vector<16x128xf32>
    %363 = arith.addf %361, %362 : vector<16x128xf32>
    %364 = vector.extract_strided_slice %339 {offsets = [0, 384], sizes = [16, 128], strides = [1, 1]} : vector<16x768xf32> to vector<16x128xf32>
    %365 = arith.addf %363, %364 : vector<16x128xf32>
    %366 = vector.extract_strided_slice %339 {offsets = [0, 512], sizes = [16, 128], strides = [1, 1]} : vector<16x768xf32> to vector<16x128xf32>
    %367 = arith.addf %365, %366 : vector<16x128xf32>
    %368 = vector.extract_strided_slice %339 {offsets = [0, 640], sizes = [16, 128], strides = [1, 1]} : vector<16x768xf32> to vector<16x128xf32>
    %369 = arith.addf %367, %368 : vector<16x128xf32>
    %370 = tpu.concatenate %358, %369 in 1 : vector<16x6xf32>, vector<16x128xf32> -> vector<16x134xf32>
    %371 = arith.truncf %22 : vector<32x32xf32> to vector<32x32xbf16>
    %372 = arith.truncf %276 : vector<32x134xf32> to vector<32x134xbf16>
    %cst_76 = arith.constant dense<0.000000e+00> : vector<32x134xf32>
    %373 = tpu.matmul %371, %372, %cst_76 {dimension_numbers = #tpu.dot_dimension_numbers<[1], [0], [0], [1], [0, 0, 1, 1], [], []>} : vector<32x32xbf16>, vector<32x134xbf16>, vector<32x134xf32> -> vector<32x134xf32>
    %374 = arith.truncf %23 : vector<32x16xf32> to vector<32x16xbf16>
    %375 = arith.truncf %370 : vector<16x134xf32> to vector<16x134xbf16>
    %cst_77 = arith.constant dense<0.000000e+00> : vector<32x134xf32>
    %376 = tpu.matmul %374, %375, %cst_77 {dimension_numbers = #tpu.dot_dimension_numbers<[1], [0], [0], [1], [0, 0, 1, 1], [], []>} : vector<32x16xbf16>, vector<16x134xbf16>, vector<32x134xf32> -> vector<32x134xf32>
    %377 = arith.addf %373, %376 : vector<32x134xf32>
    %378 = arith.addf %377, %291 : vector<32x134xf32>
    %cst_78 = arith.constant 0.000000e+00 : f32
    %379 = vector.broadcast %cst_78 : f32 to vector<32x134xf32>
    %380 = arith.maximumf %378, %379 : vector<32x134xf32>
    %381 = arith.truncf %12 : vector<32x32xf32> to vector<32x32xbf16>
    %382 = arith.truncf %380 : vector<32x134xf32> to vector<32x134xbf16>
    %cst_79 = arith.constant dense<0.000000e+00> : vector<32x134xf32>
    %383 = tpu.matmul %381, %382, %cst_79 {dimension_numbers = #tpu.dot_dimension_numbers<[1], [0], [0], [1], [0, 0, 1, 1], [], []>} : vector<32x32xbf16>, vector<32x134xbf16>, vector<32x134xf32> -> vector<32x134xf32>
    %384 = arith.addf %383, %293 : vector<32x134xf32>
    %cst_80 = arith.constant 0.000000e+00 : f32
    %385 = vector.broadcast %cst_80 : f32 to vector<32x134xf32>
    %386 = arith.maximumf %384, %385 : vector<32x134xf32>
    %387 = arith.truncf %14 : vector<16x16xf32> to vector<16x16xbf16>
    %388 = arith.truncf %337 : vector<16x768xf32> to vector<16x768xbf16>
    %cst_81 = arith.constant dense<0.000000e+00> : vector<16x768xf32>
    %389 = tpu.matmul %387, %388, %cst_81 {dimension_numbers = #tpu.dot_dimension_numbers<[1], [0], [0], [1], [0, 0, 1, 1], [], []>} : vector<16x16xbf16>, vector<16x768xbf16>, vector<16x768xf32> -> vector<16x768xf32>
    %390 = arith.addf %389, %295 : vector<16x768xf32>
    %cst_82 = arith.constant 0.000000e+00 : f32
    %391 = vector.broadcast %cst_82 : f32 to vector<16x768xf32>
    %392 = arith.maximumf %390, %391 : vector<16x768xf32>
    %393 = arith.truncf %16 : vector<1x16xf32> to vector<1x16xbf16>
    %394 = arith.truncf %392 : vector<16x768xf32> to vector<16x768xbf16>
    %cst_83 = arith.constant dense<0.000000e+00> : vector<1x768xf32>
    %395 = tpu.matmul %393, %394, %cst_83 {dimension_numbers = #tpu.dot_dimension_numbers<[1], [0], [0], [1], [0, 0, 1, 1], [], []>} : vector<1x16xbf16>, vector<16x768xbf16>, vector<1x768xf32> -> vector<1x768xf32>
    %396 = arith.addf %395, %297 : vector<1x768xf32>
    %c0_84 = arith.constant 0 : index
    %c0_85 = arith.constant 0 : index
    %397 = vector.load %arg3[%c0_84, %c0_85] : memref<3x768xf32, #tpu.memory_space<vmem>>, vector<1x768xf32>
    tpu.vector_store %arg3[%c0_84, %c0_85], %396 {strides = array<i32>} : memref<3x768xf32, #tpu.memory_space<vmem>>, vector<1x768xf32>,
    %398 = vector.extract_strided_slice %386 {offsets = [0, 0], sizes = [32, 6], strides = [1, 1]} : vector<32x134xf32> to vector<32x6xf32>
    %399 = arith.truncf %18 : vector<16x32xf32> to vector<16x32xbf16>
    %400 = arith.truncf %398 : vector<32x6xf32> to vector<32x6xbf16>
    %cst_86 = arith.constant dense<0.000000e+00> : vector<16x6xf32>
    %401 = tpu.matmul %399, %400, %cst_86 {dimension_numbers = #tpu.dot_dimension_numbers<[1], [0], [0], [1], [0, 0, 1, 1], [], []>} : vector<16x32xbf16>, vector<32x6xbf16>, vector<16x6xf32> -> vector<16x6xf32>
    %402 = vector.extract_strided_slice %386 {offsets = [0, 6], sizes = [32, 128], strides = [1, 1]} : vector<32x134xf32> to vector<32x128xf32>
    %403 = arith.truncf %19 : vector<16x32xf32> to vector<16x32xbf16>
    %404 = arith.truncf %402 : vector<32x128xf32> to vector<32x128xbf16>
    %cst_87 = arith.constant dense<0.000000e+00> : vector<16x128xf32>
    %405 = tpu.matmul %403, %404, %cst_87 {dimension_numbers = #tpu.dot_dimension_numbers<[1], [0], [0], [1], [0, 0, 1, 1], [], []>} : vector<16x32xbf16>, vector<32x128xbf16>, vector<16x128xf32> -> vector<16x128xf32>
    %406 = vector.extract_strided_slice %401 {offsets = [0, 0], sizes = [16, 1], strides = [1, 1]} : vector<16x6xf32> to vector<16x1xf32>
    %407 = vector.broadcast %406 : vector<16x1xf32> to vector<16x128xf32>
    %408 = arith.addf %407, %405 : vector<16x128xf32>
    %409 = vector.extract_strided_slice %401 {offsets = [0, 1], sizes = [16, 1], strides = [1, 1]} : vector<16x6xf32> to vector<16x1xf32>
    %410 = vector.broadcast %409 : vector<16x1xf32> to vector<16x128xf32>
    %411 = arith.addf %410, %405 : vector<16x128xf32>
    %412 = vector.extract_strided_slice %401 {offsets = [0, 2], sizes = [16, 1], strides = [1, 1]} : vector<16x6xf32> to vector<16x1xf32>
    %413 = vector.broadcast %412 : vector<16x1xf32> to vector<16x128xf32>
    %414 = arith.addf %413, %405 : vector<16x128xf32>
    %415 = vector.extract_strided_slice %401 {offsets = [0, 3], sizes = [16, 1], strides = [1, 1]} : vector<16x6xf32> to vector<16x1xf32>
    %416 = vector.broadcast %415 : vector<16x1xf32> to vector<16x128xf32>
    %417 = arith.addf %416, %405 : vector<16x128xf32>
    %418 = vector.extract_strided_slice %401 {offsets = [0, 4], sizes = [16, 1], strides = [1, 1]} : vector<16x6xf32> to vector<16x1xf32>
    %419 = vector.broadcast %418 : vector<16x1xf32> to vector<16x128xf32>
    %420 = arith.addf %419, %405 : vector<16x128xf32>
    %421 = vector.extract_strided_slice %401 {offsets = [0, 5], sizes = [16, 1], strides = [1, 1]} : vector<16x6xf32> to vector<16x1xf32>
    %422 = vector.broadcast %421 : vector<16x1xf32> to vector<16x128xf32>
    %423 = arith.addf %422, %405 : vector<16x128xf32>
    %424 = tpu.concatenate %408, %411, %414, %417, %420, %423 in 1 : vector<16x128xf32>, vector<16x128xf32>, vector<16x128xf32>, vector<16x128xf32>, vector<16x128xf32>, vector<16x128xf32> -> vector<16x768xf32>
    %425 = arith.truncf %20 : vector<16x16xf32> to vector<16x16xbf16>
    %426 = arith.truncf %337 : vector<16x768xf32> to vector<16x768xbf16>
    %cst_88 = arith.constant dense<0.000000e+00> : vector<16x768xf32>
    %427 = tpu.matmul %425, %426, %cst_88 {dimension_numbers = #tpu.dot_dimension_numbers<[1], [0], [0], [1], [0, 0, 1, 1], [], []>} : vector<16x16xbf16>, vector<16x768xbf16>, vector<16x768xf32> -> vector<16x768xf32>
    %428 = arith.addf %427, %281 : vector<16x768xf32>
    %429 = arith.addf %428, %424 : vector<16x768xf32>
    %cst_89 = arith.constant 0.000000e+00 : f32
    %430 = vector.broadcast %cst_89 : f32 to vector<16x768xf32>
    %431 = arith.maximumf %429, %430 : vector<16x768xf32>
    %432 = arith.truncf %8 : vector<16x16xf32> to vector<16x16xbf16>
    %433 = arith.truncf %431 : vector<16x768xf32> to vector<16x768xbf16>
    %cst_90 = arith.constant dense<0.000000e+00> : vector<16x768xf32>
    %434 = tpu.matmul %432, %433, %cst_90 {dimension_numbers = #tpu.dot_dimension_numbers<[1], [0], [0], [1], [0, 0, 1, 1], [], []>} : vector<16x16xbf16>, vector<16x768xbf16>, vector<16x768xf32> -> vector<16x768xf32>
    %435 = arith.addf %434, %289 : vector<16x768xf32>
    %cst_91 = arith.constant 0.000000e+00 : f32
    %436 = vector.broadcast %cst_91 : f32 to vector<16x768xf32>
    %437 = arith.maximumf %435, %436 : vector<16x768xf32>
    %438 = vector.broadcast %287 : vector<1x768xf32> to vector<16x768xf32>
    %439 = arith.mulf %437, %438 : vector<16x768xf32>
    %440 = vector.extract_strided_slice %439 {offsets = [0, 0], sizes = [16, 128], strides = [1, 1]} : vector<16x768xf32> to vector<16x128xf32>
    %cst_92 = arith.constant dense<0.000000e+00> : vector<16xf32>
    %441 = vector.multi_reduction <add>, %440, %cst_92 [1] : vector<16x128xf32> to vector<16xf32>
    %442 = vector.shape_cast %441 : vector<16xf32> to vector<16x1xf32>
    %443 = vector.extract_strided_slice %439 {offsets = [0, 128], sizes = [16, 128], strides = [1, 1]} : vector<16x768xf32> to vector<16x128xf32>
    %cst_93 = arith.constant dense<0.000000e+00> : vector<16xf32>
    %444 = vector.multi_reduction <add>, %443, %cst_93 [1] : vector<16x128xf32> to vector<16xf32>
    %445 = vector.shape_cast %444 : vector<16xf32> to vector<16x1xf32>
    %446 = vector.extract_strided_slice %439 {offsets = [0, 256], sizes = [16, 128], strides = [1, 1]} : vector<16x768xf32> to vector<16x128xf32>
    %cst_94 = arith.constant dense<0.000000e+00> : vector<16xf32>
    %447 = vector.multi_reduction <add>, %446, %cst_94 [1] : vector<16x128xf32> to vector<16xf32>
    %448 = vector.shape_cast %447 : vector<16xf32> to vector<16x1xf32>
    %449 = vector.extract_strided_slice %439 {offsets = [0, 384], sizes = [16, 128], strides = [1, 1]} : vector<16x768xf32> to vector<16x128xf32>
    %cst_95 = arith.constant dense<0.000000e+00> : vector<16xf32>
    %450 = vector.multi_reduction <add>, %449, %cst_95 [1] : vector<16x128xf32> to vector<16xf32>
    %451 = vector.shape_cast %450 : vector<16xf32> to vector<16x1xf32>
    %452 = vector.extract_strided_slice %439 {offsets = [0, 512], sizes = [16, 128], strides = [1, 1]} : vector<16x768xf32> to vector<16x128xf32>
    %cst_96 = arith.constant dense<0.000000e+00> : vector<16xf32>
    %453 = vector.multi_reduction <add>, %452, %cst_96 [1] : vector<16x128xf32> to vector<16xf32>
    %454 = vector.shape_cast %453 : vector<16xf32> to vector<16x1xf32>
    %455 = vector.extract_strided_slice %439 {offsets = [0, 640], sizes = [16, 128], strides = [1, 1]} : vector<16x768xf32> to vector<16x128xf32>
    %cst_97 = arith.constant dense<0.000000e+00> : vector<16xf32>
    %456 = vector.multi_reduction <add>, %455, %cst_97 [1] : vector<16x128xf32> to vector<16xf32>
    %457 = vector.shape_cast %456 : vector<16xf32> to vector<16x1xf32>
    %458 = tpu.concatenate %442, %445, %448, %451, %454, %457 in 1 : vector<16x1xf32>, vector<16x1xf32>, vector<16x1xf32>, vector<16x1xf32>, vector<16x1xf32>, vector<16x1xf32> -> vector<16x6xf32>
    %459 = vector.extract_strided_slice %439 {offsets = [0, 0], sizes = [16, 128], strides = [1, 1]} : vector<16x768xf32> to vector<16x128xf32>
    %460 = vector.extract_strided_slice %439 {offsets = [0, 128], sizes = [16, 128], strides = [1, 1]} : vector<16x768xf32> to vector<16x128xf32>
    %461 = arith.addf %459, %460 : vector<16x128xf32>
    %462 = vector.extract_strided_slice %439 {offsets = [0, 256], sizes = [16, 128], strides = [1, 1]} : vector<16x768xf32> to vector<16x128xf32>
    %463 = arith.addf %461, %462 : vector<16x128xf32>
    %464 = vector.extract_strided_slice %439 {offsets = [0, 384], sizes = [16, 128], strides = [1, 1]} : vector<16x768xf32> to vector<16x128xf32>
    %465 = arith.addf %463, %464 : vector<16x128xf32>
    %466 = vector.extract_strided_slice %439 {offsets = [0, 512], sizes = [16, 128], strides = [1, 1]} : vector<16x768xf32> to vector<16x128xf32>
    %467 = arith.addf %465, %466 : vector<16x128xf32>
    %468 = vector.extract_strided_slice %439 {offsets = [0, 640], sizes = [16, 128], strides = [1, 1]} : vector<16x768xf32> to vector<16x128xf32>
    %469 = arith.addf %467, %468 : vector<16x128xf32>
    %470 = tpu.concatenate %458, %469 in 1 : vector<16x6xf32>, vector<16x128xf32> -> vector<16x134xf32>
    %471 = arith.truncf %22 : vector<32x32xf32> to vector<32x32xbf16>
    %472 = arith.truncf %386 : vector<32x134xf32> to vector<32x134xbf16>
    %cst_98 = arith.constant dense<0.000000e+00> : vector<32x134xf32>
    %473 = tpu.matmul %471, %472, %cst_98 {dimension_numbers = #tpu.dot_dimension_numbers<[1], [0], [0], [1], [0, 0, 1, 1], [], []>} : vector<32x32xbf16>, vector<32x134xbf16>, vector<32x134xf32> -> vector<32x134xf32>
    %474 = arith.truncf %23 : vector<32x16xf32> to vector<32x16xbf16>
    %475 = arith.truncf %470 : vector<16x134xf32> to vector<16x134xbf16>
    %cst_99 = arith.constant dense<0.000000e+00> : vector<32x134xf32>
    %476 = tpu.matmul %474, %475, %cst_99 {dimension_numbers = #tpu.dot_dimension_numbers<[1], [0], [0], [1], [0, 0, 1, 1], [], []>} : vector<32x16xbf16>, vector<16x134xbf16>, vector<32x134xf32> -> vector<32x134xf32>
    %477 = arith.addf %473, %476 : vector<32x134xf32>
    %478 = arith.addf %477, %291 : vector<32x134xf32>
    %cst_100 = arith.constant 0.000000e+00 : f32
    %479 = vector.broadcast %cst_100 : f32 to vector<32x134xf32>
    %480 = arith.maximumf %478, %479 : vector<32x134xf32>
    %481 = arith.truncf %12 : vector<32x32xf32> to vector<32x32xbf16>
    %482 = arith.truncf %480 : vector<32x134xf32> to vector<32x134xbf16>
    %cst_101 = arith.constant dense<0.000000e+00> : vector<32x134xf32>
    %483 = tpu.matmul %481, %482, %cst_101 {dimension_numbers = #tpu.dot_dimension_numbers<[1], [0], [0], [1], [0, 0, 1, 1], [], []>} : vector<32x32xbf16>, vector<32x134xbf16>, vector<32x134xf32> -> vector<32x134xf32>
    %484 = arith.addf %483, %293 : vector<32x134xf32>
    %cst_102 = arith.constant 0.000000e+00 : f32
    %485 = vector.broadcast %cst_102 : f32 to vector<32x134xf32>
    %486 = arith.maximumf %484, %485 : vector<32x134xf32>
    %487 = arith.truncf %14 : vector<16x16xf32> to vector<16x16xbf16>
    %488 = arith.truncf %437 : vector<16x768xf32> to vector<16x768xbf16>
    %cst_103 = arith.constant dense<0.000000e+00> : vector<16x768xf32>
    %489 = tpu.matmul %487, %488, %cst_103 {dimension_numbers = #tpu.dot_dimension_numbers<[1], [0], [0], [1], [0, 0, 1, 1], [], []>} : vector<16x16xbf16>, vector<16x768xbf16>, vector<16x768xf32> -> vector<16x768xf32>
    %490 = arith.addf %489, %295 : vector<16x768xf32>
    %cst_104 = arith.constant 0.000000e+00 : f32
    %491 = vector.broadcast %cst_104 : f32 to vector<16x768xf32>
    %492 = arith.maximumf %490, %491 : vector<16x768xf32>
    %493 = arith.truncf %16 : vector<1x16xf32> to vector<1x16xbf16>
    %494 = arith.truncf %492 : vector<16x768xf32> to vector<16x768xbf16>
    %cst_105 = arith.constant dense<0.000000e+00> : vector<1x768xf32>
    %495 = tpu.matmul %493, %494, %cst_105 {dimension_numbers = #tpu.dot_dimension_numbers<[1], [0], [0], [1], [0, 0, 1, 1], [], []>} : vector<1x16xbf16>, vector<16x768xbf16>, vector<1x768xf32> -> vector<1x768xf32>
    %496 = arith.addf %495, %297 : vector<1x768xf32>
    %c1 = arith.constant 1 : index
    %c0_106 = arith.constant 0 : index
    %497 = vector.load %arg3[%c1, %c0_106] : memref<3x768xf32, #tpu.memory_space<vmem>>, vector<1x768xf32>
    tpu.vector_store %arg3[%c1, %c0_106], %496 {strides = array<i32>} : memref<3x768xf32, #tpu.memory_space<vmem>>, vector<1x768xf32>,
    %498 = vector.extract_strided_slice %486 {offsets = [0, 0], sizes = [32, 6], strides = [1, 1]} : vector<32x134xf32> to vector<32x6xf32>
    %499 = arith.truncf %18 : vector<16x32xf32> to vector<16x32xbf16>
    %500 = arith.truncf %498 : vector<32x6xf32> to vector<32x6xbf16>
    %cst_107 = arith.constant dense<0.000000e+00> : vector<16x6xf32>
    %501 = tpu.matmul %499, %500, %cst_107 {dimension_numbers = #tpu.dot_dimension_numbers<[1], [0], [0], [1], [0, 0, 1, 1], [], []>} : vector<16x32xbf16>, vector<32x6xbf16>, vector<16x6xf32> -> vector<16x6xf32>
    %502 = vector.extract_strided_slice %486 {offsets = [0, 6], sizes = [32, 128], strides = [1, 1]} : vector<32x134xf32> to vector<32x128xf32>
    %503 = arith.truncf %19 : vector<16x32xf32> to vector<16x32xbf16>
    %504 = arith.truncf %502 : vector<32x128xf32> to vector<32x128xbf16>
    %cst_108 = arith.constant dense<0.000000e+00> : vector<16x128xf32>
    %505 = tpu.matmul %503, %504, %cst_108 {dimension_numbers = #tpu.dot_dimension_numbers<[1], [0], [0], [1], [0, 0, 1, 1], [], []>} : vector<16x32xbf16>, vector<32x128xbf16>, vector<16x128xf32> -> vector<16x128xf32>
    %506 = vector.extract_strided_slice %501 {offsets = [0, 0], sizes = [16, 1], strides = [1, 1]} : vector<16x6xf32> to vector<16x1xf32>
    %507 = vector.broadcast %506 : vector<16x1xf32> to vector<16x128xf32>
    %508 = arith.addf %507, %505 : vector<16x128xf32>
    %509 = vector.extract_strided_slice %501 {offsets = [0, 1], sizes = [16, 1], strides = [1, 1]} : vector<16x6xf32> to vector<16x1xf32>
    %510 = vector.broadcast %509 : vector<16x1xf32> to vector<16x128xf32>
    %511 = arith.addf %510, %505 : vector<16x128xf32>
    %512 = vector.extract_strided_slice %501 {offsets = [0, 2], sizes = [16, 1], strides = [1, 1]} : vector<16x6xf32> to vector<16x1xf32>
    %513 = vector.broadcast %512 : vector<16x1xf32> to vector<16x128xf32>
    %514 = arith.addf %513, %505 : vector<16x128xf32>
    %515 = vector.extract_strided_slice %501 {offsets = [0, 3], sizes = [16, 1], strides = [1, 1]} : vector<16x6xf32> to vector<16x1xf32>
    %516 = vector.broadcast %515 : vector<16x1xf32> to vector<16x128xf32>
    %517 = arith.addf %516, %505 : vector<16x128xf32>
    %518 = vector.extract_strided_slice %501 {offsets = [0, 4], sizes = [16, 1], strides = [1, 1]} : vector<16x6xf32> to vector<16x1xf32>
    %519 = vector.broadcast %518 : vector<16x1xf32> to vector<16x128xf32>
    %520 = arith.addf %519, %505 : vector<16x128xf32>
    %521 = vector.extract_strided_slice %501 {offsets = [0, 5], sizes = [16, 1], strides = [1, 1]} : vector<16x6xf32> to vector<16x1xf32>
    %522 = vector.broadcast %521 : vector<16x1xf32> to vector<16x128xf32>
    %523 = arith.addf %522, %505 : vector<16x128xf32>
    %524 = tpu.concatenate %508, %511, %514, %517, %520, %523 in 1 : vector<16x128xf32>, vector<16x128xf32>, vector<16x128xf32>, vector<16x128xf32>, vector<16x128xf32>, vector<16x128xf32> -> vector<16x768xf32>
    %525 = arith.truncf %20 : vector<16x16xf32> to vector<16x16xbf16>
    %526 = arith.truncf %437 : vector<16x768xf32> to vector<16x768xbf16>
    %cst_109 = arith.constant dense<0.000000e+00> : vector<16x768xf32>
    %527 = tpu.matmul %525, %526, %cst_109 {dimension_numbers = #tpu.dot_dimension_numbers<[1], [0], [0], [1], [0, 0, 1, 1], [], []>} : vector<16x16xbf16>, vector<16x768xbf16>, vector<16x768xf32> -> vector<16x768xf32>
    %528 = arith.addf %527, %281 : vector<16x768xf32>
    %529 = arith.addf %528, %524 : vector<16x768xf32>
    %cst_110 = arith.constant 0.000000e+00 : f32
    %530 = vector.broadcast %cst_110 : f32 to vector<16x768xf32>
    %531 = arith.maximumf %529, %530 : vector<16x768xf32>
    %532 = arith.truncf %8 : vector<16x16xf32> to vector<16x16xbf16>
    %533 = arith.truncf %531 : vector<16x768xf32> to vector<16x768xbf16>
    %cst_111 = arith.constant dense<0.000000e+00> : vector<16x768xf32>
    %534 = tpu.matmul %532, %533, %cst_111 {dimension_numbers = #tpu.dot_dimension_numbers<[1], [0], [0], [1], [0, 0, 1, 1], [], []>} : vector<16x16xbf16>, vector<16x768xbf16>, vector<16x768xf32> -> vector<16x768xf32>
    %535 = arith.addf %534, %289 : vector<16x768xf32>
    %cst_112 = arith.constant 0.000000e+00 : f32
    %536 = vector.broadcast %cst_112 : f32 to vector<16x768xf32>
    %537 = arith.maximumf %535, %536 : vector<16x768xf32>
    %538 = arith.truncf %14 : vector<16x16xf32> to vector<16x16xbf16>
    %539 = arith.truncf %537 : vector<16x768xf32> to vector<16x768xbf16>
    %cst_113 = arith.constant dense<0.000000e+00> : vector<16x768xf32>
    %540 = tpu.matmul %538, %539, %cst_113 {dimension_numbers = #tpu.dot_dimension_numbers<[1], [0], [0], [1], [0, 0, 1, 1], [], []>} : vector<16x16xbf16>, vector<16x768xbf16>, vector<16x768xf32> -> vector<16x768xf32>
    %541 = arith.addf %540, %295 : vector<16x768xf32>
    %cst_114 = arith.constant 0.000000e+00 : f32
    %542 = vector.broadcast %cst_114 : f32 to vector<16x768xf32>
    %543 = arith.maximumf %541, %542 : vector<16x768xf32>
    %544 = arith.truncf %16 : vector<1x16xf32> to vector<1x16xbf16>
    %545 = arith.truncf %543 : vector<16x768xf32> to vector<16x768xbf16>
    %cst_115 = arith.constant dense<0.000000e+00> : vector<1x768xf32>
    %546 = tpu.matmul %544, %545, %cst_115 {dimension_numbers = #tpu.dot_dimension_numbers<[1], [0], [0], [1], [0, 0, 1, 1], [], []>} : vector<1x16xbf16>, vector<16x768xbf16>, vector<1x768xf32> -> vector<1x768xf32>
    %547 = arith.addf %546, %297 : vector<1x768xf32>
    %c2 = arith.constant 2 : index
    %c0_116 = arith.constant 0 : index
    %548 = vector.load %arg3[%c2, %c0_116] : memref<3x768xf32, #tpu.memory_space<vmem>>, vector<1x768xf32>
    tpu.vector_store %arg3[%c2, %c0_116], %547 {strides = array<i32>} : memref<3x768xf32, #tpu.memory_space<vmem>>, vector<1x768xf32>,
    return
  }
}

</mosaic_0001>

<llo_original>
// kernel: assignment_similarity_net.1
$region0: #{assignment_similarity_net.1}
  #allocation0 [shape = 'u32[]', space=smem, size = 0x4, offset = 0x4, fixed_abs, tag = 'smem constant byte address 0x4 - core index']
  #allocation1 [shape = 'u32[144,128]{1,0:T(1,128)}', space=vmem, size = 0x12000, scoped, tag = 'internal scratch']
  %s0 = inlined_call_operand.vmem [shape: f32[40,134], index: 0, kind: input, shape index: {}]
  %s1 = inlined_call_operand.vmem [shape: f32[6,32], index: 1, kind: input, shape index: {}]
  %s2 = inlined_call_operand.vmem [shape: f32[184,128], index: 2, kind: input, shape index: {}]
  %s3 = inlined_call_operand.vmem [shape: f32[3,768], index: 3, kind: output, shape index: {}]
  %s4 = sld [smem:[#allocation0]]
  $region22: #{assignment_similarity_net.1} parent=0
    _
  %s6 = ssub.s32 1, %s4
  %s7 = scalar_select 0, %s6, %s4
  // Predicated region
  $region2: #{assignment_similarity_net.1} parent=0 // pred_check
    _
  $region3: #{assignment_similarity_net.1} parent=0 // pred_check_branch
    %9 = sbr.rel (0) target = $region5
  $region4: #{assignment_similarity_net.1} parent=0 // pred_region
    _
  $region5: #{assignment_similarity_net.1} parent=0 // pred_fallthru
    _
  // Predicated region
  $region6: #{assignment_similarity_net.1} parent=0 // pred_check
    _
  $region7: #{assignment_similarity_net.1} parent=0 // pred_check_branch
    %11 = sbr.rel (0) target = $region9
  $region8: #{assignment_similarity_net.1} parent=0 // pred_region
    _
  $region9: #{assignment_similarity_net.1} parent=0 // pred_fallthru
    _
  // Predicated region
  $region10: #{assignment_similarity_net.1} parent=0 // pred_check
    _
  $region11: #{assignment_similarity_net.1} parent=0 // pred_check_branch
    %13 = sbr.rel (0) target = $region13
  $region12: #{assignment_similarity_net.1} parent=0 // pred_region
    _
  $region13: #{assignment_similarity_net.1} parent=0 // pred_fallthru
    _
  %v15 = vld [vmem:[%s2] sm:$0xff]
  %v16 = vld [vmem:[%s2 + $0x8] sm:$0xff]
  %v17 = vld [vmem:[%s2 + $0x10] sm:$0xff]
  %v18 = vld [vmem:[%s2 + $0x18] sm:$0xff]
  %v19 = vld [vmem:[%s2 + $0x20] sm:$0xff]
  %v20 = vld [vmem:[%s2 + $0x28] sm:$0xff]
  %v21 = vld [vmem:[%s2 + $0x30] sm:$0xff]
  %v22 = vld [vmem:[%s2 + $0x38] sm:$0xff]
  %v23 = vld [vmem:[%s2 + $0x40] sm:$0xff]
  %v24 = vld [vmem:[%s2 + $0x48] sm:$0xff]
  %v25 = vld [vmem:[%s2 + $0x50] sm:$0xff]
  %v26 = vld [vmem:[%s2 + $0x58] sm:$0xff]
  %v27 = vld [vmem:[%s2 + $0x60] sm:$0xff]
  %v28 = vld [vmem:[%s2 + $0x68] sm:$0xff]
  %v29 = vld [vmem:[%s2 + $0x70] sm:$0xff]
  %v30 = vld [vmem:[%s2 + $0x78] sm:$0xff]
  %v31 = vld [vmem:[%s2 + $0x80] sm:$0xff]
  %v32 = vld [vmem:[%s2 + $0x88] sm:$0xff]
  %v33 = vld [vmem:[%s2 + $0x90] sm:$0xff]
  %v34 = vld [vmem:[%s2 + $0x98] sm:$0xff]
  %v35 = vld [vmem:[%s2 + $0xa0] sm:$0xff]
  %v36 = vld [vmem:[%s2 + $0xa8] sm:$0xff]
  %v37 = vld [vmem:[%s2 + $0xb0] sm:$0x1]
  %v38 = vld [vmem:[%s0] sm:$0xff]
  %v39 = vld [vmem:[%s0 + $0x8] sm:$0xff]
  %v40 = vld [vmem:[%s0 + $0x10] sm:$0xff]
  %v41 = vld [vmem:[%s0 + $0x18] sm:$0xff]
  %v42 = vld [vmem:[%s0 + $0x20] sm:$0xff]
  %v43 = vld [vmem:[%s0 + $0x28] sm:$0xff]
  %v44 = vld [vmem:[%s0 + $0x30] sm:$0xff]
  %v45 = vld [vmem:[%s0 + $0x38] sm:$0xff]
  %v46 = vld [vmem:[%s0 + $0x40] sm:$0x1f]
  %v47 = vld [vmem:[%s0 + $0x48] sm:$0x1f]
  %v49 = vrot.slane %v46, 2
  %v51 = vadd.f32 %v46, %v49
  %v52 = vmul.f32 %v51, 0.5
  %v53 = vrot.slane %v46, 6
  %v55 = vsub.f32 %v46, %v53
  %v57 = vrot.slane %v47, 2
  %v59 = vadd.f32 %v47, %v57
  %v60 = vmul.f32 %v59, 0.5
  %v61 = vrot.slane %v47, 6
  %v63 = vsub.f32 %v47, %v61
  %v64 = vld [vmem:[%s1] sm:$0x3f]
  %v65 = vmul.f32 %v64, %v64
  %vm66 = vcmask 259072
  %v67 = vsel %vm66, %v65, 0.0
  %68 = vadd.xlane.f32.xlu0 %v67
  %v69 = vpop.xlane.xlu0 %68
  %v70 = vadd.f32 %v69, 1e-12
  %v71 = vrsqrt.pop %v70
  %v72 = vmul.f32 %v64, %v71
  %v73 = vmul.f32 %v38, %v38
  %v74 = vmul.f32 %v39, %v39
  %v75 = vmul.f32 %v40, %v40
  %v76 = vmul.f32 %v41, %v41
  %v77 = vmul.f32 %v42, %v42
  %v78 = vmul.f32 %v43, %v43
  %v79 = vmul.f32 %v44, %v44
  %v80 = vmul.f32 %v45, %v45
  %vm81 = vcmask 1047600
  %v82 = vsel %vm81, %v73, 0.0
  %v83 = vsel %vm81, %v75, 0.0
  %v84 = vadd.f32 %v82, %v83
  %v85 = vsel %vm81, %v77, 0.0
  %v86 = vadd.f32 %v84, %v85
  %v87 = vsel %vm81, %v79, 0.0
  %v88 = vadd.f32 %v86, %v87
  %v89 = vrot.slane %v88, 4
  %v90 = vadd.f32 %v88, %v89
  %v91 = vrot.slane %v90, 2
  %v92 = vadd.f32 %v90, %v91
  %v93 = vrot.slane %v92, 1
  %v94 = vadd.f32 %v92, %v93
  %vm95 = vcmask 48128
  %v96 = vsel %vm95, %v74, 0.0
  %v97 = vsel %vm95, %v76, 0.0
  %v98 = vadd.f32 %v96, %v97
  %v99 = vsel %vm95, %v78, 0.0
  %v100 = vadd.f32 %v98, %v99
  %v101 = vsel %vm95, %v80, 0.0
  %v102 = vadd.f32 %v100, %v101
  %v103 = vrot.slane %v102, 4
  %v104 = vadd.f32 %v102, %v103
  %v105 = vrot.slane %v104, 2
  %v106 = vadd.f32 %v104, %v105
  %v107 = vrot.slane %v106, 1
  %v108 = vadd.f32 %v106, %v107
  %v109 = vadd.f32 %v94, 1e-12
  %v110 = vadd.f32 %v108, 1e-12
  %v111 = vrsqrt.pop %v109
  %v112 = vrsqrt.pop %v110
  %v113 = vmul.f32 %v38, %v111
  %v114 = vmul.f32 %v39, %v112
  %v115 = vmul.f32 %v40, %v111
  %v116 = vmul.f32 %v41, %v112
  %v117 = vmul.f32 %v42, %v111
  %v118 = vmul.f32 %v43, %v112
  %v119 = vmul.f32 %v44, %v111
  %v120 = vmul.f32 %v45, %v112
  %129 = vrot.lane.b32.xlu0 %v113, 122
  %v130 = vpop.permute.xlu0 %129
  %131 = vrot.lane.b32.xlu0 %v114, 122
  %v132 = vpop.permute.xlu0 %131
  %133 = vrot.lane.b32.xlu0 %v115, 122
  %v134 = vpop.permute.xlu0 %133
  %135 = vrot.lane.b32.xlu0 %v116, 122
  %v136 = vpop.permute.xlu0 %135
  %137 = vrot.lane.b32.xlu0 %v117, 122
  %v138 = vpop.permute.xlu0 %137
  %139 = vrot.lane.b32.xlu0 %v118, 122
  %v140 = vpop.permute.xlu0 %139
  %141 = vrot.lane.b32.xlu0 %v119, 122
  %v142 = vpop.permute.xlu0 %141
  %143 = vrot.lane.b32.xlu0 %v120, 122
  %v144 = vpop.permute.xlu0 %143
  %vm145 = vcmask 998400
  %v146 = vsel %vm145, %v130, %v132
  %v147 = vsel %vm145, %v134, %v136
  %v148 = vsel %vm145, %v138, %v140
  %v149 = vsel %vm145, %v142, %v144
  %vm154 = vcmask 261120
  %v156 = vsel %vm154, %v72, 0
  %158 = vmatprep.subr.mxu0 0.0
  %159 = vmatpush1.msra.mxu0 0.0
  %160 = vmatprep.subr.mxu0 0.0
  %161 = vmatpush1.msra.mxu0 0.0
  %162 = vmatprep.subr.mxu0 0.0
  %163 = vmatpush1.msra.mxu0 0.0
  %164 = vmatprep.subr.mxu0 0.0
  %165 = vmatpush1.msra.mxu0 0.0
  %166 = vmatprep.subr.mxu0 0.0
  %167 = vmatpush1.msra.mxu0 0.0
  %168 = vmatprep.subr.mxu0 0.0
  %169 = vmatpush1.msra.mxu0 0.0
  %170 = vmatprep.subr.mxu0 0.0
  %171 = vmatpush1.msra.mxu0 0.0
  %172 = vmatprep.subr.mxu0 0.0
  %173 = vmatpush1.msra.mxu0 0.0
  %174 = vmatprep.subr.mxu0 0.0
  %175 = vmatpush1.msra.mxu0 0.0
  %176 = vmatprep.subr.mxu0 0.0
  %177 = vmatpush1.msra.mxu0 0.0
  %178 = vmatprep.subr.mxu0 0.0
  %179 = vmatpush1.msra.mxu0 0.0
  %180 = vmatprep.subr.mxu0 0.0
  %181 = vmatpush1.msra.mxu0 0.0
  %182 = vmatprep.subr.mxu0 0.0
  %183 = vmatpush1.msra.mxu0 %v149
  %184 = vmatprep.subr.mxu0 0.0
  %185 = vmatpush1.msra.mxu0 %v148
  %186 = vmatprep.subr.mxu0 0.0
  %187 = vmatpush1.msra.mxu0 %v147
  %188 = vmatprep.subr.mxu0 0.0
  %189 = vmatpush1.msra.mxu0 %v146
  %190 = vmatprep.subr.mxu0 0.0
  %191 = vmatpush2.msra.mxu0 0.0
  %192 = vmatprep.subr.mxu0 0.0
  %193 = vmatpush2.msra.mxu0 0.0
  %194 = vmatprep.subr.mxu0 0.0
  %195 = vmatpush2.msra.mxu0 0.0
  %196 = vmatprep.subr.mxu0 0.0
  %197 = vmatpush2.msra.mxu0 0.0
  %198 = vmatprep.subr.mxu0 0.0
  %199 = vmatpush2.msra.mxu0 0.0
  %200 = vmatprep.subr.mxu0 0.0
  %201 = vmatpush2.msra.mxu0 0.0
  %202 = vmatprep.subr.mxu0 0.0
  %203 = vmatpush2.msra.mxu0 0.0
  %204 = vmatprep.subr.mxu0 0.0
  %205 = vmatpush2.msra.mxu0 0.0
  %206 = vmatprep.subr.mxu0 0.0
  %207 = vmatpush2.msra.mxu0 0.0
  %208 = vmatprep.subr.mxu0 0.0
  %209 = vmatpush2.msra.mxu0 0.0
  %210 = vmatprep.subr.mxu0 0.0
  %211 = vmatpush2.msra.mxu0 0.0
  %212 = vmatprep.subr.mxu0 0.0
  %213 = vmatpush2.msra.mxu0 0.0
  %214 = vmatprep.subr.mxu0 0.0
  %215 = vmatpush2.msra.mxu0 0.0
  %216 = vmatprep.subr.mxu0 0.0
  %217 = vmatpush2.msra.mxu0 0.0
  %218 = vmatprep.subr.mxu0 0.0
  %219 = vmatpush2.msra.mxu0 0.0
  %220 = vmatprep.subr.mxu0 0.0
  %221 = vmatpush2.msra.mxu0 0.0
  %222 = vmatprep.mubr.f32.mxu0 0.0
  %223 = vmatmul.mubr.f32.gmra.mxu0 %v156
  %v224 = vpop.f32.mrf.mxu0
  %v225 = vadd.f32 0.0, %v224
  %v226 = vpop.f32.mrf.mxu0
  %227 = vdwg.mxu0
  %229 = vset.pattern.permute.xlu0 0
  %230 = vperm.xlu0 %229, %v55
  %v231 = vpop.permute.xlu0 %230
  %v233 = vadd.f32 %v231, %v55
  %v234 = vadd.f32 %v231, %v63
  %236 = vset.pattern.permute.xlu0 0
  %237 = vperm.xlu0 %236, %v52
  %v238 = vpop.permute.xlu0 %237
  %v240 = vsub.f32 %v52, %v238
  %v241 = vsub.f32 %v60, %v238
  %v242 = vmul.f32 %v240, 2.0
  %v243 = vmul.f32 %v241, 2.0
  %v246 = vrot.slane %v233, 3
  %v247 = vrot.slane %v234, 3
  %v250 = vrcp.pop %v246
  %v251 = vmul.f32 %v242, %v250
  %v252 = vrcp.pop %v247
  %v253 = vmul.f32 %v243, %v252
  %v254 = vrot.slane %v233, 2
  %v255 = vrot.slane %v234, 2
  %v258 = vrcp.pop %v254
  %v259 = vmul.f32 %v242, %v258
  %v260 = vrcp.pop %v255
  %v261 = vmul.f32 %v243, %v260
  %v262 = vrcp.pop %v55
  %v263 = vmul.f32 %v231, %v262
  %v264 = vrcp.pop %v63
  %v265 = vmul.f32 %v231, %v264
  %v266 = vlog2.pop %v263
  %v267 = vmul.f32 %v266, 0.6931472
  %v268 = vlog2.pop %v265
  %v269 = vmul.f32 %v268, 0.6931472
  %270 = vset.pattern.permute.xlu0 0
  %271 = vperm.xlu0 %270, %v46
  %v272 = vpop.permute.xlu0 %271
  %v274 = vsub.f32 %v46, %v272
  %v275 = vsub.f32 %v47, %v272
  %v276 = vsub.f32 1.0, %v225
  %v278 = vrot.slane %v276, 3
  %279 = vrot.lane.b32.xlu0 %v278, 6
  %v280 = vpop.permute.xlu0 %279
  %vm282 = vcmask 1040384
  %v283 = vsel %vm282, %v251, %v259
  %v284 = vsel %vm282, %v253, %v261
  %vm285 = vcmask 1041408
  %v286 = vsel %vm285, %v283, %v267
  %v287 = vsel %vm285, %v284, %v269
  %vm288 = vcmask 1042432
  %v289 = vsel %vm288, %v286, %v267
  %v290 = vsel %vm288, %v287, %v269
  %vm291 = vcmask 1043456
  %v292 = vsel %vm291, %v289, %v274
  %v293 = vsel %vm291, %v290, %v275
  %vm294 = vcmask 1044480
  %v295 = vsel %vm294, %v292, %v280
  %v296 = vsel %vm294, %v293, %v280
  %297 = vset.pattern.permute.xlu0 1
  %298 = vperm.xlu0 %297, %v55
  %v299 = vpop.permute.xlu0 %298
  %v301 = vadd.f32 %v299, %v55
  %v302 = vadd.f32 %v299, %v63
  %303 = vset.pattern.permute.xlu0 1
  %304 = vperm.xlu0 %303, %v52
  %v305 = vpop.permute.xlu0 %304
  %v307 = vsub.f32 %v52, %v305
  %v308 = vsub.f32 %v60, %v305
  %v309 = vmul.f32 %v307, 2.0
  %v310 = vmul.f32 %v308, 2.0
  %v313 = vrot.slane %v301, 3
  %v314 = vrot.slane %v302, 3
  %v317 = vrcp.pop %v313
  %v318 = vmul.f32 %v309, %v317
  %v319 = vrcp.pop %v314
  %v320 = vmul.f32 %v310, %v319
  %v321 = vrot.slane %v301, 2
  %v322 = vrot.slane %v302, 2
  %v325 = vrcp.pop %v321
  %v326 = vmul.f32 %v309, %v325
  %v327 = vrcp.pop %v322
  %v328 = vmul.f32 %v310, %v327
  %v329 = vmul.f32 %v299, %v262
  %v330 = vmul.f32 %v299, %v264
  %v331 = vlog2.pop %v329
  %v332 = vmul.f32 %v331, 0.6931472
  %v333 = vlog2.pop %v330
  %v334 = vmul.f32 %v333, 0.6931472
  %335 = vset.pattern.permute.xlu0 1
  %336 = vperm.xlu0 %335, %v46
  %v337 = vpop.permute.xlu0 %336
  %v339 = vsub.f32 %v46, %v337
  %v340 = vsub.f32 %v47, %v337
  %v341 = vrot.slane %v276, 4
  %342 = vrot.lane.b32.xlu0 %v341, 6
  %v343 = vpop.permute.xlu0 %342
  %v345 = vsel %vm282, %v318, %v326
  %v346 = vsel %vm282, %v320, %v328
  %v347 = vsel %vm285, %v345, %v332
  %v348 = vsel %vm285, %v346, %v334
  %v349 = vsel %vm288, %v347, %v332
  %v350 = vsel %vm288, %v348, %v334
  %v351 = vsel %vm291, %v349, %v339
  %v352 = vsel %vm291, %v350, %v340
  %v353 = vsel %vm294, %v351, %v343
  %v354 = vsel %vm294, %v352, %v343
  %355 = vset.pattern.permute.xlu0 2
  %356 = vperm.xlu0 %355, %v55
  %v357 = vpop.permute.xlu0 %356
  %v359 = vadd.f32 %v357, %v55
  %v360 = vadd.f32 %v357, %v63
  %361 = vset.pattern.permute.xlu0 2
  %362 = vperm.xlu0 %361, %v52
  %v363 = vpop.permute.xlu0 %362
  %v365 = vsub.f32 %v52, %v363
  %v366 = vsub.f32 %v60, %v363
  %v367 = vmul.f32 %v365, 2.0
  %v368 = vmul.f32 %v366, 2.0
  %v371 = vrot.slane %v359, 3
  %v372 = vrot.slane %v360, 3
  %v375 = vrcp.pop %v371
  %v376 = vmul.f32 %v367, %v375
  %v377 = vrcp.pop %v372
  %v378 = vmul.f32 %v368, %v377
  %v379 = vrot.slane %v359, 2
  %v380 = vrot.slane %v360, 2
  %v383 = vrcp.pop %v379
  %v384 = vmul.f32 %v367, %v383
  %v385 = vrcp.pop %v380
  %v386 = vmul.f32 %v368, %v385
  %v387 = vmul.f32 %v357, %v262
  %v388 = vmul.f32 %v357, %v264
  %v389 = vlog2.pop %v387
  %v390 = vmul.f32 %v389, 0.6931472
  %v391 = vlog2.pop %v388
  %v392 = vmul.f32 %v391, 0.6931472
  %393 = vset.pattern.permute.xlu0 2
  %394 = vperm.xlu0 %393, %v46
  %v395 = vpop.permute.xlu0 %394
  %v397 = vsub.f32 %v46, %v395
  %v398 = vsub.f32 %v47, %v395
  %v399 = vrot.slane %v276, 5
  %400 = vrot.lane.b32.xlu0 %v399, 6
  %v401 = vpop.permute.xlu0 %400
  %v403 = vsel %vm282, %v376, %v384
  %v404 = vsel %vm282, %v378, %v386
  %v405 = vsel %vm285, %v403, %v390
  %v406 = vsel %vm285, %v404, %v392
  %v407 = vsel %vm288, %v405, %v390
  %v408 = vsel %vm288, %v406, %v392
  %v409 = vsel %vm291, %v407, %v397
  %v410 = vsel %vm291, %v408, %v398
  %v411 = vsel %vm294, %v409, %v401
  %v412 = vsel %vm294, %v410, %v401
  %413 = vset.pattern.permute.xlu0 3
  %414 = vperm.xlu0 %413, %v55
  %v415 = vpop.permute.xlu0 %414
  %v417 = vadd.f32 %v415, %v55
  %v418 = vadd.f32 %v415, %v63
  %419 = vset.pattern.permute.xlu0 3
  %420 = vperm.xlu0 %419, %v52
  %v421 = vpop.permute.xlu0 %420
  %v423 = vsub.f32 %v52, %v421
  %v424 = vsub.f32 %v60, %v421
  %v425 = vmul.f32 %v423, 2.0
  %v426 = vmul.f32 %v424, 2.0
  %v429 = vrot.slane %v417, 3
  %v430 = vrot.slane %v418, 3
  %v433 = vrcp.pop %v429
  %v434 = vmul.f32 %v425, %v433
  %v435 = vrcp.pop %v430
  %v436 = vmul.f32 %v426, %v435
  %v437 = vrot.slane %v417, 2
  %v438 = vrot.slane %v418, 2
  %v441 = vrcp.pop %v437
  %v442 = vmul.f32 %v425, %v441
  %v443 = vrcp.pop %v438
  %v444 = vmul.f32 %v426, %v443
  %v445 = vmul.f32 %v415, %v262
  %v446 = vmul.f32 %v415, %v264
  %v447 = vlog2.pop %v445
  %v448 = vmul.f32 %v447, 0.6931472
  %v449 = vlog2.pop %v446
  %v450 = vmul.f32 %v449, 0.6931472
  %451 = vset.pattern.permute.xlu0 3
  %452 = vperm.xlu0 %451, %v46
  %v453 = vpop.permute.xlu0 %452
  %v455 = vsub.f32 %v46, %v453
  %v456 = vsub.f32 %v47, %v453
  %v457 = vrot.slane %v276, 6
  %458 = vrot.lane.b32.xlu0 %v457, 6
  %v459 = vpop.permute.xlu0 %458
  %v461 = vsel %vm282, %v434, %v442
  %v462 = vsel %vm282, %v436, %v444
  %v463 = vsel %vm285, %v461, %v448
  %v464 = vsel %vm285, %v462, %v450
  %v465 = vsel %vm288, %v463, %v448
  %v466 = vsel %vm288, %v464, %v450
  %v467 = vsel %vm291, %v465, %v455
  %v468 = vsel %vm291, %v466, %v456
  %v469 = vsel %vm294, %v467, %v459
  %v470 = vsel %vm294, %v468, %v459
  %471 = vset.pattern.permute.xlu0 4
  %472 = vperm.xlu0 %471, %v55
  %v473 = vpop.permute.xlu0 %472
  %v475 = vadd.f32 %v473, %v55
  %v476 = vadd.f32 %v473, %v63
  %477 = vset.pattern.permute.xlu0 4
  %478 = vperm.xlu0 %477, %v52
  %v479 = vpop.permute.xlu0 %478
  %v481 = vsub.f32 %v52, %v479
  %v482 = vsub.f32 %v60, %v479
  %v483 = vmul.f32 %v481, 2.0
  %v484 = vmul.f32 %v482, 2.0
  %v487 = vrot.slane %v475, 3
  %v488 = vrot.slane %v476, 3
  %v491 = vrcp.pop %v487
  %v492 = vmul.f32 %v483, %v491
  %v493 = vrcp.pop %v488
  %v494 = vmul.f32 %v484, %v493
  %v495 = vrot.slane %v475, 2
  %v496 = vrot.slane %v476, 2
  %v499 = vrcp.pop %v495
  %v500 = vmul.f32 %v483, %v499
  %v501 = vrcp.pop %v496
  %v502 = vmul.f32 %v484, %v501
  %v503 = vmul.f32 %v473, %v262
  %v504 = vmul.f32 %v473, %v264
  %v505 = vlog2.pop %v503
  %v506 = vmul.f32 %v505, 0.6931472
  %v507 = vlog2.pop %v504
  %v508 = vmul.f32 %v507, 0.6931472
  %509 = vset.pattern.permute.xlu0 4
  %510 = vperm.xlu0 %509, %v46
  %v511 = vpop.permute.xlu0 %510
  %v513 = vsub.f32 %v46, %v511
  %v514 = vsub.f32 %v47, %v511
  %v515 = vrot.slane %v276, 7
  %516 = vrot.lane.b32.xlu0 %v515, 6
  %v517 = vpop.permute.xlu0 %516
  %v519 = vsel %vm282, %v492, %v500
  %v520 = vsel %vm282, %v494, %v502
  %v521 = vsel %vm285, %v519, %v506
  %v522 = vsel %vm285, %v520, %v508
  %v523 = vsel %vm288, %v521, %v506
  %v524 = vsel %vm288, %v522, %v508
  %v525 = vsel %vm291, %v523, %v513
  %v526 = vsel %vm291, %v524, %v514
  %v527 = vsel %vm294, %v525, %v517
  %v528 = vsel %vm294, %v526, %v517
  %529 = vset.pattern.permute.xlu0 5
  %530 = vperm.xlu0 %529, %v55
  %v531 = vpop.permute.xlu0 %530
  %v533 = vadd.f32 %v531, %v55
  %v534 = vadd.f32 %v531, %v63
  %535 = vset.pattern.permute.xlu0 5
  %536 = vperm.xlu0 %535, %v52
  %v537 = vpop.permute.xlu0 %536
  %v539 = vsub.f32 %v52, %v537
  %v540 = vsub.f32 %v60, %v537
  %v541 = vmul.f32 %v539, 2.0
  %v542 = vmul.f32 %v540, 2.0
  %v545 = vrot.slane %v533, 3
  %v546 = vrot.slane %v534, 3
  %v549 = vrcp.pop %v545
  %v550 = vmul.f32 %v541, %v549
  %v551 = vrcp.pop %v546
  %v552 = vmul.f32 %v542, %v551
  %v553 = vrot.slane %v533, 2
  %v554 = vrot.slane %v534, 2
  %v557 = vrcp.pop %v553
  %v558 = vmul.f32 %v541, %v557
  %v559 = vrcp.pop %v554
  %v560 = vmul.f32 %v542, %v559
  %v561 = vmul.f32 %v531, %v262
  %v562 = vmul.f32 %v531, %v264
  %v563 = vlog2.pop %v561
  %v564 = vmul.f32 %v563, 0.6931472
  %v565 = vlog2.pop %v562
  %v566 = vmul.f32 %v565, 0.6931472
  %567 = vset.pattern.permute.xlu0 5
  %568 = vperm.xlu0 %567, %v46
  %v569 = vpop.permute.xlu0 %568
  %v571 = vsub.f32 %v46, %v569
  %v572 = vsub.f32 %v47, %v569
  %573 = vrot.lane.b32.xlu0 %v276, 6
  %v574 = vpop.permute.xlu0 %573
  %v576 = vsel %vm282, %v550, %v558
  %v577 = vsel %vm282, %v552, %v560
  %v578 = vsel %vm285, %v576, %v564
  %v579 = vsel %vm285, %v577, %v566
  %v580 = vsel %vm288, %v578, %v564
  %v581 = vsel %vm288, %v579, %v566
  %v582 = vsel %vm291, %v580, %v571
  %v583 = vsel %vm291, %v581, %v572
  %v584 = vsel %vm294, %v582, %v574
  %v585 = vsel %vm294, %v583, %v574
  %588 = vrot.lane.b32.xlu0 %v295, 122
  %v589 = vpop.permute.xlu0 %588
  %590 = vrot.lane.b32.xlu0 %v296, 122
  %v591 = vpop.permute.xlu0 %590
  %v592 = vsel %vm145, %v589, %v591
  %596 = vrot.lane.b32.xlu0 %v353, 122
  %v597 = vpop.permute.xlu0 %596
  %598 = vrot.lane.b32.xlu0 %v354, 122
  %v599 = vpop.permute.xlu0 %598
  %v600 = vsel %vm145, %v597, %v599
  %604 = vrot.lane.b32.xlu0 %v411, 122
  %v605 = vpop.permute.xlu0 %604
  %606 = vrot.lane.b32.xlu0 %v412, 122
  %v607 = vpop.permute.xlu0 %606
  %v608 = vsel %vm145, %v605, %v607
  %612 = vrot.lane.b32.xlu0 %v469, 122
  %v613 = vpop.permute.xlu0 %612
  %614 = vrot.lane.b32.xlu0 %v470, 122
  %v615 = vpop.permute.xlu0 %614
  %v616 = vsel %vm145, %v613, %v615
  %620 = vrot.lane.b32.xlu0 %v527, 122
  %v621 = vpop.permute.xlu0 %620
  %622 = vrot.lane.b32.xlu0 %v528, 122
  %v623 = vpop.permute.xlu0 %622
  %v624 = vsel %vm145, %v621, %v623
  %628 = vrot.lane.b32.xlu0 %v584, 122
  %v629 = vpop.permute.xlu0 %628
  %630 = vrot.lane.b32.xlu0 %v585, 122
  %v631 = vpop.permute.xlu0 %630
  %v632 = vsel %vm145, %v629, %v631
  %v634 = vpack.c.bf16 %v20, %v19
  %v635 = vpack.c.bf16 %v592, %v592
  %v636 = vpack.c.bf16 %v600, %v600
  %v637 = vpack.c.bf16 %v608, %v608
  %v638 = vpack.c.bf16 %v616, %v616
  %v639 = vpack.c.bf16 %v624, %v624
  %v640 = vpack.c.bf16 %v632, %v632
  %642 = vset.pattern.permute.xlu0 6
  %643 = vperm.xlu0 %642, %v19
  %v644 = vpop.permute.xlu0 %643
  %647 = vset.pattern.permute.xlu0 6
  %648 = vperm.xlu0 %647, %v20
  %v649 = vpop.permute.xlu0 %648
  %v652 = vsel %vm95, %v634, 0
  %v655 = vsel %vm288, %v635, 0
  %v658 = vsel %vm288, %v636, 0
  %v661 = vsel %vm288, %v637, 0
  %v664 = vsel %vm288, %v638, 0
  %v667 = vsel %vm288, %v639, 0
  %v670 = vsel %vm288, %v640, 0
  %672 = vmatprep.subr.bf16.mxu0 0
  %673 = vmatpush1.bf16.msra.mxu0 0
  %674 = vmatprep.subr.bf16.mxu0 0
  %675 = vmatpush1.bf16.msra.mxu0 0
  %676 = vmatprep.subr.bf16.mxu0 0
  %677 = vmatpush1.bf16.msra.mxu0 0
  %678 = vmatprep.subr.bf16.mxu0 0
  %679 = vmatpush1.bf16.msra.mxu0 0
  %680 = vmatprep.subr.bf16.mxu0 0
  %681 = vmatpush1.bf16.msra.mxu0 0
  %682 = vmatprep.subr.bf16.mxu0 0
  %683 = vmatpush1.bf16.msra.mxu0 0
  %684 = vmatprep.subr.bf16.mxu0 0
  %685 = vmatpush1.bf16.msra.mxu0 0
  %686 = vmatprep.subr.bf16.mxu0 %v658
  %687 = vmatpush1.bf16.msra.mxu0 %v655
  %688 = vmatprep.subr.bf16.mxu0 0
  %689 = vmatpush2.bf16.msra.mxu0 0
  %690 = vmatprep.subr.bf16.mxu0 0
  %691 = vmatpush2.bf16.msra.mxu0 0
  %692 = vmatprep.subr.bf16.mxu0 0
  %693 = vmatpush2.bf16.msra.mxu0 0
  %694 = vmatprep.subr.bf16.mxu0 0
  %695 = vmatpush2.bf16.msra.mxu0 0
  %696 = vmatprep.subr.bf16.mxu0 0
  %697 = vmatpush2.bf16.msra.mxu0 0
  %698 = vmatprep.subr.bf16.mxu0 0
  %699 = vmatpush2.bf16.msra.mxu0 0
  %700 = vmatprep.subr.bf16.mxu0 0
  %701 = vmatpush2.bf16.msra.mxu0 0
  %702 = vmatprep.subr.bf16.mxu0 0
  %703 = vmatpush2.bf16.msra.mxu0 0
  %704 = vmatprep.mubr.bf16.mxu0 0
  %705 = vmatmul.mubr.bf16.gmra.mxu0 %v652
  %v706 = vpop.f32.mrf.mxu0
  %v707 = vadd.f32 %v644, %v706
  %v708 = vpop.f32.mrf.mxu0
  %v709 = vadd.f32 %v644, %v708
  %v710 = vpop.f32.mrf.mxu0
  %v711 = vadd.f32 %v649, %v710
  %v712 = vpop.f32.mrf.mxu0
  %v713 = vadd.f32 %v649, %v712
  %714 = vdwg.mxu0
  %715 = vmatprep.subr.bf16.mxu0 0
  %716 = vmatpush1.bf16.msra.mxu0 0
  %717 = vmatprep.subr.bf16.mxu0 0
  %718 = vmatpush1.bf16.msra.mxu0 0
  %719 = vmatprep.subr.bf16.mxu0 0
  %720 = vmatpush1.bf16.msra.mxu0 0
  %721 = vmatprep.subr.bf16.mxu0 0
  %722 = vmatpush1.bf16.msra.mxu0 0
  %723 = vmatprep.subr.bf16.mxu0 0
  %724 = vmatpush1.bf16.msra.mxu0 0
  %725 = vmatprep.subr.bf16.mxu0 0
  %726 = vmatpush1.bf16.msra.mxu0 0
  %727 = vmatprep.subr.bf16.mxu0 0
  %728 = vmatpush1.bf16.msra.mxu0 0
  %729 = vmatprep.subr.bf16.mxu0 %v664
  %730 = vmatpush1.bf16.msra.mxu0 %v661
  %731 = vmatprep.subr.bf16.mxu0 0
  %732 = vmatpush2.bf16.msra.mxu0 0
  %733 = vmatprep.subr.bf16.mxu0 0
  %734 = vmatpush2.bf16.msra.mxu0 0
  %735 = vmatprep.subr.bf16.mxu0 0
  %736 = vmatpush2.bf16.msra.mxu0 0
  %737 = vmatprep.subr.bf16.mxu0 0
  %738 = vmatpush2.bf16.msra.mxu0 0
  %739 = vmatprep.subr.bf16.mxu0 0
  %740 = vmatpush2.bf16.msra.mxu0 0
  %741 = vmatprep.subr.bf16.mxu0 0
  %742 = vmatpush2.bf16.msra.mxu0 0
  %743 = vmatprep.subr.bf16.mxu0 0
  %744 = vmatpush2.bf16.msra.mxu0 0
  %745 = vmatprep.subr.bf16.mxu0 0
  %746 = vmatpush2.bf16.msra.mxu0 0
  %747 = vmatprep.mubr.bf16.mxu0 0
  %748 = vmatmul.mubr.bf16.gmra.mxu0 %v652
  %v749 = vpop.f32.mrf.mxu0
  %v750 = vadd.f32 %v644, %v749
  %v751 = vpop.f32.mrf.mxu0
  %v752 = vadd.f32 %v644, %v751
  %v753 = vpop.f32.mrf.mxu0
  %v754 = vadd.f32 %v649, %v753
  %v755 = vpop.f32.mrf.mxu0
  %v756 = vadd.f32 %v649, %v755
  %757 = vdwg.mxu0
  %758 = vmatprep.subr.bf16.mxu0 0
  %759 = vmatpush1.bf16.msra.mxu0 0
  %760 = vmatprep.subr.bf16.mxu0 0
  %761 = vmatpush1.bf16.msra.mxu0 0
  %762 = vmatprep.subr.bf16.mxu0 0
  %763 = vmatpush1.bf16.msra.mxu0 0
  %764 = vmatprep.subr.bf16.mxu0 0
  %765 = vmatpush1.bf16.msra.mxu0 0
  %766 = vmatprep.subr.bf16.mxu0 0
  %767 = vmatpush1.bf16.msra.mxu0 0
  %768 = vmatprep.subr.bf16.mxu0 0
  %769 = vmatpush1.bf16.msra.mxu0 0
  %770 = vmatprep.subr.bf16.mxu0 0
  %771 = vmatpush1.bf16.msra.mxu0 0
  %772 = vmatprep.subr.bf16.mxu0 %v670
  %773 = vmatpush1.bf16.msra.mxu0 %v667
  %774 = vmatprep.subr.bf16.mxu0 0
  %775 = vmatpush2.bf16.msra.mxu0 0
  %776 = vmatprep.subr.bf16.mxu0 0
  %777 = vmatpush2.bf16.msra.mxu0 0
  %778 = vmatprep.subr.bf16.mxu0 0
  %779 = vmatpush2.bf16.msra.mxu0 0
  %780 = vmatprep.subr.bf16.mxu0 0
  %781 = vmatpush2.bf16.msra.mxu0 0
  %782 = vmatprep.subr.bf16.mxu0 0
  %783 = vmatpush2.bf16.msra.mxu0 0
  %784 = vmatprep.subr.bf16.mxu0 0
  %785 = vmatpush2.bf16.msra.mxu0 0
  %786 = vmatprep.subr.bf16.mxu0 0
  %787 = vmatpush2.bf16.msra.mxu0 0
  %788 = vmatprep.subr.bf16.mxu0 0
  %789 = vmatpush2.bf16.msra.mxu0 0
  %790 = vmatprep.mubr.bf16.mxu0 0
  %791 = vmatmul.mubr.bf16.gmra.mxu0 %v652
  %v792 = vpop.f32.mrf.mxu0
  %v793 = vadd.f32 %v644, %v792
  %v794 = vpop.f32.mrf.mxu0
  %v795 = vadd.f32 %v644, %v794
  %v796 = vpop.f32.mrf.mxu0
  %v797 = vadd.f32 %v649, %v796
  %v798 = vpop.f32.mrf.mxu0
  %v799 = vadd.f32 %v649, %v798
  %800 = vdwg.mxu0
  %v801 = vmax.f32 %v707, 0.0
  %v802 = vmax.f32 %v709, 0.0
  %v803 = vmax.f32 %v750, 0.0
  %v804 = vmax.f32 %v752, 0.0
  %v805 = vmax.f32 %v793, 0.0
  %v806 = vmax.f32 %v795, 0.0
  %v807 = vmax.f32 %v711, 0.0
  %v808 = vmax.f32 %v713, 0.0
  %v809 = vmax.f32 %v754, 0.0
  %v810 = vmax.f32 %v756, 0.0
  %v811 = vmax.f32 %v797, 0.0
  %v812 = vmax.f32 %v799, 0.0
  %v813 = vpack.c.bf16 %v22, %v21
  %v814 = vpack.c.bf16 %v807, %v801
  %v815 = vpack.c.bf16 %v808, %v802
  %v816 = vpack.c.bf16 %v809, %v803
  %v817 = vpack.c.bf16 %v810, %v804
  %v818 = vpack.c.bf16 %v811, %v805
  %v819 = vpack.c.bf16 %v812, %v806
  %821 = vset.pattern.permute.xlu0 16
  %822 = vperm.xlu0 %821, %v21
  %v823 = vpop.permute.xlu0 %822
  %826 = vset.pattern.permute.xlu0 16
  %827 = vperm.xlu0 %826, %v22
  %v828 = vpop.permute.xlu0 %827
  %vm830 = vcmask 130048
  %v832 = vsel %vm830, %v813, 0
  %834 = vmatprep.subr.bf16.mxu0 0
  %835 = vmatpush1.bf16.msra.mxu0 0
  %836 = vmatprep.subr.bf16.mxu0 0
  %837 = vmatpush1.bf16.msra.mxu0 0
  %838 = vmatprep.subr.bf16.mxu0 0
  %839 = vmatpush1.bf16.msra.mxu0 0
  %840 = vmatprep.subr.bf16.mxu0 0
  %841 = vmatpush1.bf16.msra.mxu0 0
  %842 = vmatprep.subr.bf16.mxu0 0
  %843 = vmatpush1.bf16.msra.mxu0 0
  %844 = vmatprep.subr.bf16.mxu0 0
  %845 = vmatpush1.bf16.msra.mxu0 0
  %846 = vmatprep.subr.bf16.mxu0 0
  %847 = vmatpush1.bf16.msra.mxu0 0
  %848 = vmatprep.subr.bf16.mxu0 %v815
  %849 = vmatpush1.bf16.msra.mxu0 %v814
  %850 = vmatprep.subr.bf16.mxu0 0
  %851 = vmatpush2.bf16.msra.mxu0 0
  %852 = vmatprep.subr.bf16.mxu0 0
  %853 = vmatpush2.bf16.msra.mxu0 0
  %854 = vmatprep.subr.bf16.mxu0 0
  %855 = vmatpush2.bf16.msra.mxu0 0
  %856 = vmatprep.subr.bf16.mxu0 0
  %857 = vmatpush2.bf16.msra.mxu0 0
  %858 = vmatprep.subr.bf16.mxu0 0
  %859 = vmatpush2.bf16.msra.mxu0 0
  %860 = vmatprep.subr.bf16.mxu0 0
  %861 = vmatpush2.bf16.msra.mxu0 0
  %862 = vmatprep.subr.bf16.mxu0 0
  %863 = vmatpush2.bf16.msra.mxu0 0
  %864 = vmatprep.subr.bf16.mxu0 0
  %865 = vmatpush2.bf16.msra.mxu0 0
  %866 = vmatprep.mubr.bf16.mxu0 0
  %867 = vmatmul.mubr.bf16.gmra.mxu0 %v832
  %v868 = vpop.f32.mrf.mxu0
  %v869 = vadd.f32 %v823, %v868
  %v870 = vpop.f32.mrf.mxu0
  %v871 = vadd.f32 %v823, %v870
  %v872 = vpop.f32.mrf.mxu0
  %v873 = vadd.f32 %v828, %v872
  %v874 = vpop.f32.mrf.mxu0
  %v875 = vadd.f32 %v828, %v874
  %876 = vdwg.mxu0
  %877 = vmatprep.subr.bf16.mxu0 0
  %878 = vmatpush1.bf16.msra.mxu0 0
  %879 = vmatprep.subr.bf16.mxu0 0
  %880 = vmatpush1.bf16.msra.mxu0 0
  %881 = vmatprep.subr.bf16.mxu0 0
  %882 = vmatpush1.bf16.msra.mxu0 0
  %883 = vmatprep.subr.bf16.mxu0 0
  %884 = vmatpush1.bf16.msra.mxu0 0
  %885 = vmatprep.subr.bf16.mxu0 0
  %886 = vmatpush1.bf16.msra.mxu0 0
  %887 = vmatprep.subr.bf16.mxu0 0
  %888 = vmatpush1.bf16.msra.mxu0 0
  %889 = vmatprep.subr.bf16.mxu0 0
  %890 = vmatpush1.bf16.msra.mxu0 0
  %891 = vmatprep.subr.bf16.mxu0 %v817
  %892 = vmatpush1.bf16.msra.mxu0 %v816
  %893 = vmatprep.subr.bf16.mxu0 0
  %894 = vmatpush2.bf16.msra.mxu0 0
  %895 = vmatprep.subr.bf16.mxu0 0
  %896 = vmatpush2.bf16.msra.mxu0 0
  %897 = vmatprep.subr.bf16.mxu0 0
  %898 = vmatpush2.bf16.msra.mxu0 0
  %899 = vmatprep.subr.bf16.mxu0 0
  %900 = vmatpush2.bf16.msra.mxu0 0
  %901 = vmatprep.subr.bf16.mxu0 0
  %902 = vmatpush2.bf16.msra.mxu0 0
  %903 = vmatprep.subr.bf16.mxu0 0
  %904 = vmatpush2.bf16.msra.mxu0 0
  %905 = vmatprep.subr.bf16.mxu0 0
  %906 = vmatpush2.bf16.msra.mxu0 0
  %907 = vmatprep.subr.bf16.mxu0 0
  %908 = vmatpush2.bf16.msra.mxu0 0
  %909 = vmatprep.mubr.bf16.mxu0 0
  %910 = vmatmul.mubr.bf16.gmra.mxu0 %v832
  %v911 = vpop.f32.mrf.mxu0
  %v912 = vadd.f32 %v823, %v911
  %v913 = vpop.f32.mrf.mxu0
  %v914 = vadd.f32 %v823, %v913
  %v915 = vpop.f32.mrf.mxu0
  %v916 = vadd.f32 %v828, %v915
  %v917 = vpop.f32.mrf.mxu0
  %v918 = vadd.f32 %v828, %v917
  %919 = vdwg.mxu0
  %920 = vmatprep.subr.bf16.mxu0 0
  %921 = vmatpush1.bf16.msra.mxu0 0
  %922 = vmatprep.subr.bf16.mxu0 0
  %923 = vmatpush1.bf16.msra.mxu0 0
  %924 = vmatprep.subr.bf16.mxu0 0
  %925 = vmatpush1.bf16.msra.mxu0 0
  %926 = vmatprep.subr.bf16.mxu0 0
  %927 = vmatpush1.bf16.msra.mxu0 0
  %928 = vmatprep.subr.bf16.mxu0 0
  %929 = vmatpush1.bf16.msra.mxu0 0
  %930 = vmatprep.subr.bf16.mxu0 0
  %931 = vmatpush1.bf16.msra.mxu0 0
  %932 = vmatprep.subr.bf16.mxu0 0
  %933 = vmatpush1.bf16.msra.mxu0 0
  %934 = vmatprep.subr.bf16.mxu0 %v819
  %935 = vmatpush1.bf16.msra.mxu0 %v818
  %936 = vmatprep.subr.bf16.mxu0 0
  %937 = vmatpush2.bf16.msra.mxu0 0
  %938 = vmatprep.subr.bf16.mxu0 0
  %939 = vmatpush2.bf16.msra.mxu0 0
  %940 = vmatprep.subr.bf16.mxu0 0
  %941 = vmatpush2.bf16.msra.mxu0 0
  %942 = vmatprep.subr.bf16.mxu0 0
  %943 = vmatpush2.bf16.msra.mxu0 0
  %944 = vmatprep.subr.bf16.mxu0 0
  %945 = vmatpush2.bf16.msra.mxu0 0
  %946 = vmatprep.subr.bf16.mxu0 0
  %947 = vmatpush2.bf16.msra.mxu0 0
  %948 = vmatprep.subr.bf16.mxu0 0
  %949 = vmatpush2.bf16.msra.mxu0 0
  %950 = vmatprep.subr.bf16.mxu0 0
  %951 = vmatpush2.bf16.msra.mxu0 0
  %952 = vmatprep.mubr.bf16.mxu0 0
  %953 = vmatmul.mubr.bf16.gmra.mxu0 %v832
  %v954 = vpop.f32.mrf.mxu0
  %v955 = vadd.f32 %v823, %v954
  %v956 = vpop.f32.mrf.mxu0
  %v957 = vadd.f32 %v823, %v956
  %v958 = vpop.f32.mrf.mxu0
  %v959 = vadd.f32 %v828, %v958
  %v960 = vpop.f32.mrf.mxu0
  %v961 = vadd.f32 %v828, %v960
  %962 = vdwg.mxu0
  %v963 = vmax.f32 %v869, 0.0
  %v964 = vmax.f32 %v871, 0.0
  %v965 = vmax.f32 %v912, 0.0
  %v966 = vmax.f32 %v914, 0.0
  %v967 = vmax.f32 %v955, 0.0
  %v968 = vmax.f32 %v957, 0.0
  %v969 = vmax.f32 %v873, 0.0
  %v970 = vmax.f32 %v875, 0.0
  %v971 = vmax.f32 %v916, 0.0
  %v972 = vmax.f32 %v918, 0.0
  %v973 = vmax.f32 %v959, 0.0
  %v974 = vmax.f32 %v961, 0.0
  %v975 = vpack.c.bf16 %v16, %v15
  %v976 = vpack.c.bf16 %v18, %v17
  %v977 = vpack.c.bf16 %v40, %v38
  %v978 = vpack.c.bf16 %v41, %v39
  %v979 = vpack.c.bf16 %v44, %v42
  %v980 = vpack.c.bf16 %v45, %v43
  %982 = vset.pattern.permute.xlu0 32
  %983 = vperm.xlu0 %982, %v15
  %v984 = vpop.permute.xlu0 %983
  %987 = vset.pattern.permute.xlu0 32
  %988 = vperm.xlu0 %987, %v16
  %v989 = vpop.permute.xlu0 %988
  %992 = vset.pattern.permute.xlu0 32
  %993 = vperm.xlu0 %992, %v17
  %v994 = vpop.permute.xlu0 %993
  %997 = vset.pattern.permute.xlu0 32
  %998 = vperm.xlu0 %997, %v18
  %v999 = vpop.permute.xlu0 %998
  %v1002 = vsel %vm154, %v975, 0
  %v1005 = vsel %vm154, %v976, 0
  %1007 = vmatprep.subr.bf16.mxu0 0
  %1008 = vmatpush1.bf16.msra.mxu0 0
  %1009 = vmatprep.subr.bf16.mxu0 0
  %1010 = vmatpush1.bf16.msra.mxu0 0
  %1011 = vmatprep.subr.bf16.mxu0 0
  %1012 = vmatpush1.bf16.msra.mxu0 0
  %1013 = vmatprep.subr.bf16.mxu0 0
  %1014 = vmatpush1.bf16.msra.mxu0 0
  %1015 = vmatprep.subr.bf16.mxu0 0
  %1016 = vmatpush1.bf16.msra.mxu0 0
  %1017 = vmatprep.subr.bf16.mxu0 0
  %1018 = vmatpush1.bf16.msra.mxu0 0
  %1019 = vmatprep.subr.bf16.mxu0 %v980
  %1020 = vmatpush1.bf16.msra.mxu0 %v979
  %1021 = vmatprep.subr.bf16.mxu0 %v978
  %1022 = vmatpush1.bf16.msra.mxu0 %v977
  %1023 = vmatprep.subr.bf16.mxu0 0
  %1024 = vmatpush2.bf16.msra.mxu0 0
  %1025 = vmatprep.subr.bf16.mxu0 0
  %1026 = vmatpush2.bf16.msra.mxu0 0
  %1027 = vmatprep.subr.bf16.mxu0 0
  %1028 = vmatpush2.bf16.msra.mxu0 0
  %1029 = vmatprep.subr.bf16.mxu0 0
  %1030 = vmatpush2.bf16.msra.mxu0 0
  %1031 = vmatprep.subr.bf16.mxu0 0
  %1032 = vmatpush2.bf16.msra.mxu0 0
  %1033 = vmatprep.subr.bf16.mxu0 0
  %1034 = vmatpush2.bf16.msra.mxu0 0
  %1035 = vmatprep.subr.bf16.mxu0 0
  %1036 = vmatpush2.bf16.msra.mxu0 0
  %1037 = vmatprep.subr.bf16.mxu0 0
  %1038 = vmatpush2.bf16.msra.mxu0 0
  %1039 = vmatprep.mubr.bf16.mxu0 0
  %1040 = vmatmul.mubr.bf16.gmra.mxu0 %v1002
  %v1041 = vpop.f32.mrf.mxu0
  %v1042 = vadd.f32 %v984, %v1041
  %v1043 = vpop.f32.mrf.mxu0
  %v1044 = vadd.f32 %v984, %v1043
  %v1045 = vpop.f32.mrf.mxu0
  %v1046 = vadd.f32 %v989, %v1045
  %v1047 = vpop.f32.mrf.mxu0
  %v1048 = vadd.f32 %v989, %v1047
  %1049 = vmatprep.mubr.bf16.mxu0 0
  %1050 = vmatmul.mubr.bf16.gmra.mxu0 %v1005
  %v1051 = vpop.f32.mrf.mxu0
  %v1052 = vadd.f32 %v994, %v1051
  %v1053 = vpop.f32.mrf.mxu0
  %v1054 = vadd.f32 %v994, %v1053
  %v1055 = vpop.f32.mrf.mxu0
  %v1056 = vadd.f32 %v999, %v1055
  %v1057 = vpop.f32.mrf.mxu0
  %v1058 = vadd.f32 %v999, %v1057
  %1059 = vdwg.mxu0
  %v1060 = vmax.f32 %v1042, 0.0
  %v1061 = vmax.f32 %v1044, 0.0
  %v1062 = vmax.f32 %v1046, 0.0
  %v1063 = vmax.f32 %v1048, 0.0
  %v1064 = vmax.f32 %v1052, 0.0
  %v1065 = vmax.f32 %v1054, 0.0
  %v1066 = vmax.f32 %v1056, 0.0
  %v1067 = vmax.f32 %v1058, 0.0
  %v1068 = vpack.c.bf16 %v24, %v23
  %v1069 = vpack.c.bf16 %v969, %v963
  %v1070 = vpack.c.bf16 %v970, %v964
  %v1071 = vpack.c.bf16 %v971, %v965
  %v1072 = vpack.c.bf16 %v972, %v966
  %v1073 = vpack.c.bf16 %v973, %v967
  %v1074 = vpack.c.bf16 %v974, %v968
  %1076 = vset.pattern.permute.xlu0 96
  %1077 = vperm.xlu0 %1076, %v23
  %v1078 = vpop.permute.xlu0 %1077
  %1081 = vset.pattern.permute.xlu0 96
  %1082 = vperm.xlu0 %1081, %v24
  %v1083 = vpop.permute.xlu0 %1082
  %1086 = vrot.lane.b32.xlu0 %v1068, 48
  %v1087 = vpop.permute.xlu0 %1086
  %v1089 = vsel %vm830, %v1087, 0
  %1091 = vmatprep.subr.bf16.mxu0 0
  %1092 = vmatpush1.bf16.msra.mxu0 0
  %1093 = vmatprep.subr.bf16.mxu0 0
  %1094 = vmatpush1.bf16.msra.mxu0 0
  %1095 = vmatprep.subr.bf16.mxu0 0
  %1096 = vmatpush1.bf16.msra.mxu0 0
  %1097 = vmatprep.subr.bf16.mxu0 0
  %1098 = vmatpush1.bf16.msra.mxu0 0
  %1099 = vmatprep.subr.bf16.mxu0 0
  %1100 = vmatpush1.bf16.msra.mxu0 0
  %1101 = vmatprep.subr.bf16.mxu0 0
  %1102 = vmatpush1.bf16.msra.mxu0 0
  %1103 = vmatprep.subr.bf16.mxu0 0
  %1104 = vmatpush1.bf16.msra.mxu0 0
  %1105 = vmatprep.subr.bf16.mxu0 %v1070
  %1106 = vmatpush1.bf16.msra.mxu0 %v1069
  %1107 = vmatprep.subr.bf16.mxu0 0
  %1108 = vmatpush2.bf16.msra.mxu0 0
  %1109 = vmatprep.subr.bf16.mxu0 0
  %1110 = vmatpush2.bf16.msra.mxu0 0
  %1111 = vmatprep.subr.bf16.mxu0 0
  %1112 = vmatpush2.bf16.msra.mxu0 0
  %1113 = vmatprep.subr.bf16.mxu0 0
  %1114 = vmatpush2.bf16.msra.mxu0 0
  %1115 = vmatprep.subr.bf16.mxu0 0
  %1116 = vmatpush2.bf16.msra.mxu0 0
  %1117 = vmatprep.subr.bf16.mxu0 0
  %1118 = vmatpush2.bf16.msra.mxu0 0
  %1119 = vmatprep.subr.bf16.mxu0 0
  %1120 = vmatpush2.bf16.msra.mxu0 0
  %1121 = vmatprep.subr.bf16.mxu0 0
  %1122 = vmatpush2.bf16.msra.mxu0 0
  %1123 = vmatprep.mubr.bf16.mxu0 0
  %1124 = vmatmul.mubr.bf16.gmra.mxu0 %v1089
  %v1125 = vpop.f32.mrf.mxu0
  %v1126 = vadd.f32 %v1078, %v1125
  %v1127 = vpop.f32.mrf.mxu0
  %v1128 = vadd.f32 %v1078, %v1127
  %v1129 = vpop.f32.mrf.mxu0
  %v1130 = vadd.f32 %v1083, %v1129
  %v1131 = vpop.f32.mrf.mxu0
  %v1132 = vadd.f32 %v1083, %v1131
  %1133 = vdwg.mxu0
  %1134 = vmatprep.subr.bf16.mxu0 0
  %1135 = vmatpush1.bf16.msra.mxu0 0
  %1136 = vmatprep.subr.bf16.mxu0 0
  %1137 = vmatpush1.bf16.msra.mxu0 0
  %1138 = vmatprep.subr.bf16.mxu0 0
  %1139 = vmatpush1.bf16.msra.mxu0 0
  %1140 = vmatprep.subr.bf16.mxu0 0
  %1141 = vmatpush1.bf16.msra.mxu0 0
  %1142 = vmatprep.subr.bf16.mxu0 0
  %1143 = vmatpush1.bf16.msra.mxu0 0
  %1144 = vmatprep.subr.bf16.mxu0 0
  %1145 = vmatpush1.bf16.msra.mxu0 0
  %1146 = vmatprep.subr.bf16.mxu0 0
  %1147 = vmatpush1.bf16.msra.mxu0 0
  %1148 = vmatprep.subr.bf16.mxu0 %v1072
  %1149 = vmatpush1.bf16.msra.mxu0 %v1071
  %1150 = vmatprep.subr.bf16.mxu0 0
  %1151 = vmatpush2.bf16.msra.mxu0 0
  %1152 = vmatprep.subr.bf16.mxu0 0
  %1153 = vmatpush2.bf16.msra.mxu0 0
  %1154 = vmatprep.subr.bf16.mxu0 0
  %1155 = vmatpush2.bf16.msra.mxu0 0
  %1156 = vmatprep.subr.bf16.mxu0 0
  %1157 = vmatpush2.bf16.msra.mxu0 0
  %1158 = vmatprep.subr.bf16.mxu0 0
  %1159 = vmatpush2.bf16.msra.mxu0 0
  %1160 = vmatprep.subr.bf16.mxu0 0
  %1161 = vmatpush2.bf16.msra.mxu0 0
  %1162 = vmatprep.subr.bf16.mxu0 0
  %1163 = vmatpush2.bf16.msra.mxu0 0
  %1164 = vmatprep.subr.bf16.mxu0 0
  %1165 = vmatpush2.bf16.msra.mxu0 0
  %1166 = vmatprep.mubr.bf16.mxu0 0
  %1167 = vmatmul.mubr.bf16.gmra.mxu0 %v1089
  %v1168 = vpop.f32.mrf.mxu0
  %v1169 = vadd.f32 %v1078, %v1168
  %v1170 = vpop.f32.mrf.mxu0
  %v1171 = vadd.f32 %v1078, %v1170
  %v1172 = vpop.f32.mrf.mxu0
  %v1173 = vadd.f32 %v1083, %v1172
  %v1174 = vpop.f32.mrf.mxu0
  %v1175 = vadd.f32 %v1083, %v1174
  %1176 = vdwg.mxu0
  %1177 = vmatprep.subr.bf16.mxu0 0
  %1178 = vmatpush1.bf16.msra.mxu0 0
  %1179 = vmatprep.subr.bf16.mxu0 0
  %1180 = vmatpush1.bf16.msra.mxu0 0
  %1181 = vmatprep.subr.bf16.mxu0 0
  %1182 = vmatpush1.bf16.msra.mxu0 0
  %1183 = vmatprep.subr.bf16.mxu0 0
  %1184 = vmatpush1.bf16.msra.mxu0 0
  %1185 = vmatprep.subr.bf16.mxu0 0
  %1186 = vmatpush1.bf16.msra.mxu0 0
  %1187 = vmatprep.subr.bf16.mxu0 0
  %1188 = vmatpush1.bf16.msra.mxu0 0
  %1189 = vmatprep.subr.bf16.mxu0 0
  %1190 = vmatpush1.bf16.msra.mxu0 0
  %1191 = vmatprep.subr.bf16.mxu0 %v1074
  %1192 = vmatpush1.bf16.msra.mxu0 %v1073
  %1193 = vmatprep.subr.bf16.mxu0 0
  %1194 = vmatpush2.bf16.msra.mxu0 0
  %1195 = vmatprep.subr.bf16.mxu0 0
  %1196 = vmatpush2.bf16.msra.mxu0 0
  %1197 = vmatprep.subr.bf16.mxu0 0
  %1198 = vmatpush2.bf16.msra.mxu0 0
  %1199 = vmatprep.subr.bf16.mxu0 0
  %1200 = vmatpush2.bf16.msra.mxu0 0
  %1201 = vmatprep.subr.bf16.mxu0 0
  %1202 = vmatpush2.bf16.msra.mxu0 0
  %1203 = vmatprep.subr.bf16.mxu0 0
  %1204 = vmatpush2.bf16.msra.mxu0 0
  %1205 = vmatprep.subr.bf16.mxu0 0
  %1206 = vmatpush2.bf16.msra.mxu0 0
  %1207 = vmatprep.subr.bf16.mxu0 0
  %1208 = vmatpush2.bf16.msra.mxu0 0
  %1209 = vmatprep.mubr.bf16.mxu0 0
  %1210 = vmatmul.mubr.bf16.gmra.mxu0 %v1089
  %v1211 = vpop.f32.mrf.mxu0
  %v1212 = vadd.f32 %v1078, %v1211
  %v1213 = vpop.f32.mrf.mxu0
  %v1214 = vadd.f32 %v1078, %v1213
  %v1215 = vpop.f32.mrf.mxu0
  %v1216 = vadd.f32 %v1083, %v1215
  %v1217 = vpop.f32.mrf.mxu0
  %v1218 = vadd.f32 %v1083, %v1217
  %1219 = vdwg.mxu0
  %v1220 = vlaneseq
  %v1221 = vand.u32 %v1220, 127
  %vm1222 = vcmp.lt.s32.totalorder %v1221, 8
  %v1223 = vsel %vm1222, 1, 0
  %v1224 = vcvt.s32.f32 %v1223
  %1226 = vset.pattern.permute.xlu0 16
  %1227 = vperm.xlu0 %1226, %v25
  %v1228 = vpop.permute.xlu0 %1227
  %1231 = vset.pattern.permute.xlu0 16
  %1232 = vperm.xlu0 %1231, %v26
  %v1233 = vpop.permute.xlu0 %1232
  %1236 = vset.pattern.permute.xlu0 48
  %1237 = vperm.xlu0 %1236, %v27
  %v1238 = vpop.permute.xlu0 %1237
  %1241 = vset.pattern.permute.xlu0 48
  %1242 = vperm.xlu0 %1241, %v28
  %v1243 = vpop.permute.xlu0 %1242
  %1246 = vset.pattern.permute.xlu0 48
  %1247 = vperm.xlu0 %1246, %v29
  %v1248 = vpop.permute.xlu0 %1247
  %1251 = vset.pattern.permute.xlu0 48
  %1252 = vperm.xlu0 %1251, %v30
  %v1253 = vpop.permute.xlu0 %1252
  %1256 = vset.pattern.permute.xlu0 32
  %1257 = vperm.xlu0 %1256, %v31
  %v1258 = vpop.permute.xlu0 %1257
  %1261 = vset.pattern.permute.xlu0 32
  %1262 = vperm.xlu0 %1261, %v32
  %v1263 = vpop.permute.xlu0 %1262
  %1266 = vset.pattern.permute.xlu0 32
  %1267 = vperm.xlu0 %1266, %v33
  %v1268 = vpop.permute.xlu0 %1267
  %1271 = vset.pattern.permute.xlu0 32
  %1272 = vperm.xlu0 %1271, %v34
  %v1273 = vpop.permute.xlu0 %1272
  %1276 = vset.pattern.permute.xlu0 16
  %1277 = vperm.xlu0 %1276, %v35
  %v1278 = vpop.permute.xlu0 %1277
  %1281 = vset.pattern.permute.xlu0 16
  %1282 = vperm.xlu0 %1281, %v36
  %v1283 = vpop.permute.xlu0 %1282
  %1286 = vset.pattern.permute.xlu0 16
  %1287 = vperm.xlu0 %1286, %v37
  %v1288 = vpop.permute.xlu0 %1287
  %v1290 = vpack.c.bf16 %v1062, %v1060
  %v1291 = vpack.c.bf16 %v1066, %v1064
  %v1293 = vsel %vm154, %v1068, 0
  %1295 = vmatprep.subr.bf16.mxu0 0
  %1296 = vmatpush1.bf16.msra.mxu0 0
  %1297 = vmatprep.subr.bf16.mxu0 0
  %1298 = vmatpush1.bf16.msra.mxu0 0
  %1299 = vmatprep.subr.bf16.mxu0 0
  %1300 = vmatpush1.bf16.msra.mxu0 0
  %1301 = vmatprep.subr.bf16.mxu0 0
  %1302 = vmatpush1.bf16.msra.mxu0 0
  %1303 = vmatprep.subr.bf16.mxu0 0
  %1304 = vmatpush1.bf16.msra.mxu0 0
  %1305 = vmatprep.subr.bf16.mxu0 0
  %1306 = vmatpush1.bf16.msra.mxu0 0
  %1307 = vmatprep.subr.bf16.mxu0 0
  %1308 = vmatpush1.bf16.msra.mxu0 %v1291
  %1309 = vmatprep.subr.bf16.mxu0 0
  %1310 = vmatpush1.bf16.msra.mxu0 %v1290
  %1311 = vmatprep.subr.bf16.mxu0 0
  %1312 = vmatpush2.bf16.msra.mxu0 0
  %1313 = vmatprep.subr.bf16.mxu0 0
  %1314 = vmatpush2.bf16.msra.mxu0 0
  %1315 = vmatprep.subr.bf16.mxu0 0
  %1316 = vmatpush2.bf16.msra.mxu0 0
  %1317 = vmatprep.subr.bf16.mxu0 0
  %1318 = vmatpush2.bf16.msra.mxu0 0
  %1319 = vmatprep.subr.bf16.mxu0 0
  %1320 = vmatpush2.bf16.msra.mxu0 0
  %1321 = vmatprep.subr.bf16.mxu0 0
  %1322 = vmatpush2.bf16.msra.mxu0 0
  %1323 = vmatprep.subr.bf16.mxu0 0
  %1324 = vmatpush2.bf16.msra.mxu0 0
  %1325 = vmatprep.subr.bf16.mxu0 0
  %1326 = vmatpush2.bf16.msra.mxu0 0
  %1327 = vmatprep.mubr.bf16.mxu0 0
  %1328 = vmatmul.mubr.bf16.gmra.mxu0 %v1293
  %v1329 = vpop.f32.mrf.mxu0
  %v1330 = vadd.f32 0.0, %v1329
  %v1331 = vpop.f32.mrf.mxu0
  %v1332 = vpop.f32.mrf.mxu0
  %v1333 = vadd.f32 0.0, %v1332
  %v1334 = vpop.f32.mrf.mxu0
  %1335 = vdwg.mxu0
  %v1336 = vpack.c.bf16 %v1063, %v1061
  %v1337 = vpack.c.bf16 %v1067, %v1065
  %1338 = vrot.lane.b32.xlu0 %v1068, 96
  %v1339 = vpop.permute.xlu0 %1338
  %1344 = vrot.lane.b32.xlu0 %v1290, 122
  %v1345 = vpop.permute.xlu0 %1344
  %1346 = vrot.lane.b32.xlu0 %v1336, 122
  %v1347 = vpop.permute.xlu0 %1346
  %1348 = vrot.lane.b32.xlu0 %v1291, 122
  %v1349 = vpop.permute.xlu0 %1348
  %1350 = vrot.lane.b32.xlu0 %v1337, 122
  %v1351 = vpop.permute.xlu0 %1350
  %vm1352 = vcmask 998400
  %v1353 = vsel %vm1352, %v1345, %v1347
  %v1354 = vsel %vm1352, %v1349, %v1351
  %v1358 = vsel %vm154, %v1339, 0
  %1360 = vmatprep.subr.bf16.mxu0 0
  %1361 = vmatpush1.bf16.msra.mxu0 0
  %1362 = vmatprep.subr.bf16.mxu0 0
  %1363 = vmatpush1.bf16.msra.mxu0 0
  %1364 = vmatprep.subr.bf16.mxu0 0
  %1365 = vmatpush1.bf16.msra.mxu0 0
  %1366 = vmatprep.subr.bf16.mxu0 0
  %1367 = vmatpush1.bf16.msra.mxu0 0
  %1368 = vmatprep.subr.bf16.mxu0 0
  %1369 = vmatpush1.bf16.msra.mxu0 0
  %1370 = vmatprep.subr.bf16.mxu0 0
  %1371 = vmatpush1.bf16.msra.mxu0 0
  %1372 = vmatprep.subr.bf16.mxu0 0
  %1373 = vmatpush1.bf16.msra.mxu0 %v1354
  %1374 = vmatprep.subr.bf16.mxu0 0
  %1375 = vmatpush1.bf16.msra.mxu0 %v1353
  %1376 = vmatprep.subr.bf16.mxu0 0
  %1377 = vmatpush2.bf16.msra.mxu0 0
  %1378 = vmatprep.subr.bf16.mxu0 0
  %1379 = vmatpush2.bf16.msra.mxu0 0
  %1380 = vmatprep.subr.bf16.mxu0 0
  %1381 = vmatpush2.bf16.msra.mxu0 0
  %1382 = vmatprep.subr.bf16.mxu0 0
  %1383 = vmatpush2.bf16.msra.mxu0 0
  %1384 = vmatprep.subr.bf16.mxu0 0
  %1385 = vmatpush2.bf16.msra.mxu0 0
  %1386 = vmatprep.subr.bf16.mxu0 0
  %1387 = vmatpush2.bf16.msra.mxu0 0
  %1388 = vmatprep.subr.bf16.mxu0 0
  %1389 = vmatpush2.bf16.msra.mxu0 0
  %1390 = vmatprep.subr.bf16.mxu0 0
  %1391 = vmatpush2.bf16.msra.mxu0 0
  %1392 = vmatprep.mubr.bf16.mxu0 0
  %1393 = vmatmul.mubr.bf16.gmra.mxu0 %v1358
  %v1394 = vpop.f32.mrf.mxu0
  %v1395 = vadd.f32 0.0, %v1394
  %v1396 = vpop.f32.mrf.mxu0
  %v1397 = vpop.f32.mrf.mxu0
  %v1398 = vadd.f32 0.0, %v1397
  %v1399 = vpop.f32.mrf.mxu0
  %1400 = vdwg.mxu0
  %1402 = vset.pattern.permute.xlu0 0
  %1403 = vperm.xlu0 %1402, %v1330
  %v1404 = vpop.permute.xlu0 %1403
  %1407 = vset.pattern.permute.xlu0 0
  %1408 = vperm.xlu0 %1407, %v1333
  %v1409 = vpop.permute.xlu0 %1408
  %v1411 = vadd.f32 %v1404, %v1395
  %v1412 = vadd.f32 %v1409, %v1398
  %1413 = vset.pattern.permute.xlu0 1
  %1414 = vperm.xlu0 %1413, %v1330
  %v1415 = vpop.permute.xlu0 %1414
  %1417 = vset.pattern.permute.xlu0 1
  %1418 = vperm.xlu0 %1417, %v1333
  %v1419 = vpop.permute.xlu0 %1418
  %v1421 = vadd.f32 %v1415, %v1395
  %v1422 = vadd.f32 %v1419, %v1398
  %1423 = vset.pattern.permute.xlu0 2
  %1424 = vperm.xlu0 %1423, %v1330
  %v1425 = vpop.permute.xlu0 %1424
  %1427 = vset.pattern.permute.xlu0 2
  %1428 = vperm.xlu0 %1427, %v1333
  %v1429 = vpop.permute.xlu0 %1428
  %v1431 = vadd.f32 %v1425, %v1395
  %v1432 = vadd.f32 %v1429, %v1398
  %1433 = vset.pattern.permute.xlu0 3
  %1434 = vperm.xlu0 %1433, %v1330
  %v1435 = vpop.permute.xlu0 %1434
  %1437 = vset.pattern.permute.xlu0 3
  %1438 = vperm.xlu0 %1437, %v1333
  %v1439 = vpop.permute.xlu0 %1438
  %v1441 = vadd.f32 %v1435, %v1395
  %v1442 = vadd.f32 %v1439, %v1398
  %1443 = vset.pattern.permute.xlu0 4
  %1444 = vperm.xlu0 %1443, %v1330
  %v1445 = vpop.permute.xlu0 %1444
  %1447 = vset.pattern.permute.xlu0 4
  %1448 = vperm.xlu0 %1447, %v1333
  %v1449 = vpop.permute.xlu0 %1448
  %v1451 = vadd.f32 %v1445, %v1395
  %v1452 = vadd.f32 %v1449, %v1398
  %1453 = vset.pattern.permute.xlu0 5
  %1454 = vperm.xlu0 %1453, %v1330
  %v1455 = vpop.permute.xlu0 %1454
  %1457 = vset.pattern.permute.xlu0 5
  %1458 = vperm.xlu0 %1457, %v1333
  %v1459 = vpop.permute.xlu0 %1458
  %v1461 = vadd.f32 %v1455, %v1395
  %v1462 = vadd.f32 %v1459, %v1398
  %1463 = vrot.lane.b32.xlu0 %v1068, 64
  %v1464 = vpop.permute.xlu0 %1463
  %v1466 = vsel %vm830, %v1464, 0
  %1468 = vmatprep.subr.bf16.mxu0 0
  %1469 = vmatpush1.bf16.msra.mxu0 0
  %1470 = vmatprep.subr.bf16.mxu0 0
  %1471 = vmatpush1.bf16.msra.mxu0 0
  %1472 = vmatprep.subr.bf16.mxu0 0
  %1473 = vmatpush1.bf16.msra.mxu0 0
  %1474 = vmatprep.subr.bf16.mxu0 0
  %1475 = vmatpush1.bf16.msra.mxu0 0
  %1476 = vmatprep.subr.bf16.mxu0 0
  %1477 = vmatpush1.bf16.msra.mxu0 0
  %1478 = vmatprep.subr.bf16.mxu0 0
  %1479 = vmatpush1.bf16.msra.mxu0 0
  %1480 = vmatprep.subr.bf16.mxu0 0
  %1481 = vmatpush1.bf16.msra.mxu0 0
  %1482 = vmatprep.subr.bf16.mxu0 %v1070
  %1483 = vmatpush1.bf16.msra.mxu0 %v1069
  %1484 = vmatprep.subr.bf16.mxu0 0
  %1485 = vmatpush2.bf16.msra.mxu0 0
  %1486 = vmatprep.subr.bf16.mxu0 0
  %1487 = vmatpush2.bf16.msra.mxu0 0
  %1488 = vmatprep.subr.bf16.mxu0 0
  %1489 = vmatpush2.bf16.msra.mxu0 0
  %1490 = vmatprep.subr.bf16.mxu0 0
  %1491 = vmatpush2.bf16.msra.mxu0 0
  %1492 = vmatprep.subr.bf16.mxu0 0
  %1493 = vmatpush2.bf16.msra.mxu0 0
  %1494 = vmatprep.subr.bf16.mxu0 0
  %1495 = vmatpush2.bf16.msra.mxu0 0
  %1496 = vmatprep.subr.bf16.mxu0 0
  %1497 = vmatpush2.bf16.msra.mxu0 0
  %1498 = vmatprep.subr.bf16.mxu0 0
  %1499 = vmatpush2.bf16.msra.mxu0 0
  %1500 = vmatprep.mubr.bf16.mxu0 0
  %1501 = vmatmul.mubr.bf16.gmra.mxu0 %v1466
  %v1502 = vpop.f32.mrf.mxu0
  %v1503 = vadd.f32 %v1126, %v1502
  %v1504 = vpop.f32.mrf.mxu0
  %v1505 = vadd.f32 %v1128, %v1504
  %v1506 = vpop.f32.mrf.mxu0
  %v1507 = vadd.f32 %v1130, %v1506
  %v1508 = vpop.f32.mrf.mxu0
  %v1509 = vadd.f32 %v1132, %v1508
  %1510 = vdwg.mxu0
  %1511 = vmatprep.subr.bf16.mxu0 0
  %1512 = vmatpush1.bf16.msra.mxu0 0
  %1513 = vmatprep.subr.bf16.mxu0 0
  %1514 = vmatpush1.bf16.msra.mxu0 0
  %1515 = vmatprep.subr.bf16.mxu0 0
  %1516 = vmatpush1.bf16.msra.mxu0 0
  %1517 = vmatprep.subr.bf16.mxu0 0
  %1518 = vmatpush1.bf16.msra.mxu0 0
  %1519 = vmatprep.subr.bf16.mxu0 0
  %1520 = vmatpush1.bf16.msra.mxu0 0
  %1521 = vmatprep.subr.bf16.mxu0 0
  %1522 = vmatpush1.bf16.msra.mxu0 0
  %1523 = vmatprep.subr.bf16.mxu0 0
  %1524 = vmatpush1.bf16.msra.mxu0 0
  %1525 = vmatprep.subr.bf16.mxu0 %v1072
  %1526 = vmatpush1.bf16.msra.mxu0 %v1071
  %1527 = vmatprep.subr.bf16.mxu0 0
  %1528 = vmatpush2.bf16.msra.mxu0 0
  %1529 = vmatprep.subr.bf16.mxu0 0
  %1530 = vmatpush2.bf16.msra.mxu0 0
  %1531 = vmatprep.subr.bf16.mxu0 0
  %1532 = vmatpush2.bf16.msra.mxu0 0
  %1533 = vmatprep.subr.bf16.mxu0 0
  %1534 = vmatpush2.bf16.msra.mxu0 0
  %1535 = vmatprep.subr.bf16.mxu0 0
  %1536 = vmatpush2.bf16.msra.mxu0 0
  %1537 = vmatprep.subr.bf16.mxu0 0
  %1538 = vmatpush2.bf16.msra.mxu0 0
  %1539 = vmatprep.subr.bf16.mxu0 0
  %1540 = vmatpush2.bf16.msra.mxu0 0
  %1541 = vmatprep.subr.bf16.mxu0 0
  %1542 = vmatpush2.bf16.msra.mxu0 0
  %1543 = vmatprep.mubr.bf16.mxu0 0
  %1544 = vmatmul.mubr.bf16.gmra.mxu0 %v1466
  %v1545 = vpop.f32.mrf.mxu0
  %v1546 = vadd.f32 %v1169, %v1545
  %v1547 = vpop.f32.mrf.mxu0
  %v1548 = vadd.f32 %v1171, %v1547
  %v1549 = vpop.f32.mrf.mxu0
  %v1550 = vadd.f32 %v1173, %v1549
  %v1551 = vpop.f32.mrf.mxu0
  %v1552 = vadd.f32 %v1175, %v1551
  %1553 = vdwg.mxu0
  %1554 = vmatprep.subr.bf16.mxu0 0
  %1555 = vmatpush1.bf16.msra.mxu0 0
  %1556 = vmatprep.subr.bf16.mxu0 0
  %1557 = vmatpush1.bf16.msra.mxu0 0
  %1558 = vmatprep.subr.bf16.mxu0 0
  %1559 = vmatpush1.bf16.msra.mxu0 0
  %1560 = vmatprep.subr.bf16.mxu0 0
  %1561 = vmatpush1.bf16.msra.mxu0 0
  %1562 = vmatprep.subr.bf16.mxu0 0
  %1563 = vmatpush1.bf16.msra.mxu0 0
  %1564 = vmatprep.subr.bf16.mxu0 0
  %1565 = vmatpush1.bf16.msra.mxu0 0
  %1566 = vmatprep.subr.bf16.mxu0 0
  %1567 = vmatpush1.bf16.msra.mxu0 0
  %1568 = vmatprep.subr.bf16.mxu0 %v1074
  %1569 = vmatpush1.bf16.msra.mxu0 %v1073
  %1570 = vmatprep.subr.bf16.mxu0 0
  %1571 = vmatpush2.bf16.msra.mxu0 0
  %1572 = vmatprep.subr.bf16.mxu0 0
  %1573 = vmatpush2.bf16.msra.mxu0 0
  %1574 = vmatprep.subr.bf16.mxu0 0
  %1575 = vmatpush2.bf16.msra.mxu0 0
  %1576 = vmatprep.subr.bf16.mxu0 0
  %1577 = vmatpush2.bf16.msra.mxu0 0
  %1578 = vmatprep.subr.bf16.mxu0 0
  %1579 = vmatpush2.bf16.msra.mxu0 0
  %1580 = vmatprep.subr.bf16.mxu0 0
  %1581 = vmatpush2.bf16.msra.mxu0 0
  %1582 = vmatprep.subr.bf16.mxu0 0
  %1583 = vmatpush2.bf16.msra.mxu0 0
  %1584 = vmatprep.subr.bf16.mxu0 0
  %1585 = vmatpush2.bf16.msra.mxu0 0
  %1586 = vmatprep.mubr.bf16.mxu0 0
  %1587 = vmatmul.mubr.bf16.gmra.mxu0 %v1466
  %v1588 = vpop.f32.mrf.mxu0
  %v1589 = vadd.f32 %v1212, %v1588
  %v1590 = vpop.f32.mrf.mxu0
  %v1591 = vadd.f32 %v1214, %v1590
  %v1592 = vpop.f32.mrf.mxu0
  %v1593 = vadd.f32 %v1216, %v1592
  %v1594 = vpop.f32.mrf.mxu0
  %v1595 = vadd.f32 %v1218, %v1594
  %1596 = vdwg.mxu0
  %v1597 = vadd.f32 %v1503, %v1411
  %v1598 = vadd.f32 %v1505, %v1421
  %v1599 = vadd.f32 %v1546, %v1431
  %v1600 = vadd.f32 %v1548, %v1441
  %v1601 = vadd.f32 %v1589, %v1451
  %v1602 = vadd.f32 %v1591, %v1461
  %v1603 = vadd.f32 %v1507, %v1412
  %v1604 = vadd.f32 %v1509, %v1422
  %v1605 = vadd.f32 %v1550, %v1432
  %v1606 = vadd.f32 %v1552, %v1442
  %v1607 = vadd.f32 %v1593, %v1452
  %v1608 = vadd.f32 %v1595, %v1462
  %v1609 = vmax.f32 %v1597, 0.0
  %v1610 = vmax.f32 %v1598, 0.0
  %v1611 = vmax.f32 %v1599, 0.0
  %v1612 = vmax.f32 %v1600, 0.0
  %v1613 = vmax.f32 %v1601, 0.0
  %v1614 = vmax.f32 %v1602, 0.0
  %v1615 = vmax.f32 %v1603, 0.0
  %v1616 = vmax.f32 %v1604, 0.0
  %v1617 = vmax.f32 %v1605, 0.0
  %v1618 = vmax.f32 %v1606, 0.0
  %v1619 = vmax.f32 %v1607, 0.0
  %v1620 = vmax.f32 %v1608, 0.0
  %v1621 = vpack.c.bf16 %v26, %v25
  %v1622 = vpack.c.bf16 %v1615, %v1609
  %v1623 = vpack.c.bf16 %v1616, %v1610
  %v1624 = vpack.c.bf16 %v1617, %v1611
  %v1625 = vpack.c.bf16 %v1618, %v1612
  %v1626 = vpack.c.bf16 %v1619, %v1613
  %v1627 = vpack.c.bf16 %v1620, %v1614
  %v1629 = vsel %vm830, %v1621, 0
  %1631 = vmatprep.subr.bf16.mxu0 0
  %1632 = vmatpush1.bf16.msra.mxu0 0
  %1633 = vmatprep.subr.bf16.mxu0 0
  %1634 = vmatpush1.bf16.msra.mxu0 0
  %1635 = vmatprep.subr.bf16.mxu0 0
  %1636 = vmatpush1.bf16.msra.mxu0 0
  %1637 = vmatprep.subr.bf16.mxu0 0
  %1638 = vmatpush1.bf16.msra.mxu0 0
  %1639 = vmatprep.subr.bf16.mxu0 0
  %1640 = vmatpush1.bf16.msra.mxu0 0
  %1641 = vmatprep.subr.bf16.mxu0 0
  %1642 = vmatpush1.bf16.msra.mxu0 0
  %1643 = vmatprep.subr.bf16.mxu0 0
  %1644 = vmatpush1.bf16.msra.mxu0 0
  %1645 = vmatprep.subr.bf16.mxu0 %v1623
  %1646 = vmatpush1.bf16.msra.mxu0 %v1622
  %1647 = vmatprep.subr.bf16.mxu0 0
  %1648 = vmatpush2.bf16.msra.mxu0 0
  %1649 = vmatprep.subr.bf16.mxu0 0
  %1650 = vmatpush2.bf16.msra.mxu0 0
  %1651 = vmatprep.subr.bf16.mxu0 0
  %1652 = vmatpush2.bf16.msra.mxu0 0
  %1653 = vmatprep.subr.bf16.mxu0 0
  %1654 = vmatpush2.bf16.msra.mxu0 0
  %1655 = vmatprep.subr.bf16.mxu0 0
  %1656 = vmatpush2.bf16.msra.mxu0 0
  %1657 = vmatprep.subr.bf16.mxu0 0
  %1658 = vmatpush2.bf16.msra.mxu0 0
  %1659 = vmatprep.subr.bf16.mxu0 0
  %1660 = vmatpush2.bf16.msra.mxu0 0
  %1661 = vmatprep.subr.bf16.mxu0 0
  %1662 = vmatpush2.bf16.msra.mxu0 0
  %1663 = vmatprep.mubr.bf16.mxu0 0
  %1664 = vmatmul.mubr.bf16.gmra.mxu0 %v1629
  %v1665 = vpop.f32.mrf.mxu0
  %v1666 = vadd.f32 %v1228, %v1665
  %v1667 = vpop.f32.mrf.mxu0
  %v1668 = vadd.f32 %v1228, %v1667
  %v1669 = vpop.f32.mrf.mxu0
  %v1670 = vadd.f32 %v1233, %v1669
  %v1671 = vpop.f32.mrf.mxu0
  %v1672 = vadd.f32 %v1233, %v1671
  %1673 = vdwg.mxu0
  %1674 = vmatprep.subr.bf16.mxu0 0
  %1675 = vmatpush1.bf16.msra.mxu0 0
  %1676 = vmatprep.subr.bf16.mxu0 0
  %1677 = vmatpush1.bf16.msra.mxu0 0
  %1678 = vmatprep.subr.bf16.mxu0 0
  %1679 = vmatpush1.bf16.msra.mxu0 0
  %1680 = vmatprep.subr.bf16.mxu0 0
  %1681 = vmatpush1.bf16.msra.mxu0 0
  %1682 = vmatprep.subr.bf16.mxu0 0
  %1683 = vmatpush1.bf16.msra.mxu0 0
  %1684 = vmatprep.subr.bf16.mxu0 0
  %1685 = vmatpush1.bf16.msra.mxu0 0
  %1686 = vmatprep.subr.bf16.mxu0 0
  %1687 = vmatpush1.bf16.msra.mxu0 0
  %1688 = vmatprep.subr.bf16.mxu0 %v1625
  %1689 = vmatpush1.bf16.msra.mxu0 %v1624
  %1690 = vmatprep.subr.bf16.mxu0 0
  %1691 = vmatpush2.bf16.msra.mxu0 0
  %1692 = vmatprep.subr.bf16.mxu0 0
  %1693 = vmatpush2.bf16.msra.mxu0 0
  %1694 = vmatprep.subr.bf16.mxu0 0
  %1695 = vmatpush2.bf16.msra.mxu0 0
  %1696 = vmatprep.subr.bf16.mxu0 0
  %1697 = vmatpush2.bf16.msra.mxu0 0
  %1698 = vmatprep.subr.bf16.mxu0 0
  %1699 = vmatpush2.bf16.msra.mxu0 0
  %1700 = vmatprep.subr.bf16.mxu0 0
  %1701 = vmatpush2.bf16.msra.mxu0 0
  %1702 = vmatprep.subr.bf16.mxu0 0
  %1703 = vmatpush2.bf16.msra.mxu0 0
  %1704 = vmatprep.subr.bf16.mxu0 0
  %1705 = vmatpush2.bf16.msra.mxu0 0
  %1706 = vmatprep.mubr.bf16.mxu0 0
  %1707 = vmatmul.mubr.bf16.gmra.mxu0 %v1629
  %v1708 = vpop.f32.mrf.mxu0
  %v1709 = vadd.f32 %v1228, %v1708
  %v1710 = vpop.f32.mrf.mxu0
  %v1711 = vadd.f32 %v1228, %v1710
  %v1712 = vpop.f32.mrf.mxu0
  %v1713 = vadd.f32 %v1233, %v1712
  %v1714 = vpop.f32.mrf.mxu0
  %v1715 = vadd.f32 %v1233, %v1714
  %1716 = vdwg.mxu0
  %1717 = vmatprep.subr.bf16.mxu0 0
  %1718 = vmatpush1.bf16.msra.mxu0 0
  %1719 = vmatprep.subr.bf16.mxu0 0
  %1720 = vmatpush1.bf16.msra.mxu0 0
  %1721 = vmatprep.subr.bf16.mxu0 0
  %1722 = vmatpush1.bf16.msra.mxu0 0
  %1723 = vmatprep.subr.bf16.mxu0 0
  %1724 = vmatpush1.bf16.msra.mxu0 0
  %1725 = vmatprep.subr.bf16.mxu0 0
  %1726 = vmatpush1.bf16.msra.mxu0 0
  %1727 = vmatprep.subr.bf16.mxu0 0
  %1728 = vmatpush1.bf16.msra.mxu0 0
  %1729 = vmatprep.subr.bf16.mxu0 0
  %1730 = vmatpush1.bf16.msra.mxu0 0
  %1731 = vmatprep.subr.bf16.mxu0 %v1627
  %1732 = vmatpush1.bf16.msra.mxu0 %v1626
  %1733 = vmatprep.subr.bf16.mxu0 0
  %1734 = vmatpush2.bf16.msra.mxu0 0
  %1735 = vmatprep.subr.bf16.mxu0 0
  %1736 = vmatpush2.bf16.msra.mxu0 0
  %1737 = vmatprep.subr.bf16.mxu0 0
  %1738 = vmatpush2.bf16.msra.mxu0 0
  %1739 = vmatprep.subr.bf16.mxu0 0
  %1740 = vmatpush2.bf16.msra.mxu0 0
  %1741 = vmatprep.subr.bf16.mxu0 0
  %1742 = vmatpush2.bf16.msra.mxu0 0
  %1743 = vmatprep.subr.bf16.mxu0 0
  %1744 = vmatpush2.bf16.msra.mxu0 0
  %1745 = vmatprep.subr.bf16.mxu0 0
  %1746 = vmatpush2.bf16.msra.mxu0 0
  %1747 = vmatprep.subr.bf16.mxu0 0
  %1748 = vmatpush2.bf16.msra.mxu0 0
  %1749 = vmatprep.mubr.bf16.mxu0 0
  %1750 = vmatmul.mubr.bf16.gmra.mxu0 %v1629
  %v1751 = vpop.f32.mrf.mxu0
  %v1752 = vadd.f32 %v1228, %v1751
  %v1753 = vpop.f32.mrf.mxu0
  %v1754 = vadd.f32 %v1228, %v1753
  %v1755 = vpop.f32.mrf.mxu0
  %v1756 = vadd.f32 %v1233, %v1755
  %v1757 = vpop.f32.mrf.mxu0
  %v1758 = vadd.f32 %v1233, %v1757
  %1759 = vdwg.mxu0
  %v1760 = vmax.f32 %v1666, 0.0
  %v1761 = vmax.f32 %v1668, 0.0
  %v1762 = vmax.f32 %v1709, 0.0
  %v1763 = vmax.f32 %v1711, 0.0
  %v1764 = vmax.f32 %v1752, 0.0
  %v1765 = vmax.f32 %v1754, 0.0
  %v1766 = vmax.f32 %v1670, 0.0
  %v1767 = vmax.f32 %v1672, 0.0
  %v1768 = vmax.f32 %v1713, 0.0
  %v1769 = vmax.f32 %v1715, 0.0
  %v1770 = vmax.f32 %v1756, 0.0
  %v1771 = vmax.f32 %v1758, 0.0
  %v1772 = vlaneseq
  %v1773 = vshrl.u32 %v1772, 7
  %v1774 = vsub.s32 0, %v1773
  %v1775 = vrot.slane %v1224, %v1774
  %v1776 = vmul.f32 %v1760, %v1775
  %v1777 = vmul.f32 %v1761, %v1775
  %v1778 = vmul.f32 %v1762, %v1775
  %v1779 = vmul.f32 %v1763, %v1775
  %v1780 = vmul.f32 %v1764, %v1775
  %v1781 = vmul.f32 %v1765, %v1775
  %v1782 = vmul.f32 %v1766, %v1775
  %v1783 = vmul.f32 %v1767, %v1775
  %v1784 = vmul.f32 %v1768, %v1775
  %v1785 = vmul.f32 %v1769, %v1775
  %v1786 = vmul.f32 %v1770, %v1775
  %v1787 = vmul.f32 %v1771, %v1775
  %1788 = vadd.xlane.f32.xlu0 %v1776
  %v1789 = vpop.xlane.xlu0 %1788
  %1790 = vadd.xlane.f32.xlu0 %v1782
  %v1791 = vpop.xlane.xlu0 %1790
  %1792 = vadd.xlane.f32.xlu0 %v1777
  %v1793 = vpop.xlane.xlu0 %1792
  %1794 = vadd.xlane.f32.xlu0 %v1783
  %v1795 = vpop.xlane.xlu0 %1794
  %1796 = vadd.xlane.f32.xlu0 %v1778
  %v1797 = vpop.xlane.xlu0 %1796
  %1798 = vadd.xlane.f32.xlu0 %v1784
  %v1799 = vpop.xlane.xlu0 %1798
  %1800 = vadd.xlane.f32.xlu0 %v1779
  %v1801 = vpop.xlane.xlu0 %1800
  %1802 = vadd.xlane.f32.xlu0 %v1785
  %v1803 = vpop.xlane.xlu0 %1802
  %1804 = vadd.xlane.f32.xlu0 %v1780
  %v1805 = vpop.xlane.xlu0 %1804
  %1806 = vadd.xlane.f32.xlu0 %v1786
  %v1807 = vpop.xlane.xlu0 %1806
  %1808 = vadd.xlane.f32.xlu0 %v1781
  %v1809 = vpop.xlane.xlu0 %1808
  %1810 = vadd.xlane.f32.xlu0 %v1787
  %v1811 = vpop.xlane.xlu0 %1810
  %vm1812 = vcmask 7168
  %v1813 = vsel %vm1812, %v1789, %v1793
  %v1814 = vsel %vm1812, %v1791, %v1795
  %vm1815 = vcmask 15360
  %v1816 = vsel %vm1815, %v1813, %v1797
  %v1817 = vsel %vm1815, %v1814, %v1799
  %vm1818 = vcmask 23552
  %v1819 = vsel %vm1818, %v1816, %v1801
  %v1820 = vsel %vm1818, %v1817, %v1803
  %vm1821 = vcmask 31744
  %v1822 = vsel %vm1821, %v1819, %v1805
  %v1823 = vsel %vm1821, %v1820, %v1807
  %vm1824 = vcmask 39936
  %v1825 = vsel %vm1824, %v1822, %v1809
  %v1826 = vsel %vm1824, %v1823, %v1811
  %v1827 = vadd.f32 %v1776, %v1777
  %v1828 = vadd.f32 %v1782, %v1783
  %v1829 = vadd.f32 %v1827, %v1778
  %v1830 = vadd.f32 %v1828, %v1784
  %v1831 = vadd.f32 %v1829, %v1779
  %v1832 = vadd.f32 %v1830, %v1785
  %v1833 = vadd.f32 %v1831, %v1780
  %v1834 = vadd.f32 %v1832, %v1786
  %v1835 = vadd.f32 %v1833, %v1781
  %v1836 = vadd.f32 %v1834, %v1787
  %1839 = vrot.lane.b32.xlu0 %v1835, 6
  %v1840 = vpop.permute.xlu0 %1839
  %1841 = vrot.lane.b32.xlu0 %v1836, 6
  %v1842 = vpop.permute.xlu0 %1841
  %v1845 = vsel %vm95, %v1825, %v1840
  %v1846 = vsel %vm95, %v1826, %v1842
  %v1847 = vpack.c.bf16 %v28, %v27
  %v1848 = vpack.c.bf16 %v30, %v29
  %v1849 = vpack.c.bf16 %v1846, %v1845
  %v1850 = vpack.c.bf16 %v1842, %v1840
  %1853 = vrot.lane.b32.xlu0 %v1847, 96
  %v1854 = vpop.permute.xlu0 %1853
  %1855 = vrot.lane.b32.xlu0 %v1848, 96
  %v1856 = vpop.permute.xlu0 %1855
  %v1858 = vsel %vm830, %v1854, 0
  %v1861 = vsel %vm830, %v1856, 0
  %1863 = vmatprep.subr.bf16.mxu0 0
  %1864 = vmatpush1.bf16.msra.mxu0 0
  %1865 = vmatprep.subr.bf16.mxu0 0
  %1866 = vmatpush1.bf16.msra.mxu0 0
  %1867 = vmatprep.subr.bf16.mxu0 0
  %1868 = vmatpush1.bf16.msra.mxu0 0
  %1869 = vmatprep.subr.bf16.mxu0 0
  %1870 = vmatpush1.bf16.msra.mxu0 0
  %1871 = vmatprep.subr.bf16.mxu0 0
  %1872 = vmatpush1.bf16.msra.mxu0 0
  %1873 = vmatprep.subr.bf16.mxu0 0
  %1874 = vmatpush1.bf16.msra.mxu0 0
  %1875 = vmatprep.subr.bf16.mxu0 0
  %1876 = vmatpush1.bf16.msra.mxu0 0
  %1877 = vmatprep.subr.bf16.mxu0 %v1850
  %1878 = vmatpush1.bf16.msra.mxu0 %v1849
  %1879 = vmatprep.subr.bf16.mxu0 0
  %1880 = vmatpush2.bf16.msra.mxu0 0
  %1881 = vmatprep.subr.bf16.mxu0 0
  %1882 = vmatpush2.bf16.msra.mxu0 0
  %1883 = vmatprep.subr.bf16.mxu0 0
  %1884 = vmatpush2.bf16.msra.mxu0 0
  %1885 = vmatprep.subr.bf16.mxu0 0
  %1886 = vmatpush2.bf16.msra.mxu0 0
  %1887 = vmatprep.subr.bf16.mxu0 0
  %1888 = vmatpush2.bf16.msra.mxu0 0
  %1889 = vmatprep.subr.bf16.mxu0 0
  %1890 = vmatpush2.bf16.msra.mxu0 0
  %1891 = vmatprep.subr.bf16.mxu0 0
  %1892 = vmatpush2.bf16.msra.mxu0 0
  %1893 = vmatprep.subr.bf16.mxu0 0
  %1894 = vmatpush2.bf16.msra.mxu0 0
  %1895 = vmatprep.mubr.bf16.mxu0 0
  %1896 = vmatmul.mubr.bf16.gmra.mxu0 %v1858
  %v1897 = vpop.f32.mrf.mxu0
  %v1898 = vadd.f32 0.0, %v1897
  %v1899 = vpop.f32.mrf.mxu0
  %v1900 = vadd.f32 0.0, %v1899
  %v1901 = vpop.f32.mrf.mxu0
  %v1902 = vadd.f32 0.0, %v1901
  %v1903 = vpop.f32.mrf.mxu0
  %v1904 = vadd.f32 0.0, %v1903
  %1905 = vmatprep.mubr.bf16.mxu0 0
  %1906 = vmatmul.mubr.bf16.gmra.mxu0 %v1861
  %v1907 = vpop.f32.mrf.mxu0
  %v1908 = vadd.f32 0.0, %v1907
  %v1909 = vpop.f32.mrf.mxu0
  %v1910 = vadd.f32 0.0, %v1909
  %v1911 = vpop.f32.mrf.mxu0
  %v1912 = vadd.f32 0.0, %v1911
  %v1913 = vpop.f32.mrf.mxu0
  %v1914 = vadd.f32 0.0, %v1913
  %1915 = vdwg.mxu0
  %v1917 = vsel %vm154, %v1847, 0
  %v1920 = vsel %vm154, %v1848, 0
  %1922 = vmatprep.subr.bf16.mxu0 0
  %1923 = vmatpush1.bf16.msra.mxu0 0
  %1924 = vmatprep.subr.bf16.mxu0 0
  %1925 = vmatpush1.bf16.msra.mxu0 0
  %1926 = vmatprep.subr.bf16.mxu0 0
  %1927 = vmatpush1.bf16.msra.mxu0 0
  %1928 = vmatprep.subr.bf16.mxu0 0
  %1929 = vmatpush1.bf16.msra.mxu0 0
  %1930 = vmatprep.subr.bf16.mxu0 0
  %1931 = vmatpush1.bf16.msra.mxu0 0
  %1932 = vmatprep.subr.bf16.mxu0 0
  %1933 = vmatpush1.bf16.msra.mxu0 0
  %1934 = vmatprep.subr.bf16.mxu0 %v1337
  %1935 = vmatpush1.bf16.msra.mxu0 %v1291
  %1936 = vmatprep.subr.bf16.mxu0 %v1336
  %1937 = vmatpush1.bf16.msra.mxu0 %v1290
  %1938 = vmatprep.subr.bf16.mxu0 0
  %1939 = vmatpush2.bf16.msra.mxu0 0
  %1940 = vmatprep.subr.bf16.mxu0 0
  %1941 = vmatpush2.bf16.msra.mxu0 0
  %1942 = vmatprep.subr.bf16.mxu0 0
  %1943 = vmatpush2.bf16.msra.mxu0 0
  %1944 = vmatprep.subr.bf16.mxu0 0
  %1945 = vmatpush2.bf16.msra.mxu0 0
  %1946 = vmatprep.subr.bf16.mxu0 0
  %1947 = vmatpush2.bf16.msra.mxu0 0
  %1948 = vmatprep.subr.bf16.mxu0 0
  %1949 = vmatpush2.bf16.msra.mxu0 0
  %1950 = vmatprep.subr.bf16.mxu0 0
  %1951 = vmatpush2.bf16.msra.mxu0 0
  %1952 = vmatprep.subr.bf16.mxu0 0
  %1953 = vmatpush2.bf16.msra.mxu0 0
  %1954 = vmatprep.mubr.bf16.mxu0 0
  %1955 = vmatmul.mubr.bf16.gmra.mxu0 %v1917
  %v1956 = vpop.f32.mrf.mxu0
  %v1957 = vadd.f32 %v1898, %v1956
  %v1958 = vpop.f32.mrf.mxu0
  %v1959 = vadd.f32 %v1900, %v1958
  %v1960 = vpop.f32.mrf.mxu0
  %v1961 = vadd.f32 %v1902, %v1960
  %v1962 = vpop.f32.mrf.mxu0
  %v1963 = vadd.f32 %v1904, %v1962
  %1964 = vmatprep.mubr.bf16.mxu0 0
  %1965 = vmatmul.mubr.bf16.gmra.mxu0 %v1920
  %v1966 = vpop.f32.mrf.mxu0
  %v1967 = vadd.f32 %v1908, %v1966
  %v1968 = vpop.f32.mrf.mxu0
  %v1969 = vadd.f32 %v1910, %v1968
  %v1970 = vpop.f32.mrf.mxu0
  %v1971 = vadd.f32 %v1912, %v1970
  %v1972 = vpop.f32.mrf.mxu0
  %v1973 = vadd.f32 %v1914, %v1972
  %1974 = vdwg.mxu0
  %v1975 = vadd.f32 %v1957, %v1238
  %v1976 = vadd.f32 %v1959, %v1238
  %v1977 = vadd.f32 %v1961, %v1243
  %v1978 = vadd.f32 %v1963, %v1243
  %v1979 = vadd.f32 %v1967, %v1248
  %v1980 = vadd.f32 %v1969, %v1248
  %v1981 = vadd.f32 %v1971, %v1253
  %v1982 = vadd.f32 %v1973, %v1253
  %v1983 = vmax.f32 %v1975, 0.0
  %v1984 = vmax.f32 %v1976, 0.0
  %v1985 = vmax.f32 %v1977, 0.0
  %v1986 = vmax.f32 %v1978, 0.0
  %v1987 = vmax.f32 %v1979, 0.0
  %v1988 = vmax.f32 %v1980, 0.0
  %v1989 = vmax.f32 %v1981, 0.0
  %v1990 = vmax.f32 %v1982, 0.0
  %v1991 = vpack.c.bf16 %v32, %v31
  %v1992 = vpack.c.bf16 %v34, %v33
  %v1993 = vpack.c.bf16 %v1985, %v1983
  %v1994 = vpack.c.bf16 %v1986, %v1984
  %v1995 = vpack.c.bf16 %v1989, %v1987
  %v1996 = vpack.c.bf16 %v1990, %v1988
  %v1998 = vsel %vm154, %v1991, 0
  %v2001 = vsel %vm154, %v1992, 0
  %2003 = vmatprep.subr.bf16.mxu0 0
  %2004 = vmatpush1.bf16.msra.mxu0 0
  %2005 = vmatprep.subr.bf16.mxu0 0
  %2006 = vmatpush1.bf16.msra.mxu0 0
  %2007 = vmatprep.subr.bf16.mxu0 0
  %2008 = vmatpush1.bf16.msra.mxu0 0
  %2009 = vmatprep.subr.bf16.mxu0 0
  %2010 = vmatpush1.bf16.msra.mxu0 0
  %2011 = vmatprep.subr.bf16.mxu0 0
  %2012 = vmatpush1.bf16.msra.mxu0 0
  %2013 = vmatprep.subr.bf16.mxu0 0
  %2014 = vmatpush1.bf16.msra.mxu0 0
  %2015 = vmatprep.subr.bf16.mxu0 %v1996
  %2016 = vmatpush1.bf16.msra.mxu0 %v1995
  %2017 = vmatprep.subr.bf16.mxu0 %v1994
  %2018 = vmatpush1.bf16.msra.mxu0 %v1993
  %2019 = vmatprep.subr.bf16.mxu0 0
  %2020 = vmatpush2.bf16.msra.mxu0 0
  %2021 = vmatprep.subr.bf16.mxu0 0
  %2022 = vmatpush2.bf16.msra.mxu0 0
  %2023 = vmatprep.subr.bf16.mxu0 0
  %2024 = vmatpush2.bf16.msra.mxu0 0
  %2025 = vmatprep.subr.bf16.mxu0 0
  %2026 = vmatpush2.bf16.msra.mxu0 0
  %2027 = vmatprep.subr.bf16.mxu0 0
  %2028 = vmatpush2.bf16.msra.mxu0 0
  %2029 = vmatprep.subr.bf16.mxu0 0
  %2030 = vmatpush2.bf16.msra.mxu0 0
  %2031 = vmatprep.subr.bf16.mxu0 0
  %2032 = vmatpush2.bf16.msra.mxu0 0
  %2033 = vmatprep.subr.bf16.mxu0 0
  %2034 = vmatpush2.bf16.msra.mxu0 0
  %2035 = vmatprep.mubr.bf16.mxu0 0
  %2036 = vmatmul.mubr.bf16.gmra.mxu0 %v1998
  %v2037 = vpop.f32.mrf.mxu0
  %v2038 = vadd.f32 %v1258, %v2037
  %v2039 = vpop.f32.mrf.mxu0
  %v2040 = vadd.f32 %v1258, %v2039
  %v2041 = vpop.f32.mrf.mxu0
  %v2042 = vadd.f32 %v1263, %v2041
  %v2043 = vpop.f32.mrf.mxu0
  %v2044 = vadd.f32 %v1263, %v2043
  %2045 = vmatprep.mubr.bf16.mxu0 0
  %2046 = vmatmul.mubr.bf16.gmra.mxu0 %v2001
  %v2047 = vpop.f32.mrf.mxu0
  %v2048 = vadd.f32 %v1268, %v2047
  %v2049 = vpop.f32.mrf.mxu0
  %v2050 = vadd.f32 %v1268, %v2049
  %v2051 = vpop.f32.mrf.mxu0
  %v2052 = vadd.f32 %v1273, %v2051
  %v2053 = vpop.f32.mrf.mxu0
  %v2054 = vadd.f32 %v1273, %v2053
  %2055 = vdwg.mxu0
  %v2056 = vmax.f32 %v2038, 0.0
  %v2057 = vmax.f32 %v2040, 0.0
  %v2058 = vmax.f32 %v2042, 0.0
  %v2059 = vmax.f32 %v2044, 0.0
  %v2060 = vmax.f32 %v2048, 0.0
  %v2061 = vmax.f32 %v2050, 0.0
  %v2062 = vmax.f32 %v2052, 0.0
  %v2063 = vmax.f32 %v2054, 0.0
  %v2064 = vpack.c.bf16 %v36, %v35
  %v2065 = vpack.c.bf16 %v1766, %v1760
  %v2066 = vpack.c.bf16 %v1767, %v1761
  %v2067 = vpack.c.bf16 %v1768, %v1762
  %v2068 = vpack.c.bf16 %v1769, %v1763
  %v2069 = vpack.c.bf16 %v1770, %v1764
  %v2070 = vpack.c.bf16 %v1771, %v1765
  %v2072 = vsel %vm830, %v2064, 0
  %2074 = vmatprep.subr.bf16.mxu0 0
  %2075 = vmatpush1.bf16.msra.mxu0 0
  %2076 = vmatprep.subr.bf16.mxu0 0
  %2077 = vmatpush1.bf16.msra.mxu0 0
  %2078 = vmatprep.subr.bf16.mxu0 0
  %2079 = vmatpush1.bf16.msra.mxu0 0
  %2080 = vmatprep.subr.bf16.mxu0 0
  %2081 = vmatpush1.bf16.msra.mxu0 0
  %2082 = vmatprep.subr.bf16.mxu0 0
  %2083 = vmatpush1.bf16.msra.mxu0 0
  %2084 = vmatprep.subr.bf16.mxu0 0
  %2085 = vmatpush1.bf16.msra.mxu0 0
  %2086 = vmatprep.subr.bf16.mxu0 0
  %2087 = vmatpush1.bf16.msra.mxu0 0
  %2088 = vmatprep.subr.bf16.mxu0 %v2066
  %2089 = vmatpush1.bf16.msra.mxu0 %v2065
  %2090 = vmatprep.subr.bf16.mxu0 0
  %2091 = vmatpush2.bf16.msra.mxu0 0
  %2092 = vmatprep.subr.bf16.mxu0 0
  %2093 = vmatpush2.bf16.msra.mxu0 0
  %2094 = vmatprep.subr.bf16.mxu0 0
  %2095 = vmatpush2.bf16.msra.mxu0 0
  %2096 = vmatprep.subr.bf16.mxu0 0
  %2097 = vmatpush2.bf16.msra.mxu0 0
  %2098 = vmatprep.subr.bf16.mxu0 0
  %2099 = vmatpush2.bf16.msra.mxu0 0
  %2100 = vmatprep.subr.bf16.mxu0 0
  %2101 = vmatpush2.bf16.msra.mxu0 0
  %2102 = vmatprep.subr.bf16.mxu0 0
  %2103 = vmatpush2.bf16.msra.mxu0 0
  %2104 = vmatprep.subr.bf16.mxu0 0
  %2105 = vmatpush2.bf16.msra.mxu0 0
  %2106 = vmatprep.mubr.bf16.mxu0 0
  %2107 = vmatmul.mubr.bf16.gmra.mxu0 %v2072
  %v2108 = vpop.f32.mrf.mxu0
  %v2109 = vadd.f32 %v1278, %v2108
  %v2110 = vpop.f32.mrf.mxu0
  %v2111 = vadd.f32 %v1278, %v2110
  %v2112 = vpop.f32.mrf.mxu0
  %v2113 = vadd.f32 %v1283, %v2112
  %v2114 = vpop.f32.mrf.mxu0
  %v2115 = vadd.f32 %v1283, %v2114
  %2116 = vdwg.mxu0
  %2117 = vmatprep.subr.bf16.mxu0 0
  %2118 = vmatpush1.bf16.msra.mxu0 0
  %2119 = vmatprep.subr.bf16.mxu0 0
  %2120 = vmatpush1.bf16.msra.mxu0 0
  %2121 = vmatprep.subr.bf16.mxu0 0
  %2122 = vmatpush1.bf16.msra.mxu0 0
  %2123 = vmatprep.subr.bf16.mxu0 0
  %2124 = vmatpush1.bf16.msra.mxu0 0
  %2125 = vmatprep.subr.bf16.mxu0 0
  %2126 = vmatpush1.bf16.msra.mxu0 0
  %2127 = vmatprep.subr.bf16.mxu0 0
  %2128 = vmatpush1.bf16.msra.mxu0 0
  %2129 = vmatprep.subr.bf16.mxu0 0
  %2130 = vmatpush1.bf16.msra.mxu0 0
  %2131 = vmatprep.subr.bf16.mxu0 %v2068
  %2132 = vmatpush1.bf16.msra.mxu0 %v2067
  %2133 = vmatprep.subr.bf16.mxu0 0
  %2134 = vmatpush2.bf16.msra.mxu0 0
  %2135 = vmatprep.subr.bf16.mxu0 0
  %2136 = vmatpush2.bf16.msra.mxu0 0
  %2137 = vmatprep.subr.bf16.mxu0 0
  %2138 = vmatpush2.bf16.msra.mxu0 0
  %2139 = vmatprep.subr.bf16.mxu0 0
  %2140 = vmatpush2.bf16.msra.mxu0 0
  %2141 = vmatprep.subr.bf16.mxu0 0
  %2142 = vmatpush2.bf16.msra.mxu0 0
  %2143 = vmatprep.subr.bf16.mxu0 0
  %2144 = vmatpush2.bf16.msra.mxu0 0
  %2145 = vmatprep.subr.bf16.mxu0 0
  %2146 = vmatpush2.bf16.msra.mxu0 0
  %2147 = vmatprep.subr.bf16.mxu0 0
  %2148 = vmatpush2.bf16.msra.mxu0 0
  %2149 = vmatprep.mubr.bf16.mxu0 0
  %2150 = vmatmul.mubr.bf16.gmra.mxu0 %v2072
  %v2151 = vpop.f32.mrf.mxu0
  %v2152 = vadd.f32 %v1278, %v2151
  %v2153 = vpop.f32.mrf.mxu0
  %v2154 = vadd.f32 %v1278, %v2153
  %v2155 = vpop.f32.mrf.mxu0
  %v2156 = vadd.f32 %v1283, %v2155
  %v2157 = vpop.f32.mrf.mxu0
  %v2158 = vadd.f32 %v1283, %v2157
  %2159 = vdwg.mxu0
  %2160 = vmatprep.subr.bf16.mxu0 0
  %2161 = vmatpush1.bf16.msra.mxu0 0
  %2162 = vmatprep.subr.bf16.mxu0 0
  %2163 = vmatpush1.bf16.msra.mxu0 0
  %2164 = vmatprep.subr.bf16.mxu0 0
  %2165 = vmatpush1.bf16.msra.mxu0 0
  %2166 = vmatprep.subr.bf16.mxu0 0
  %2167 = vmatpush1.bf16.msra.mxu0 0
  %2168 = vmatprep.subr.bf16.mxu0 0
  %2169 = vmatpush1.bf16.msra.mxu0 0
  %2170 = vmatprep.subr.bf16.mxu0 0
  %2171 = vmatpush1.bf16.msra.mxu0 0
  %2172 = vmatprep.subr.bf16.mxu0 0
  %2173 = vmatpush1.bf16.msra.mxu0 0
  %2174 = vmatprep.subr.bf16.mxu0 %v2070
  %2175 = vmatpush1.bf16.msra.mxu0 %v2069
  %2176 = vmatprep.subr.bf16.mxu0 0
  %2177 = vmatpush2.bf16.msra.mxu0 0
  %2178 = vmatprep.subr.bf16.mxu0 0
  %2179 = vmatpush2.bf16.msra.mxu0 0
  %2180 = vmatprep.subr.bf16.mxu0 0
  %2181 = vmatpush2.bf16.msra.mxu0 0
  %2182 = vmatprep.subr.bf16.mxu0 0
  %2183 = vmatpush2.bf16.msra.mxu0 0
  %2184 = vmatprep.subr.bf16.mxu0 0
  %2185 = vmatpush2.bf16.msra.mxu0 0
  %2186 = vmatprep.subr.bf16.mxu0 0
  %2187 = vmatpush2.bf16.msra.mxu0 0
  %2188 = vmatprep.subr.bf16.mxu0 0
  %2189 = vmatpush2.bf16.msra.mxu0 0
  %2190 = vmatprep.subr.bf16.mxu0 0
  %2191 = vmatpush2.bf16.msra.mxu0 0
  %2192 = vmatprep.mubr.bf16.mxu0 0
  %2193 = vmatmul.mubr.bf16.gmra.mxu0 %v2072
  %v2194 = vpop.f32.mrf.mxu0
  %v2195 = vadd.f32 %v1278, %v2194
  %v2196 = vpop.f32.mrf.mxu0
  %v2197 = vadd.f32 %v1278, %v2196
  %v2198 = vpop.f32.mrf.mxu0
  %v2199 = vadd.f32 %v1283, %v2198
  %v2200 = vpop.f32.mrf.mxu0
  %v2201 = vadd.f32 %v1283, %v2200
  %2202 = vdwg.mxu0
  %v2203 = vmax.f32 %v2109, 0.0
  %v2204 = vmax.f32 %v2111, 0.0
  %v2205 = vmax.f32 %v2152, 0.0
  %v2206 = vmax.f32 %v2154, 0.0
  %v2207 = vmax.f32 %v2195, 0.0
  %v2208 = vmax.f32 %v2197, 0.0
  %v2209 = vmax.f32 %v2113, 0.0
  %v2210 = vmax.f32 %v2115, 0.0
  %v2211 = vmax.f32 %v2156, 0.0
  %v2212 = vmax.f32 %v2158, 0.0
  %v2213 = vmax.f32 %v2199, 0.0
  %v2214 = vmax.f32 %v2201, 0.0
  %v2215 = vpack.c.bf16 %v37, %v37
  %v2216 = vpack.c.bf16 %v2209, %v2203
  %v2217 = vpack.c.bf16 %v2210, %v2204
  %v2218 = vpack.c.bf16 %v2211, %v2205
  %v2219 = vpack.c.bf16 %v2212, %v2206
  %v2220 = vpack.c.bf16 %v2213, %v2207
  %v2221 = vpack.c.bf16 %v2214, %v2208
  %v2223 = vsel %vm830, %v2215, 0
  %2225 = vmatprep.subr.bf16.mxu0 0
  %2226 = vmatpush1.bf16.msra.mxu0 0
  %2227 = vmatprep.subr.bf16.mxu0 0
  %2228 = vmatpush1.bf16.msra.mxu0 0
  %2229 = vmatprep.subr.bf16.mxu0 0
  %2230 = vmatpush1.bf16.msra.mxu0 0
  %2231 = vmatprep.subr.bf16.mxu0 0
  %2232 = vmatpush1.bf16.msra.mxu0 0
  %2233 = vmatprep.subr.bf16.mxu0 0
  %2234 = vmatpush1.bf16.msra.mxu0 0
  %2235 = vmatprep.subr.bf16.mxu0 0
  %2236 = vmatpush1.bf16.msra.mxu0 0
  %2237 = vmatprep.subr.bf16.mxu0 0
  %2238 = vmatpush1.bf16.msra.mxu0 0
  %2239 = vmatprep.subr.bf16.mxu0 %v2217
  %2240 = vmatpush1.bf16.msra.mxu0 %v2216
  %2241 = vmatprep.subr.bf16.mxu0 0
  %2242 = vmatpush2.bf16.msra.mxu0 0
  %2243 = vmatprep.subr.bf16.mxu0 0
  %2244 = vmatpush2.bf16.msra.mxu0 0
  %2245 = vmatprep.subr.bf16.mxu0 0
  %2246 = vmatpush2.bf16.msra.mxu0 0
  %2247 = vmatprep.subr.bf16.mxu0 0
  %2248 = vmatpush2.bf16.msra.mxu0 0
  %2249 = vmatprep.subr.bf16.mxu0 0
  %2250 = vmatpush2.bf16.msra.mxu0 0
  %2251 = vmatprep.subr.bf16.mxu0 0
  %2252 = vmatpush2.bf16.msra.mxu0 0
  %2253 = vmatprep.subr.bf16.mxu0 0
  %2254 = vmatpush2.bf16.msra.mxu0 0
  %2255 = vmatprep.subr.bf16.mxu0 0
  %2256 = vmatpush2.bf16.msra.mxu0 0
  %2257 = vmatprep.mubr.bf16.mxu0 0
  %2258 = vmatmul.mubr.bf16.gmra.mxu0 %v2223
  %v2259 = vpop.f32.mrf.mxu0
  %v2260 = vadd.f32 %v1288, %v2259
  %v2261 = vpop.f32.mrf.mxu0
  %v2262 = vadd.f32 %v1288, %v2261
  %v2263 = vpop.f32.mrf.mxu0
  %v2264 = vpop.f32.mrf.mxu0
  %2265 = vdwg.mxu0
  %2266 = vmatprep.subr.bf16.mxu0 0
  %2267 = vmatpush1.bf16.msra.mxu0 0
  %2268 = vmatprep.subr.bf16.mxu0 0
  %2269 = vmatpush1.bf16.msra.mxu0 0
  %2270 = vmatprep.subr.bf16.mxu0 0
  %2271 = vmatpush1.bf16.msra.mxu0 0
  %2272 = vmatprep.subr.bf16.mxu0 0
  %2273 = vmatpush1.bf16.msra.mxu0 0
  %2274 = vmatprep.subr.bf16.mxu0 0
  %2275 = vmatpush1.bf16.msra.mxu0 0
  %2276 = vmatprep.subr.bf16.mxu0 0
  %2277 = vmatpush1.bf16.msra.mxu0 0
  %2278 = vmatprep.subr.bf16.mxu0 0
  %2279 = vmatpush1.bf16.msra.mxu0 0
  %2280 = vmatprep.subr.bf16.mxu0 %v2219
  %2281 = vmatpush1.bf16.msra.mxu0 %v2218
  %2282 = vmatprep.subr.bf16.mxu0 0
  %2283 = vmatpush2.bf16.msra.mxu0 0
  %2284 = vmatprep.subr.bf16.mxu0 0
  %2285 = vmatpush2.bf16.msra.mxu0 0
  %2286 = vmatprep.subr.bf16.mxu0 0
  %2287 = vmatpush2.bf16.msra.mxu0 0
  %2288 = vmatprep.subr.bf16.mxu0 0
  %2289 = vmatpush2.bf16.msra.mxu0 0
  %2290 = vmatprep.subr.bf16.mxu0 0
  %2291 = vmatpush2.bf16.msra.mxu0 0
  %2292 = vmatprep.subr.bf16.mxu0 0
  %2293 = vmatpush2.bf16.msra.mxu0 0
  %2294 = vmatprep.subr.bf16.mxu0 0
  %2295 = vmatpush2.bf16.msra.mxu0 0
  %2296 = vmatprep.subr.bf16.mxu0 0
  %2297 = vmatpush2.bf16.msra.mxu0 0
  %2298 = vmatprep.mubr.bf16.mxu0 0
  %2299 = vmatmul.mubr.bf16.gmra.mxu0 %v2223
  %v2300 = vpop.f32.mrf.mxu0
  %v2301 = vadd.f32 %v1288, %v2300
  %v2302 = vpop.f32.mrf.mxu0
  %v2303 = vadd.f32 %v1288, %v2302
  %v2304 = vpop.f32.mrf.mxu0
  %v2305 = vpop.f32.mrf.mxu0
  %2306 = vdwg.mxu0
  %2307 = vmatprep.subr.bf16.mxu0 0
  %2308 = vmatpush1.bf16.msra.mxu0 0
  %2309 = vmatprep.subr.bf16.mxu0 0
  %2310 = vmatpush1.bf16.msra.mxu0 0
  %2311 = vmatprep.subr.bf16.mxu0 0
  %2312 = vmatpush1.bf16.msra.mxu0 0
  %2313 = vmatprep.subr.bf16.mxu0 0
  %2314 = vmatpush1.bf16.msra.mxu0 0
  %2315 = vmatprep.subr.bf16.mxu0 0
  %2316 = vmatpush1.bf16.msra.mxu0 0
  %2317 = vmatprep.subr.bf16.mxu0 0
  %2318 = vmatpush1.bf16.msra.mxu0 0
  %2319 = vmatprep.subr.bf16.mxu0 0
  %2320 = vmatpush1.bf16.msra.mxu0 0
  %2321 = vmatprep.subr.bf16.mxu0 %v2221
  %2322 = vmatpush1.bf16.msra.mxu0 %v2220
  %2323 = vmatprep.subr.bf16.mxu0 0
  %2324 = vmatpush2.bf16.msra.mxu0 0
  %2325 = vmatprep.subr.bf16.mxu0 0
  %2326 = vmatpush2.bf16.msra.mxu0 0
  %2327 = vmatprep.subr.bf16.mxu0 0
  %2328 = vmatpush2.bf16.msra.mxu0 0
  %2329 = vmatprep.subr.bf16.mxu0 0
  %2330 = vmatpush2.bf16.msra.mxu0 0
  %2331 = vmatprep.subr.bf16.mxu0 0
  %2332 = vmatpush2.bf16.msra.mxu0 0
  %2333 = vmatprep.subr.bf16.mxu0 0
  %2334 = vmatpush2.bf16.msra.mxu0 0
  %2335 = vmatprep.subr.bf16.mxu0 0
  %2336 = vmatpush2.bf16.msra.mxu0 0
  %2337 = vmatprep.subr.bf16.mxu0 0
  %2338 = vmatpush2.bf16.msra.mxu0 0
  %2339 = vmatprep.mubr.bf16.mxu0 0
  %2340 = vmatmul.mubr.bf16.gmra.mxu0 %v2223
  %v2341 = vpop.f32.mrf.mxu0
  %v2342 = vadd.f32 %v1288, %v2341
  %v2343 = vpop.f32.mrf.mxu0
  %v2344 = vadd.f32 %v1288, %v2343
  %v2345 = vpop.f32.mrf.mxu0
  %v2346 = vpop.f32.mrf.mxu0
  %2347 = vdwg.mxu0
  %v2354 = vcombine.low %v2260, %v2262
  %v2355 = vcombine.low %v2301, %v2303
  %v2356 = vcombine.low %v2342, %v2344
  %v2358 = vunpack.c.l.s4 1966171168
  %v2359 = vunpack.c.0.s8 %v2358
  %v2360 = vlaneseq
  %v2361 = vshrl.u32 %v2360, 7
  %v2362 = vsub.s32 %v2359, %v2361
  %v2363 = vrot.slane %v2354, %v2362
  %v2365 = vunpack.c.l.s4 1966171168
  %v2366 = vunpack.c.0.s8 %v2365
  %v2367 = vlaneseq
  %v2368 = vshrl.u32 %v2367, 7
  %v2369 = vsub.s32 %v2366, %v2368
  %v2370 = vrot.slane %v2355, %v2369
  %v2372 = vunpack.c.l.s4 1966171168
  %v2373 = vunpack.c.0.s8 %v2372
  %v2374 = vlaneseq
  %v2375 = vshrl.u32 %v2374, 7
  %v2376 = vsub.s32 %v2373, %v2375
  %v2377 = vrot.slane %v2356, %v2376
  %v2378 = vcombine.low %v2363, %v2370
  %v2380 = vunpack.c.l.s4 1966171168
  %v2381 = vunpack.c.0.s8 %v2380
  %v2382 = vlaneseq
  %v2383 = vshrl.u32 %v2382, 7
  %v2384 = vsub.s32 %v2381, %v2383
  %v2385 = vrot.slane %v2378, %v2384
  %v2387 = vunpack.c.l.s4 1966171168
  %v2388 = vunpack.c.0.s8 %v2387
  %v2389 = vlaneseq
  %v2390 = vshrl.u32 %v2389, 7
  %v2391 = vsub.s32 %v2388, %v2390
  %v2392 = vrot.slane %v2377, %v2391
  %v2393 = vcombine.low %v2385, %v2392
  %v2395 = vlaneseq
  %vm2396 = vcmp.ge.s32.totalorder %v2395, 0
  %vm2397 = vcmp.lt.s32.totalorder %v2395, 768
  %vm2398 = vmand %vm2396, %vm2397
  %2399 = vst.msk [vmem:[%s3] ss:$4 sm:$0x3f] %vm2398, %v2393
  %v2400 = vpack.c.bf16 %v2058, %v2056
  %v2401 = vpack.c.bf16 %v2062, %v2060
  %2402 = vmatprep.subr.bf16.mxu0 0
  %2403 = vmatpush1.bf16.msra.mxu0 0
  %2404 = vmatprep.subr.bf16.mxu0 0
  %2405 = vmatpush1.bf16.msra.mxu0 0
  %2406 = vmatprep.subr.bf16.mxu0 0
  %2407 = vmatpush1.bf16.msra.mxu0 0
  %2408 = vmatprep.subr.bf16.mxu0 0
  %2409 = vmatpush1.bf16.msra.mxu0 0
  %2410 = vmatprep.subr.bf16.mxu0 0
  %2411 = vmatpush1.bf16.msra.mxu0 0
  %2412 = vmatprep.subr.bf16.mxu0 0
  %2413 = vmatpush1.bf16.msra.mxu0 0
  %2414 = vmatprep.subr.bf16.mxu0 0
  %2415 = vmatpush1.bf16.msra.mxu0 %v2401
  %2416 = vmatprep.subr.bf16.mxu0 0
  %2417 = vmatpush1.bf16.msra.mxu0 %v2400
  %2418 = vmatprep.subr.bf16.mxu0 0
  %2419 = vmatpush2.bf16.msra.mxu0 0
  %2420 = vmatprep.subr.bf16.mxu0 0
  %2421 = vmatpush2.bf16.msra.mxu0 0
  %2422 = vmatprep.subr.bf16.mxu0 0
  %2423 = vmatpush2.bf16.msra.mxu0 0
  %2424 = vmatprep.subr.bf16.mxu0 0
  %2425 = vmatpush2.bf16.msra.mxu0 0
  %2426 = vmatprep.subr.bf16.mxu0 0
  %2427 = vmatpush2.bf16.msra.mxu0 0
  %2428 = vmatprep.subr.bf16.mxu0 0
  %2429 = vmatpush2.bf16.msra.mxu0 0
  %2430 = vmatprep.subr.bf16.mxu0 0
  %2431 = vmatpush2.bf16.msra.mxu0 0
  %2432 = vmatprep.subr.bf16.mxu0 0
  %2433 = vmatpush2.bf16.msra.mxu0 0
  %2434 = vmatprep.mubr.bf16.mxu0 0
  %2435 = vmatmul.mubr.bf16.gmra.mxu0 %v1293
  %v2436 = vpop.f32.mrf.mxu0
  %v2437 = vadd.f32 0.0, %v2436
  %v2438 = vpop.f32.mrf.mxu0
  %v2439 = vpop.f32.mrf.mxu0
  %v2440 = vadd.f32 0.0, %v2439
  %v2441 = vpop.f32.mrf.mxu0
  %2442 = vdwg.mxu0
  %v2443 = vpack.c.bf16 %v2059, %v2057
  %v2444 = vpack.c.bf16 %v2063, %v2061
  %2449 = vrot.lane.b32.xlu0 %v2400, 122
  %v2450 = vpop.permute.xlu0 %2449
  %2451 = vrot.lane.b32.xlu0 %v2443, 122
  %v2452 = vpop.permute.xlu0 %2451
  %2453 = vrot.lane.b32.xlu0 %v2401, 122
  %v2454 = vpop.permute.xlu0 %2453
  %2455 = vrot.lane.b32.xlu0 %v2444, 122
  %v2456 = vpop.permute.xlu0 %2455
  %v2457 = vsel %vm1352, %v2450, %v2452
  %v2458 = vsel %vm1352, %v2454, %v2456
  %2461 = vmatprep.subr.bf16.mxu0 0
  %2462 = vmatpush1.bf16.msra.mxu0 0
  %2463 = vmatprep.subr.bf16.mxu0 0
  %2464 = vmatpush1.bf16.msra.mxu0 0
  %2465 = vmatprep.subr.bf16.mxu0 0
  %2466 = vmatpush1.bf16.msra.mxu0 0
  %2467 = vmatprep.subr.bf16.mxu0 0
  %2468 = vmatpush1.bf16.msra.mxu0 0
  %2469 = vmatprep.subr.bf16.mxu0 0
  %2470 = vmatpush1.bf16.msra.mxu0 0
  %2471 = vmatprep.subr.bf16.mxu0 0
  %2472 = vmatpush1.bf16.msra.mxu0 0
  %2473 = vmatprep.subr.bf16.mxu0 0
  %2474 = vmatpush1.bf16.msra.mxu0 %v2458
  %2475 = vmatprep.subr.bf16.mxu0 0
  %2476 = vmatpush1.bf16.msra.mxu0 %v2457
  %2477 = vmatprep.subr.bf16.mxu0 0
  %2478 = vmatpush2.bf16.msra.mxu0 0
  %2479 = vmatprep.subr.bf16.mxu0 0
  %2480 = vmatpush2.bf16.msra.mxu0 0
  %2481 = vmatprep.subr.bf16.mxu0 0
  %2482 = vmatpush2.bf16.msra.mxu0 0
  %2483 = vmatprep.subr.bf16.mxu0 0
  %2484 = vmatpush2.bf16.msra.mxu0 0
  %2485 = vmatprep.subr.bf16.mxu0 0
  %2486 = vmatpush2.bf16.msra.mxu0 0
  %2487 = vmatprep.subr.bf16.mxu0 0
  %2488 = vmatpush2.bf16.msra.mxu0 0
  %2489 = vmatprep.subr.bf16.mxu0 0
  %2490 = vmatpush2.bf16.msra.mxu0 0
  %2491 = vmatprep.subr.bf16.mxu0 0
  %2492 = vmatpush2.bf16.msra.mxu0 0
  %2493 = vmatprep.mubr.bf16.mxu0 0
  %2494 = vmatmul.mubr.bf16.gmra.mxu0 %v1358
  %v2495 = vpop.f32.mrf.mxu0
  %v2496 = vadd.f32 0.0, %v2495
  %v2497 = vpop.f32.mrf.mxu0
  %v2498 = vpop.f32.mrf.mxu0
  %v2499 = vadd.f32 0.0, %v2498
  %v2500 = vpop.f32.mrf.mxu0
  %2501 = vdwg.mxu0
  %2503 = vset.pattern.permute.xlu0 0
  %2504 = vperm.xlu0 %2503, %v2437
  %v2505 = vpop.permute.xlu0 %2504
  %2508 = vset.pattern.permute.xlu0 0
  %2509 = vperm.xlu0 %2508, %v2440
  %v2510 = vpop.permute.xlu0 %2509
  %v2512 = vadd.f32 %v2505, %v2496
  %v2513 = vadd.f32 %v2510, %v2499
  %2514 = vset.pattern.permute.xlu0 1
  %2515 = vperm.xlu0 %2514, %v2437
  %v2516 = vpop.permute.xlu0 %2515
  %2518 = vset.pattern.permute.xlu0 1
  %2519 = vperm.xlu0 %2518, %v2440
  %v2520 = vpop.permute.xlu0 %2519
  %v2522 = vadd.f32 %v2516, %v2496
  %v2523 = vadd.f32 %v2520, %v2499
  %2524 = vset.pattern.permute.xlu0 2
  %2525 = vperm.xlu0 %2524, %v2437
  %v2526 = vpop.permute.xlu0 %2525
  %2528 = vset.pattern.permute.xlu0 2
  %2529 = vperm.xlu0 %2528, %v2440
  %v2530 = vpop.permute.xlu0 %2529
  %v2532 = vadd.f32 %v2526, %v2496
  %v2533 = vadd.f32 %v2530, %v2499
  %2534 = vset.pattern.permute.xlu0 3
  %2535 = vperm.xlu0 %2534, %v2437
  %v2536 = vpop.permute.xlu0 %2535
  %2538 = vset.pattern.permute.xlu0 3
  %2539 = vperm.xlu0 %2538, %v2440
  %v2540 = vpop.permute.xlu0 %2539
  %v2542 = vadd.f32 %v2536, %v2496
  %v2543 = vadd.f32 %v2540, %v2499
  %2544 = vset.pattern.permute.xlu0 4
  %2545 = vperm.xlu0 %2544, %v2437
  %v2546 = vpop.permute.xlu0 %2545
  %2548 = vset.pattern.permute.xlu0 4
  %2549 = vperm.xlu0 %2548, %v2440
  %v2550 = vpop.permute.xlu0 %2549
  %v2552 = vadd.f32 %v2546, %v2496
  %v2553 = vadd.f32 %v2550, %v2499
  %2554 = vset.pattern.permute.xlu0 5
  %2555 = vperm.xlu0 %2554, %v2437
  %v2556 = vpop.permute.xlu0 %2555
  %2558 = vset.pattern.permute.xlu0 5
  %2559 = vperm.xlu0 %2558, %v2440
  %v2560 = vpop.permute.xlu0 %2559
  %v2562 = vadd.f32 %v2556, %v2496
  %v2563 = vadd.f32 %v2560, %v2499
  %2564 = vmatprep.subr.bf16.mxu0 0
  %2565 = vmatpush1.bf16.msra.mxu0 0
  %2566 = vmatprep.subr.bf16.mxu0 0
  %2567 = vmatpush1.bf16.msra.mxu0 0
  %2568 = vmatprep.subr.bf16.mxu0 0
  %2569 = vmatpush1.bf16.msra.mxu0 0
  %2570 = vmatprep.subr.bf16.mxu0 0
  %2571 = vmatpush1.bf16.msra.mxu0 0
  %2572 = vmatprep.subr.bf16.mxu0 0
  %2573 = vmatpush1.bf16.msra.mxu0 0
  %2574 = vmatprep.subr.bf16.mxu0 0
  %2575 = vmatpush1.bf16.msra.mxu0 0
  %2576 = vmatprep.subr.bf16.mxu0 0
  %2577 = vmatpush1.bf16.msra.mxu0 0
  %2578 = vmatprep.subr.bf16.mxu0 %v2066
  %2579 = vmatpush1.bf16.msra.mxu0 %v2065
  %2580 = vmatprep.subr.bf16.mxu0 0
  %2581 = vmatpush2.bf16.msra.mxu0 0
  %2582 = vmatprep.subr.bf16.mxu0 0
  %2583 = vmatpush2.bf16.msra.mxu0 0
  %2584 = vmatprep.subr.bf16.mxu0 0
  %2585 = vmatpush2.bf16.msra.mxu0 0
  %2586 = vmatprep.subr.bf16.mxu0 0
  %2587 = vmatpush2.bf16.msra.mxu0 0
  %2588 = vmatprep.subr.bf16.mxu0 0
  %2589 = vmatpush2.bf16.msra.mxu0 0
  %2590 = vmatprep.subr.bf16.mxu0 0
  %2591 = vmatpush2.bf16.msra.mxu0 0
  %2592 = vmatprep.subr.bf16.mxu0 0
  %2593 = vmatpush2.bf16.msra.mxu0 0
  %2594 = vmatprep.subr.bf16.mxu0 0
  %2595 = vmatpush2.bf16.msra.mxu0 0
  %2596 = vmatprep.mubr.bf16.mxu0 0
  %2597 = vmatmul.mubr.bf16.gmra.mxu0 %v1466
  %v2598 = vpop.f32.mrf.mxu0
  %v2599 = vadd.f32 %v1126, %v2598
  %v2600 = vpop.f32.mrf.mxu0
  %v2601 = vadd.f32 %v1128, %v2600
  %v2602 = vpop.f32.mrf.mxu0
  %v2603 = vadd.f32 %v1130, %v2602
  %v2604 = vpop.f32.mrf.mxu0
  %v2605 = vadd.f32 %v1132, %v2604
  %2606 = vdwg.mxu0
  %2607 = vmatprep.subr.bf16.mxu0 0
  %2608 = vmatpush1.bf16.msra.mxu0 0
  %2609 = vmatprep.subr.bf16.mxu0 0
  %2610 = vmatpush1.bf16.msra.mxu0 0
  %2611 = vmatprep.subr.bf16.mxu0 0
  %2612 = vmatpush1.bf16.msra.mxu0 0
  %2613 = vmatprep.subr.bf16.mxu0 0
  %2614 = vmatpush1.bf16.msra.mxu0 0
  %2615 = vmatprep.subr.bf16.mxu0 0
  %2616 = vmatpush1.bf16.msra.mxu0 0
  %2617 = vmatprep.subr.bf16.mxu0 0
  %2618 = vmatpush1.bf16.msra.mxu0 0
  %2619 = vmatprep.subr.bf16.mxu0 0
  %2620 = vmatpush1.bf16.msra.mxu0 0
  %2621 = vmatprep.subr.bf16.mxu0 %v2068
  %2622 = vmatpush1.bf16.msra.mxu0 %v2067
  %2623 = vmatprep.subr.bf16.mxu0 0
  %2624 = vmatpush2.bf16.msra.mxu0 0
  %2625 = vmatprep.subr.bf16.mxu0 0
  %2626 = vmatpush2.bf16.msra.mxu0 0
  %2627 = vmatprep.subr.bf16.mxu0 0
  %2628 = vmatpush2.bf16.msra.mxu0 0
  %2629 = vmatprep.subr.bf16.mxu0 0
  %2630 = vmatpush2.bf16.msra.mxu0 0
  %2631 = vmatprep.subr.bf16.mxu0 0
  %2632 = vmatpush2.bf16.msra.mxu0 0
  %2633 = vmatprep.subr.bf16.mxu0 0
  %2634 = vmatpush2.bf16.msra.mxu0 0
  %2635 = vmatprep.subr.bf16.mxu0 0
  %2636 = vmatpush2.bf16.msra.mxu0 0
  %2637 = vmatprep.subr.bf16.mxu0 0
  %2638 = vmatpush2.bf16.msra.mxu0 0
  %2639 = vmatprep.mubr.bf16.mxu0 0
  %2640 = vmatmul.mubr.bf16.gmra.mxu0 %v1466
  %v2641 = vpop.f32.mrf.mxu0
  %v2642 = vadd.f32 %v1169, %v2641
  %v2643 = vpop.f32.mrf.mxu0
  %v2644 = vadd.f32 %v1171, %v2643
  %v2645 = vpop.f32.mrf.mxu0
  %v2646 = vadd.f32 %v1173, %v2645
  %v2647 = vpop.f32.mrf.mxu0
  %v2648 = vadd.f32 %v1175, %v2647
  %2649 = vdwg.mxu0
  %2650 = vmatprep.subr.bf16.mxu0 0
  %2651 = vmatpush1.bf16.msra.mxu0 0
  %2652 = vmatprep.subr.bf16.mxu0 0
  %2653 = vmatpush1.bf16.msra.mxu0 0
  %2654 = vmatprep.subr.bf16.mxu0 0
  %2655 = vmatpush1.bf16.msra.mxu0 0
  %2656 = vmatprep.subr.bf16.mxu0 0
  %2657 = vmatpush1.bf16.msra.mxu0 0
  %2658 = vmatprep.subr.bf16.mxu0 0
  %2659 = vmatpush1.bf16.msra.mxu0 0
  %2660 = vmatprep.subr.bf16.mxu0 0
  %2661 = vmatpush1.bf16.msra.mxu0 0
  %2662 = vmatprep.subr.bf16.mxu0 0
  %2663 = vmatpush1.bf16.msra.mxu0 0
  %2664 = vmatprep.subr.bf16.mxu0 %v2070
  %2665 = vmatpush1.bf16.msra.mxu0 %v2069
  %2666 = vmatprep.subr.bf16.mxu0 0
  %2667 = vmatpush2.bf16.msra.mxu0 0
  %2668 = vmatprep.subr.bf16.mxu0 0
  %2669 = vmatpush2.bf16.msra.mxu0 0
  %2670 = vmatprep.subr.bf16.mxu0 0
  %2671 = vmatpush2.bf16.msra.mxu0 0
  %2672 = vmatprep.subr.bf16.mxu0 0
  %2673 = vmatpush2.bf16.msra.mxu0 0
  %2674 = vmatprep.subr.bf16.mxu0 0
  %2675 = vmatpush2.bf16.msra.mxu0 0
  %2676 = vmatprep.subr.bf16.mxu0 0
  %2677 = vmatpush2.bf16.msra.mxu0 0
  %2678 = vmatprep.subr.bf16.mxu0 0
  %2679 = vmatpush2.bf16.msra.mxu0 0
  %2680 = vmatprep.subr.bf16.mxu0 0
  %2681 = vmatpush2.bf16.msra.mxu0 0
  %2682 = vmatprep.mubr.bf16.mxu0 0
  %2683 = vmatmul.mubr.bf16.gmra.mxu0 %v1466
  %v2684 = vpop.f32.mrf.mxu0
  %v2685 = vadd.f32 %v1212, %v2684
  %v2686 = vpop.f32.mrf.mxu0
  %v2687 = vadd.f32 %v1214, %v2686
  %v2688 = vpop.f32.mrf.mxu0
  %v2689 = vadd.f32 %v1216, %v2688
  %v2690 = vpop.f32.mrf.mxu0
  %v2691 = vadd.f32 %v1218, %v2690
  %2692 = vdwg.mxu0
  %v2693 = vadd.f32 %v2599, %v2512
  %v2694 = vadd.f32 %v2601, %v2522
  %v2695 = vadd.f32 %v2642, %v2532
  %v2696 = vadd.f32 %v2644, %v2542
  %v2697 = vadd.f32 %v2685, %v2552
  %v2698 = vadd.f32 %v2687, %v2562
  %v2699 = vadd.f32 %v2603, %v2513
  %v2700 = vadd.f32 %v2605, %v2523
  %v2701 = vadd.f32 %v2646, %v2533
  %v2702 = vadd.f32 %v2648, %v2543
  %v2703 = vadd.f32 %v2689, %v2553
  %v2704 = vadd.f32 %v2691, %v2563
  %v2705 = vmax.f32 %v2693, 0.0
  %v2706 = vmax.f32 %v2694, 0.0
  %v2707 = vmax.f32 %v2695, 0.0
  %v2708 = vmax.f32 %v2696, 0.0
  %v2709 = vmax.f32 %v2697, 0.0
  %v2710 = vmax.f32 %v2698, 0.0
  %v2711 = vmax.f32 %v2699, 0.0
  %v2712 = vmax.f32 %v2700, 0.0
  %v2713 = vmax.f32 %v2701, 0.0
  %v2714 = vmax.f32 %v2702, 0.0
  %v2715 = vmax.f32 %v2703, 0.0
  %v2716 = vmax.f32 %v2704, 0.0
  %v2717 = vpack.c.bf16 %v2711, %v2705
  %v2718 = vpack.c.bf16 %v2712, %v2706
  %v2719 = vpack.c.bf16 %v2713, %v2707
  %v2720 = vpack.c.bf16 %v2714, %v2708
  %v2721 = vpack.c.bf16 %v2715, %v2709
  %v2722 = vpack.c.bf16 %v2716, %v2710
  %2723 = vmatprep.subr.bf16.mxu0 0
  %2724 = vmatpush1.bf16.msra.mxu0 0
  %2725 = vmatprep.subr.bf16.mxu0 0
  %2726 = vmatpush1.bf16.msra.mxu0 0
  %2727 = vmatprep.subr.bf16.mxu0 0
  %2728 = vmatpush1.bf16.msra.mxu0 0
  %2729 = vmatprep.subr.bf16.mxu0 0
  %2730 = vmatpush1.bf16.msra.mxu0 0
  %2731 = vmatprep.subr.bf16.mxu0 0
  %2732 = vmatpush1.bf16.msra.mxu0 0
  %2733 = vmatprep.subr.bf16.mxu0 0
  %2734 = vmatpush1.bf16.msra.mxu0 0
  %2735 = vmatprep.subr.bf16.mxu0 0
  %2736 = vmatpush1.bf16.msra.mxu0 0
  %2737 = vmatprep.subr.bf16.mxu0 %v2718
  %2738 = vmatpush1.bf16.msra.mxu0 %v2717
  %2739 = vmatprep.subr.bf16.mxu0 0
  %2740 = vmatpush2.bf16.msra.mxu0 0
  %2741 = vmatprep.subr.bf16.mxu0 0
  %2742 = vmatpush2.bf16.msra.mxu0 0
  %2743 = vmatprep.subr.bf16.mxu0 0
  %2744 = vmatpush2.bf16.msra.mxu0 0
  %2745 = vmatprep.subr.bf16.mxu0 0
  %2746 = vmatpush2.bf16.msra.mxu0 0
  %2747 = vmatprep.subr.bf16.mxu0 0
  %2748 = vmatpush2.bf16.msra.mxu0 0
  %2749 = vmatprep.subr.bf16.mxu0 0
  %2750 = vmatpush2.bf16.msra.mxu0 0
  %2751 = vmatprep.subr.bf16.mxu0 0
  %2752 = vmatpush2.bf16.msra.mxu0 0
  %2753 = vmatprep.subr.bf16.mxu0 0
  %2754 = vmatpush2.bf16.msra.mxu0 0
  %2755 = vmatprep.mubr.bf16.mxu0 0
  %2756 = vmatmul.mubr.bf16.gmra.mxu0 %v1629
  %v2757 = vpop.f32.mrf.mxu0
  %v2758 = vadd.f32 %v1228, %v2757
  %v2759 = vpop.f32.mrf.mxu0
  %v2760 = vadd.f32 %v1228, %v2759
  %v2761 = vpop.f32.mrf.mxu0
  %v2762 = vadd.f32 %v1233, %v2761
  %v2763 = vpop.f32.mrf.mxu0
  %v2764 = vadd.f32 %v1233, %v2763
  %2765 = vdwg.mxu0
  %2766 = vmatprep.subr.bf16.mxu0 0
  %2767 = vmatpush1.bf16.msra.mxu0 0
  %2768 = vmatprep.subr.bf16.mxu0 0
  %2769 = vmatpush1.bf16.msra.mxu0 0
  %2770 = vmatprep.subr.bf16.mxu0 0
  %2771 = vmatpush1.bf16.msra.mxu0 0
  %2772 = vmatprep.subr.bf16.mxu0 0
  %2773 = vmatpush1.bf16.msra.mxu0 0
  %2774 = vmatprep.subr.bf16.mxu0 0
  %2775 = vmatpush1.bf16.msra.mxu0 0
  %2776 = vmatprep.subr.bf16.mxu0 0
  %2777 = vmatpush1.bf16.msra.mxu0 0
  %2778 = vmatprep.subr.bf16.mxu0 0
  %2779 = vmatpush1.bf16.msra.mxu0 0
  %2780 = vmatprep.subr.bf16.mxu0 %v2720
  %2781 = vmatpush1.bf16.msra.mxu0 %v2719
  %2782 = vmatprep.subr.bf16.mxu0 0
  %2783 = vmatpush2.bf16.msra.mxu0 0
  %2784 = vmatprep.subr.bf16.mxu0 0
  %2785 = vmatpush2.bf16.msra.mxu0 0
  %2786 = vmatprep.subr.bf16.mxu0 0
  %2787 = vmatpush2.bf16.msra.mxu0 0
  %2788 = vmatprep.subr.bf16.mxu0 0
  %2789 = vmatpush2.bf16.msra.mxu0 0
  %2790 = vmatprep.subr.bf16.mxu0 0
  %2791 = vmatpush2.bf16.msra.mxu0 0
  %2792 = vmatprep.subr.bf16.mxu0 0
  %2793 = vmatpush2.bf16.msra.mxu0 0
  %2794 = vmatprep.subr.bf16.mxu0 0
  %2795 = vmatpush2.bf16.msra.mxu0 0
  %2796 = vmatprep.subr.bf16.mxu0 0
  %2797 = vmatpush2.bf16.msra.mxu0 0
  %2798 = vmatprep.mubr.bf16.mxu0 0
  %2799 = vmatmul.mubr.bf16.gmra.mxu0 %v1629
  %v2800 = vpop.f32.mrf.mxu0
  %v2801 = vadd.f32 %v1228, %v2800
  %v2802 = vpop.f32.mrf.mxu0
  %v2803 = vadd.f32 %v1228, %v2802
  %v2804 = vpop.f32.mrf.mxu0
  %v2805 = vadd.f32 %v1233, %v2804
  %v2806 = vpop.f32.mrf.mxu0
  %v2807 = vadd.f32 %v1233, %v2806
  %2808 = vdwg.mxu0
  %2809 = vmatprep.subr.bf16.mxu0 0
  %2810 = vmatpush1.bf16.msra.mxu0 0
  %2811 = vmatprep.subr.bf16.mxu0 0
  %2812 = vmatpush1.bf16.msra.mxu0 0
  %2813 = vmatprep.subr.bf16.mxu0 0
  %2814 = vmatpush1.bf16.msra.mxu0 0
  %2815 = vmatprep.subr.bf16.mxu0 0
  %2816 = vmatpush1.bf16.msra.mxu0 0
  %2817 = vmatprep.subr.bf16.mxu0 0
  %2818 = vmatpush1.bf16.msra.mxu0 0
  %2819 = vmatprep.subr.bf16.mxu0 0
  %2820 = vmatpush1.bf16.msra.mxu0 0
  %2821 = vmatprep.subr.bf16.mxu0 0
  %2822 = vmatpush1.bf16.msra.mxu0 0
  %2823 = vmatprep.subr.bf16.mxu0 %v2722
  %2824 = vmatpush1.bf16.msra.mxu0 %v2721
  %2825 = vmatprep.subr.bf16.mxu0 0
  %2826 = vmatpush2.bf16.msra.mxu0 0
  %2827 = vmatprep.subr.bf16.mxu0 0
  %2828 = vmatpush2.bf16.msra.mxu0 0
  %2829 = vmatprep.subr.bf16.mxu0 0
  %2830 = vmatpush2.bf16.msra.mxu0 0
  %2831 = vmatprep.subr.bf16.mxu0 0
  %2832 = vmatpush2.bf16.msra.mxu0 0
  %2833 = vmatprep.subr.bf16.mxu0 0
  %2834 = vmatpush2.bf16.msra.mxu0 0
  %2835 = vmatprep.subr.bf16.mxu0 0
  %2836 = vmatpush2.bf16.msra.mxu0 0
  %2837 = vmatprep.subr.bf16.mxu0 0
  %2838 = vmatpush2.bf16.msra.mxu0 0
  %2839 = vmatprep.subr.bf16.mxu0 0
  %2840 = vmatpush2.bf16.msra.mxu0 0
  %2841 = vmatprep.mubr.bf16.mxu0 0
  %2842 = vmatmul.mubr.bf16.gmra.mxu0 %v1629
  %v2843 = vpop.f32.mrf.mxu0
  %v2844 = vadd.f32 %v1228, %v2843
  %v2845 = vpop.f32.mrf.mxu0
  %v2846 = vadd.f32 %v1228, %v2845
  %v2847 = vpop.f32.mrf.mxu0
  %v2848 = vadd.f32 %v1233, %v2847
  %v2849 = vpop.f32.mrf.mxu0
  %v2850 = vadd.f32 %v1233, %v2849
  %2851 = vdwg.mxu0
  %v2852 = vmax.f32 %v2758, 0.0
  %v2853 = vmax.f32 %v2760, 0.0
  %v2854 = vmax.f32 %v2801, 0.0
  %v2855 = vmax.f32 %v2803, 0.0
  %v2856 = vmax.f32 %v2844, 0.0
  %v2857 = vmax.f32 %v2846, 0.0
  %v2858 = vmax.f32 %v2762, 0.0
  %v2859 = vmax.f32 %v2764, 0.0
  %v2860 = vmax.f32 %v2805, 0.0
  %v2861 = vmax.f32 %v2807, 0.0
  %v2862 = vmax.f32 %v2848, 0.0
  %v2863 = vmax.f32 %v2850, 0.0
  %v2864 = vmul.f32 %v2852, %v1775
  %v2865 = vmul.f32 %v2853, %v1775
  %v2866 = vmul.f32 %v2854, %v1775
  %v2867 = vmul.f32 %v2855, %v1775
  %v2868 = vmul.f32 %v2856, %v1775
  %v2869 = vmul.f32 %v2857, %v1775
  %v2870 = vmul.f32 %v2858, %v1775
  %v2871 = vmul.f32 %v2859, %v1775
  %v2872 = vmul.f32 %v2860, %v1775
  %v2873 = vmul.f32 %v2861, %v1775
  %v2874 = vmul.f32 %v2862, %v1775
  %v2875 = vmul.f32 %v2863, %v1775
  %2876 = vadd.xlane.f32.xlu0 %v2864
  %v2877 = vpop.xlane.xlu0 %2876
  %2878 = vadd.xlane.f32.xlu0 %v2870
  %v2879 = vpop.xlane.xlu0 %2878
  %2880 = vadd.xlane.f32.xlu0 %v2865
  %v2881 = vpop.xlane.xlu0 %2880
  %2882 = vadd.xlane.f32.xlu0 %v2871
  %v2883 = vpop.xlane.xlu0 %2882
  %2884 = vadd.xlane.f32.xlu0 %v2866
  %v2885 = vpop.xlane.xlu0 %2884
  %2886 = vadd.xlane.f32.xlu0 %v2872
  %v2887 = vpop.xlane.xlu0 %2886
  %2888 = vadd.xlane.f32.xlu0 %v2867
  %v2889 = vpop.xlane.xlu0 %2888
  %2890 = vadd.xlane.f32.xlu0 %v2873
  %v2891 = vpop.xlane.xlu0 %2890
  %2892 = vadd.xlane.f32.xlu0 %v2868
  %v2893 = vpop.xlane.xlu0 %2892
  %2894 = vadd.xlane.f32.xlu0 %v2874
  %v2895 = vpop.xlane.xlu0 %2894
  %2896 = vadd.xlane.f32.xlu0 %v2869
  %v2897 = vpop.xlane.xlu0 %2896
  %2898 = vadd.xlane.f32.xlu0 %v2875
  %v2899 = vpop.xlane.xlu0 %2898
  %v2900 = vsel %vm1812, %v2877, %v2881
  %v2901 = vsel %vm1812, %v2879, %v2883
  %v2902 = vsel %vm1815, %v2900, %v2885
  %v2903 = vsel %vm1815, %v2901, %v2887
  %v2904 = vsel %vm1818, %v2902, %v2889
  %v2905 = vsel %vm1818, %v2903, %v2891
  %v2906 = vsel %vm1821, %v2904, %v2893
  %v2907 = vsel %vm1821, %v2905, %v2895
  %v2908 = vsel %vm1824, %v2906, %v2897
  %v2909 = vsel %vm1824, %v2907, %v2899
  %v2910 = vadd.f32 %v2864, %v2865
  %v2911 = vadd.f32 %v2870, %v2871
  %v2912 = vadd.f32 %v2910, %v2866
  %v2913 = vadd.f32 %v2911, %v2872
  %v2914 = vadd.f32 %v2912, %v2867
  %v2915 = vadd.f32 %v2913, %v2873
  %v2916 = vadd.f32 %v2914, %v2868
  %v2917 = vadd.f32 %v2915, %v2874
  %v2918 = vadd.f32 %v2916, %v2869
  %v2919 = vadd.f32 %v2917, %v2875
  %2922 = vrot.lane.b32.xlu0 %v2918, 6
  %v2923 = vpop.permute.xlu0 %2922
  %2924 = vrot.lane.b32.xlu0 %v2919, 6
  %v2925 = vpop.permute.xlu0 %2924
  %v2928 = vsel %vm95, %v2908, %v2923
  %v2929 = vsel %vm95, %v2909, %v2925
  %v2930 = vpack.c.bf16 %v2929, %v2928
  %v2931 = vpack.c.bf16 %v2925, %v2923
  %2932 = vmatprep.subr.bf16.mxu0 0
  %2933 = vmatpush1.bf16.msra.mxu0 0
  %2934 = vmatprep.subr.bf16.mxu0 0
  %2935 = vmatpush1.bf16.msra.mxu0 0
  %2936 = vmatprep.subr.bf16.mxu0 0
  %2937 = vmatpush1.bf16.msra.mxu0 0
  %2938 = vmatprep.subr.bf16.mxu0 0
  %2939 = vmatpush1.bf16.msra.mxu0 0
  %2940 = vmatprep.subr.bf16.mxu0 0
  %2941 = vmatpush1.bf16.msra.mxu0 0
  %2942 = vmatprep.subr.bf16.mxu0 0
  %2943 = vmatpush1.bf16.msra.mxu0 0
  %2944 = vmatprep.subr.bf16.mxu0 0
  %2945 = vmatpush1.bf16.msra.mxu0 0
  %2946 = vmatprep.subr.bf16.mxu0 %v2931
  %2947 = vmatpush1.bf16.msra.mxu0 %v2930
  %2948 = vmatprep.subr.bf16.mxu0 0
  %2949 = vmatpush2.bf16.msra.mxu0 0
  %2950 = vmatprep.subr.bf16.mxu0 0
  %2951 = vmatpush2.bf16.msra.mxu0 0
  %2952 = vmatprep.subr.bf16.mxu0 0
  %2953 = vmatpush2.bf16.msra.mxu0 0
  %2954 = vmatprep.subr.bf16.mxu0 0
  %2955 = vmatpush2.bf16.msra.mxu0 0
  %2956 = vmatprep.subr.bf16.mxu0 0
  %2957 = vmatpush2.bf16.msra.mxu0 0
  %2958 = vmatprep.subr.bf16.mxu0 0
  %2959 = vmatpush2.bf16.msra.mxu0 0
  %2960 = vmatprep.subr.bf16.mxu0 0
  %2961 = vmatpush2.bf16.msra.mxu0 0
  %2962 = vmatprep.subr.bf16.mxu0 0
  %2963 = vmatpush2.bf16.msra.mxu0 0
  %2964 = vmatprep.mubr.bf16.mxu0 0
  %2965 = vmatmul.mubr.bf16.gmra.mxu0 %v1858
  %v2966 = vpop.f32.mrf.mxu0
  %v2967 = vadd.f32 0.0, %v2966
  %v2968 = vpop.f32.mrf.mxu0
  %v2969 = vadd.f32 0.0, %v2968
  %v2970 = vpop.f32.mrf.mxu0
  %v2971 = vadd.f32 0.0, %v2970
  %v2972 = vpop.f32.mrf.mxu0
  %v2973 = vadd.f32 0.0, %v2972
  %2974 = vmatprep.mubr.bf16.mxu0 0
  %2975 = vmatmul.mubr.bf16.gmra.mxu0 %v1861
  %v2976 = vpop.f32.mrf.mxu0
  %v2977 = vadd.f32 0.0, %v2976
  %v2978 = vpop.f32.mrf.mxu0
  %v2979 = vadd.f32 0.0, %v2978
  %v2980 = vpop.f32.mrf.mxu0
  %v2981 = vadd.f32 0.0, %v2980
  %v2982 = vpop.f32.mrf.mxu0
  %v2983 = vadd.f32 0.0, %v2982
  %2984 = vdwg.mxu0
  %2985 = vmatprep.subr.bf16.mxu0 0
  %2986 = vmatpush1.bf16.msra.mxu0 0
  %2987 = vmatprep.subr.bf16.mxu0 0
  %2988 = vmatpush1.bf16.msra.mxu0 0
  %2989 = vmatprep.subr.bf16.mxu0 0
  %2990 = vmatpush1.bf16.msra.mxu0 0
  %2991 = vmatprep.subr.bf16.mxu0 0
  %2992 = vmatpush1.bf16.msra.mxu0 0
  %2993 = vmatprep.subr.bf16.mxu0 0
  %2994 = vmatpush1.bf16.msra.mxu0 0
  %2995 = vmatprep.subr.bf16.mxu0 0
  %2996 = vmatpush1.bf16.msra.mxu0 0
  %2997 = vmatprep.subr.bf16.mxu0 %v2444
  %2998 = vmatpush1.bf16.msra.mxu0 %v2401
  %2999 = vmatprep.subr.bf16.mxu0 %v2443
  %3000 = vmatpush1.bf16.msra.mxu0 %v2400
  %3001 = vmatprep.subr.bf16.mxu0 0
  %3002 = vmatpush2.bf16.msra.mxu0 0
  %3003 = vmatprep.subr.bf16.mxu0 0
  %3004 = vmatpush2.bf16.msra.mxu0 0
  %3005 = vmatprep.subr.bf16.mxu0 0
  %3006 = vmatpush2.bf16.msra.mxu0 0
  %3007 = vmatprep.subr.bf16.mxu0 0
  %3008 = vmatpush2.bf16.msra.mxu0 0
  %3009 = vmatprep.subr.bf16.mxu0 0
  %3010 = vmatpush2.bf16.msra.mxu0 0
  %3011 = vmatprep.subr.bf16.mxu0 0
  %3012 = vmatpush2.bf16.msra.mxu0 0
  %3013 = vmatprep.subr.bf16.mxu0 0
  %3014 = vmatpush2.bf16.msra.mxu0 0
  %3015 = vmatprep.subr.bf16.mxu0 0
  %3016 = vmatpush2.bf16.msra.mxu0 0
  %3017 = vmatprep.mubr.bf16.mxu0 0
  %3018 = vmatmul.mubr.bf16.gmra.mxu0 %v1917
  %v3019 = vpop.f32.mrf.mxu0
  %v3020 = vadd.f32 %v2967, %v3019
  %v3021 = vpop.f32.mrf.mxu0
  %v3022 = vadd.f32 %v2969, %v3021
  %v3023 = vpop.f32.mrf.mxu0
  %v3024 = vadd.f32 %v2971, %v3023
  %v3025 = vpop.f32.mrf.mxu0
  %v3026 = vadd.f32 %v2973, %v3025
  %3027 = vmatprep.mubr.bf16.mxu0 0
  %3028 = vmatmul.mubr.bf16.gmra.mxu0 %v1920
  %v3029 = vpop.f32.mrf.mxu0
  %v3030 = vadd.f32 %v2977, %v3029
  %v3031 = vpop.f32.mrf.mxu0
  %v3032 = vadd.f32 %v2979, %v3031
  %v3033 = vpop.f32.mrf.mxu0
  %v3034 = vadd.f32 %v2981, %v3033
  %v3035 = vpop.f32.mrf.mxu0
  %v3036 = vadd.f32 %v2983, %v3035
  %3037 = vdwg.mxu0
  %v3038 = vadd.f32 %v3020, %v1238
  %v3039 = vadd.f32 %v3022, %v1238
  %v3040 = vadd.f32 %v3024, %v1243
  %v3041 = vadd.f32 %v3026, %v1243
  %v3042 = vadd.f32 %v3030, %v1248
  %v3043 = vadd.f32 %v3032, %v1248
  %v3044 = vadd.f32 %v3034, %v1253
  %v3045 = vadd.f32 %v3036, %v1253
  %v3046 = vmax.f32 %v3038, 0.0
  %v3047 = vmax.f32 %v3039, 0.0
  %v3048 = vmax.f32 %v3040, 0.0
  %v3049 = vmax.f32 %v3041, 0.0
  %v3050 = vmax.f32 %v3042, 0.0
  %v3051 = vmax.f32 %v3043, 0.0
  %v3052 = vmax.f32 %v3044, 0.0
  %v3053 = vmax.f32 %v3045, 0.0
  %v3054 = vpack.c.bf16 %v3048, %v3046
  %v3055 = vpack.c.bf16 %v3049, %v3047
  %v3056 = vpack.c.bf16 %v3052, %v3050
  %v3057 = vpack.c.bf16 %v3053, %v3051
  %3058 = vmatprep.subr.bf16.mxu0 0
  %3059 = vmatpush1.bf16.msra.mxu0 0
  %3060 = vmatprep.subr.bf16.mxu0 0
  %3061 = vmatpush1.bf16.msra.mxu0 0
  %3062 = vmatprep.subr.bf16.mxu0 0
  %3063 = vmatpush1.bf16.msra.mxu0 0
  %3064 = vmatprep.subr.bf16.mxu0 0
  %3065 = vmatpush1.bf16.msra.mxu0 0
  %3066 = vmatprep.subr.bf16.mxu0 0
  %3067 = vmatpush1.bf16.msra.mxu0 0
  %3068 = vmatprep.subr.bf16.mxu0 0
  %3069 = vmatpush1.bf16.msra.mxu0 0
  %3070 = vmatprep.subr.bf16.mxu0 %v3057
  %3071 = vmatpush1.bf16.msra.mxu0 %v3056
  %3072 = vmatprep.subr.bf16.mxu0 %v3055
  %3073 = vmatpush1.bf16.msra.mxu0 %v3054
  %3074 = vmatprep.subr.bf16.mxu0 0
  %3075 = vmatpush2.bf16.msra.mxu0 0
  %3076 = vmatprep.subr.bf16.mxu0 0
  %3077 = vmatpush2.bf16.msra.mxu0 0
  %3078 = vmatprep.subr.bf16.mxu0 0
  %3079 = vmatpush2.bf16.msra.mxu0 0
  %3080 = vmatprep.subr.bf16.mxu0 0
  %3081 = vmatpush2.bf16.msra.mxu0 0
  %3082 = vmatprep.subr.bf16.mxu0 0
  %3083 = vmatpush2.bf16.msra.mxu0 0
  %3084 = vmatprep.subr.bf16.mxu0 0
  %3085 = vmatpush2.bf16.msra.mxu0 0
  %3086 = vmatprep.subr.bf16.mxu0 0
  %3087 = vmatpush2.bf16.msra.mxu0 0
  %3088 = vmatprep.subr.bf16.mxu0 0
  %3089 = vmatpush2.bf16.msra.mxu0 0
  %3090 = vmatprep.mubr.bf16.mxu0 0
  %3091 = vmatmul.mubr.bf16.gmra.mxu0 %v1998
  %v3092 = vpop.f32.mrf.mxu0
  %v3093 = vadd.f32 %v1258, %v3092
  %v3094 = vpop.f32.mrf.mxu0
  %v3095 = vadd.f32 %v1258, %v3094
  %v3096 = vpop.f32.mrf.mxu0
  %v3097 = vadd.f32 %v1263, %v3096
  %v3098 = vpop.f32.mrf.mxu0
  %v3099 = vadd.f32 %v1263, %v3098
  %3100 = vmatprep.mubr.bf16.mxu0 0
  %3101 = vmatmul.mubr.bf16.gmra.mxu0 %v2001
  %v3102 = vpop.f32.mrf.mxu0
  %v3103 = vadd.f32 %v1268, %v3102
  %v3104 = vpop.f32.mrf.mxu0
  %v3105 = vadd.f32 %v1268, %v3104
  %v3106 = vpop.f32.mrf.mxu0
  %v3107 = vadd.f32 %v1273, %v3106
  %v3108 = vpop.f32.mrf.mxu0
  %v3109 = vadd.f32 %v1273, %v3108
  %3110 = vdwg.mxu0
  %v3111 = vmax.f32 %v3093, 0.0
  %v3112 = vmax.f32 %v3095, 0.0
  %v3113 = vmax.f32 %v3097, 0.0
  %v3114 = vmax.f32 %v3099, 0.0
  %v3115 = vmax.f32 %v3103, 0.0
  %v3116 = vmax.f32 %v3105, 0.0
  %v3117 = vmax.f32 %v3107, 0.0
  %v3118 = vmax.f32 %v3109, 0.0
  %v3119 = vpack.c.bf16 %v2858, %v2852
  %v3120 = vpack.c.bf16 %v2859, %v2853
  %v3121 = vpack.c.bf16 %v2860, %v2854
  %v3122 = vpack.c.bf16 %v2861, %v2855
  %v3123 = vpack.c.bf16 %v2862, %v2856
  %v3124 = vpack.c.bf16 %v2863, %v2857
  %3125 = vmatprep.subr.bf16.mxu0 0
  %3126 = vmatpush1.bf16.msra.mxu0 0
  %3127 = vmatprep.subr.bf16.mxu0 0
  %3128 = vmatpush1.bf16.msra.mxu0 0
  %3129 = vmatprep.subr.bf16.mxu0 0
  %3130 = vmatpush1.bf16.msra.mxu0 0
  %3131 = vmatprep.subr.bf16.mxu0 0
  %3132 = vmatpush1.bf16.msra.mxu0 0
  %3133 = vmatprep.subr.bf16.mxu0 0
  %3134 = vmatpush1.bf16.msra.mxu0 0
  %3135 = vmatprep.subr.bf16.mxu0 0
  %3136 = vmatpush1.bf16.msra.mxu0 0
  %3137 = vmatprep.subr.bf16.mxu0 0
  %3138 = vmatpush1.bf16.msra.mxu0 0
  %3139 = vmatprep.subr.bf16.mxu0 %v3120
  %3140 = vmatpush1.bf16.msra.mxu0 %v3119
  %3141 = vmatprep.subr.bf16.mxu0 0
  %3142 = vmatpush2.bf16.msra.mxu0 0
  %3143 = vmatprep.subr.bf16.mxu0 0
  %3144 = vmatpush2.bf16.msra.mxu0 0
  %3145 = vmatprep.subr.bf16.mxu0 0
  %3146 = vmatpush2.bf16.msra.mxu0 0
  %3147 = vmatprep.subr.bf16.mxu0 0
  %3148 = vmatpush2.bf16.msra.mxu0 0
  %3149 = vmatprep.subr.bf16.mxu0 0
  %3150 = vmatpush2.bf16.msra.mxu0 0
  %3151 = vmatprep.subr.bf16.mxu0 0
  %3152 = vmatpush2.bf16.msra.mxu0 0
  %3153 = vmatprep.subr.bf16.mxu0 0
  %3154 = vmatpush2.bf16.msra.mxu0 0
  %3155 = vmatprep.subr.bf16.mxu0 0
  %3156 = vmatpush2.bf16.msra.mxu0 0
  %3157 = vmatprep.mubr.bf16.mxu0 0
  %3158 = vmatmul.mubr.bf16.gmra.mxu0 %v2072
  %v3159 = vpop.f32.mrf.mxu0
  %v3160 = vadd.f32 %v1278, %v3159
  %v3161 = vpop.f32.mrf.mxu0
  %v3162 = vadd.f32 %v1278, %v3161
  %v3163 = vpop.f32.mrf.mxu0
  %v3164 = vadd.f32 %v1283, %v3163
  %v3165 = vpop.f32.mrf.mxu0
  %v3166 = vadd.f32 %v1283, %v3165
  %3167 = vdwg.mxu0
  %3168 = vmatprep.subr.bf16.mxu0 0
  %3169 = vmatpush1.bf16.msra.mxu0 0
  %3170 = vmatprep.subr.bf16.mxu0 0
  %3171 = vmatpush1.bf16.msra.mxu0 0
  %3172 = vmatprep.subr.bf16.mxu0 0
  %3173 = vmatpush1.bf16.msra.mxu0 0
  %3174 = vmatprep.subr.bf16.mxu0 0
  %3175 = vmatpush1.bf16.msra.mxu0 0
  %3176 = vmatprep.subr.bf16.mxu0 0
  %3177 = vmatpush1.bf16.msra.mxu0 0
  %3178 = vmatprep.subr.bf16.mxu0 0
  %3179 = vmatpush1.bf16.msra.mxu0 0
  %3180 = vmatprep.subr.bf16.mxu0 0
  %3181 = vmatpush1.bf16.msra.mxu0 0
  %3182 = vmatprep.subr.bf16.mxu0 %v3122
  %3183 = vmatpush1.bf16.msra.mxu0 %v3121
  %3184 = vmatprep.subr.bf16.mxu0 0
  %3185 = vmatpush2.bf16.msra.mxu0 0
  %3186 = vmatprep.subr.bf16.mxu0 0
  %3187 = vmatpush2.bf16.msra.mxu0 0
  %3188 = vmatprep.subr.bf16.mxu0 0
  %3189 = vmatpush2.bf16.msra.mxu0 0
  %3190 = vmatprep.subr.bf16.mxu0 0
  %3191 = vmatpush2.bf16.msra.mxu0 0
  %3192 = vmatprep.subr.bf16.mxu0 0
  %3193 = vmatpush2.bf16.msra.mxu0 0
  %3194 = vmatprep.subr.bf16.mxu0 0
  %3195 = vmatpush2.bf16.msra.mxu0 0
  %3196 = vmatprep.subr.bf16.mxu0 0
  %3197 = vmatpush2.bf16.msra.mxu0 0
  %3198 = vmatprep.subr.bf16.mxu0 0
  %3199 = vmatpush2.bf16.msra.mxu0 0
  %3200 = vmatprep.mubr.bf16.mxu0 0
  %3201 = vmatmul.mubr.bf16.gmra.mxu0 %v2072
  %v3202 = vpop.f32.mrf.mxu0
  %v3203 = vadd.f32 %v1278, %v3202
  %v3204 = vpop.f32.mrf.mxu0
  %v3205 = vadd.f32 %v1278, %v3204
  %v3206 = vpop.f32.mrf.mxu0
  %v3207 = vadd.f32 %v1283, %v3206
  %v3208 = vpop.f32.mrf.mxu0
  %v3209 = vadd.f32 %v1283, %v3208
  %3210 = vdwg.mxu0
  %3211 = vmatprep.subr.bf16.mxu0 0
  %3212 = vmatpush1.bf16.msra.mxu0 0
  %3213 = vmatprep.subr.bf16.mxu0 0
  %3214 = vmatpush1.bf16.msra.mxu0 0
  %3215 = vmatprep.subr.bf16.mxu0 0
  %3216 = vmatpush1.bf16.msra.mxu0 0
  %3217 = vmatprep.subr.bf16.mxu0 0
  %3218 = vmatpush1.bf16.msra.mxu0 0
  %3219 = vmatprep.subr.bf16.mxu0 0
  %3220 = vmatpush1.bf16.msra.mxu0 0
  %3221 = vmatprep.subr.bf16.mxu0 0
  %3222 = vmatpush1.bf16.msra.mxu0 0
  %3223 = vmatprep.subr.bf16.mxu0 0
  %3224 = vmatpush1.bf16.msra.mxu0 0
  %3225 = vmatprep.subr.bf16.mxu0 %v3124
  %3226 = vmatpush1.bf16.msra.mxu0 %v3123
  %3227 = vmatprep.subr.bf16.mxu0 0
  %3228 = vmatpush2.bf16.msra.mxu0 0
  %3229 = vmatprep.subr.bf16.mxu0 0
  %3230 = vmatpush2.bf16.msra.mxu0 0
  %3231 = vmatprep.subr.bf16.mxu0 0
  %3232 = vmatpush2.bf16.msra.mxu0 0
  %3233 = vmatprep.subr.bf16.mxu0 0
  %3234 = vmatpush2.bf16.msra.mxu0 0
  %3235 = vmatprep.subr.bf16.mxu0 0
  %3236 = vmatpush2.bf16.msra.mxu0 0
  %3237 = vmatprep.subr.bf16.mxu0 0
  %3238 = vmatpush2.bf16.msra.mxu0 0
  %3239 = vmatprep.subr.bf16.mxu0 0
  %3240 = vmatpush2.bf16.msra.mxu0 0
  %3241 = vmatprep.subr.bf16.mxu0 0
  %3242 = vmatpush2.bf16.msra.mxu0 0
  %3243 = vmatprep.mubr.bf16.mxu0 0
  %3244 = vmatmul.mubr.bf16.gmra.mxu0 %v2072
  %v3245 = vpop.f32.mrf.mxu0
  %v3246 = vadd.f32 %v1278, %v3245
  %v3247 = vpop.f32.mrf.mxu0
  %v3248 = vadd.f32 %v1278, %v3247
  %v3249 = vpop.f32.mrf.mxu0
  %v3250 = vadd.f32 %v1283, %v3249
  %v3251 = vpop.f32.mrf.mxu0
  %v3252 = vadd.f32 %v1283, %v3251
  %3253 = vdwg.mxu0
  %v3254 = vmax.f32 %v3160, 0.0
  %v3255 = vmax.f32 %v3162, 0.0
  %v3256 = vmax.f32 %v3203, 0.0
  %v3257 = vmax.f32 %v3205, 0.0
  %v3258 = vmax.f32 %v3246, 0.0
  %v3259 = vmax.f32 %v3248, 0.0
  %v3260 = vmax.f32 %v3164, 0.0
  %v3261 = vmax.f32 %v3166, 0.0
  %v3262 = vmax.f32 %v3207, 0.0
  %v3263 = vmax.f32 %v3209, 0.0
  %v3264 = vmax.f32 %v3250, 0.0
  %v3265 = vmax.f32 %v3252, 0.0
  %v3266 = vpack.c.bf16 %v3260, %v3254
  %v3267 = vpack.c.bf16 %v3261, %v3255
  %v3268 = vpack.c.bf16 %v3262, %v3256
  %v3269 = vpack.c.bf16 %v3263, %v3257
  %v3270 = vpack.c.bf16 %v3264, %v3258
  %v3271 = vpack.c.bf16 %v3265, %v3259
  %3272 = vmatprep.subr.bf16.mxu0 0
  %3273 = vmatpush1.bf16.msra.mxu0 0
  %3274 = vmatprep.subr.bf16.mxu0 0
  %3275 = vmatpush1.bf16.msra.mxu0 0
  %3276 = vmatprep.subr.bf16.mxu0 0
  %3277 = vmatpush1.bf16.msra.mxu0 0
  %3278 = vmatprep.subr.bf16.mxu0 0
  %3279 = vmatpush1.bf16.msra.mxu0 0
  %3280 = vmatprep.subr.bf16.mxu0 0
  %3281 = vmatpush1.bf16.msra.mxu0 0
  %3282 = vmatprep.subr.bf16.mxu0 0
  %3283 = vmatpush1.bf16.msra.mxu0 0
  %3284 = vmatprep.subr.bf16.mxu0 0
  %3285 = vmatpush1.bf16.msra.mxu0 0
  %3286 = vmatprep.subr.bf16.mxu0 %v3267
  %3287 = vmatpush1.bf16.msra.mxu0 %v3266
  %3288 = vmatprep.subr.bf16.mxu0 0
  %3289 = vmatpush2.bf16.msra.mxu0 0
  %3290 = vmatprep.subr.bf16.mxu0 0
  %3291 = vmatpush2.bf16.msra.mxu0 0
  %3292 = vmatprep.subr.bf16.mxu0 0
  %3293 = vmatpush2.bf16.msra.mxu0 0
  %3294 = vmatprep.subr.bf16.mxu0 0
  %3295 = vmatpush2.bf16.msra.mxu0 0
  %3296 = vmatprep.subr.bf16.mxu0 0
  %3297 = vmatpush2.bf16.msra.mxu0 0
  %3298 = vmatprep.subr.bf16.mxu0 0
  %3299 = vmatpush2.bf16.msra.mxu0 0
  %3300 = vmatprep.subr.bf16.mxu0 0
  %3301 = vmatpush2.bf16.msra.mxu0 0
  %3302 = vmatprep.subr.bf16.mxu0 0
  %3303 = vmatpush2.bf16.msra.mxu0 0
  %3304 = vmatprep.mubr.bf16.mxu0 0
  %3305 = vmatmul.mubr.bf16.gmra.mxu0 %v2223
  %v3306 = vpop.f32.mrf.mxu0
  %v3307 = vadd.f32 %v1288, %v3306
  %v3308 = vpop.f32.mrf.mxu0
  %v3309 = vadd.f32 %v1288, %v3308
  %v3310 = vpop.f32.mrf.mxu0
  %v3311 = vpop.f32.mrf.mxu0
  %3312 = vdwg.mxu0
  %3313 = vmatprep.subr.bf16.mxu0 0
  %3314 = vmatpush1.bf16.msra.mxu0 0
  %3315 = vmatprep.subr.bf16.mxu0 0
  %3316 = vmatpush1.bf16.msra.mxu0 0
  %3317 = vmatprep.subr.bf16.mxu0 0
  %3318 = vmatpush1.bf16.msra.mxu0 0
  %3319 = vmatprep.subr.bf16.mxu0 0
  %3320 = vmatpush1.bf16.msra.mxu0 0
  %3321 = vmatprep.subr.bf16.mxu0 0
  %3322 = vmatpush1.bf16.msra.mxu0 0
  %3323 = vmatprep.subr.bf16.mxu0 0
  %3324 = vmatpush1.bf16.msra.mxu0 0
  %3325 = vmatprep.subr.bf16.mxu0 0
  %3326 = vmatpush1.bf16.msra.mxu0 0
  %3327 = vmatprep.subr.bf16.mxu0 %v3269
  %3328 = vmatpush1.bf16.msra.mxu0 %v3268
  %3329 = vmatprep.subr.bf16.mxu0 0
  %3330 = vmatpush2.bf16.msra.mxu0 0
  %3331 = vmatprep.subr.bf16.mxu0 0
  %3332 = vmatpush2.bf16.msra.mxu0 0
  %3333 = vmatprep.subr.bf16.mxu0 0
  %3334 = vmatpush2.bf16.msra.mxu0 0
  %3335 = vmatprep.subr.bf16.mxu0 0
  %3336 = vmatpush2.bf16.msra.mxu0 0
  %3337 = vmatprep.subr.bf16.mxu0 0
  %3338 = vmatpush2.bf16.msra.mxu0 0
  %3339 = vmatprep.subr.bf16.mxu0 0
  %3340 = vmatpush2.bf16.msra.mxu0 0
  %3341 = vmatprep.subr.bf16.mxu0 0
  %3342 = vmatpush2.bf16.msra.mxu0 0
  %3343 = vmatprep.subr.bf16.mxu0 0
  %3344 = vmatpush2.bf16.msra.mxu0 0
  %3345 = vmatprep.mubr.bf16.mxu0 0
  %3346 = vmatmul.mubr.bf16.gmra.mxu0 %v2223
  %v3347 = vpop.f32.mrf.mxu0
  %v3348 = vadd.f32 %v1288, %v3347
  %v3349 = vpop.f32.mrf.mxu0
  %v3350 = vadd.f32 %v1288, %v3349
  %v3351 = vpop.f32.mrf.mxu0
  %v3352 = vpop.f32.mrf.mxu0
  %3353 = vdwg.mxu0
  %3354 = vmatprep.subr.bf16.mxu0 0
  %3355 = vmatpush1.bf16.msra.mxu0 0
  %3356 = vmatprep.subr.bf16.mxu0 0
  %3357 = vmatpush1.bf16.msra.mxu0 0
  %3358 = vmatprep.subr.bf16.mxu0 0
  %3359 = vmatpush1.bf16.msra.mxu0 0
  %3360 = vmatprep.subr.bf16.mxu0 0
  %3361 = vmatpush1.bf16.msra.mxu0 0
  %3362 = vmatprep.subr.bf16.mxu0 0
  %3363 = vmatpush1.bf16.msra.mxu0 0
  %3364 = vmatprep.subr.bf16.mxu0 0
  %3365 = vmatpush1.bf16.msra.mxu0 0
  %3366 = vmatprep.subr.bf16.mxu0 0
  %3367 = vmatpush1.bf16.msra.mxu0 0
  %3368 = vmatprep.subr.bf16.mxu0 %v3271
  %3369 = vmatpush1.bf16.msra.mxu0 %v3270
  %3370 = vmatprep.subr.bf16.mxu0 0
  %3371 = vmatpush2.bf16.msra.mxu0 0
  %3372 = vmatprep.subr.bf16.mxu0 0
  %3373 = vmatpush2.bf16.msra.mxu0 0
  %3374 = vmatprep.subr.bf16.mxu0 0
  %3375 = vmatpush2.bf16.msra.mxu0 0
  %3376 = vmatprep.subr.bf16.mxu0 0
  %3377 = vmatpush2.bf16.msra.mxu0 0
  %3378 = vmatprep.subr.bf16.mxu0 0
  %3379 = vmatpush2.bf16.msra.mxu0 0
  %3380 = vmatprep.subr.bf16.mxu0 0
  %3381 = vmatpush2.bf16.msra.mxu0 0
  %3382 = vmatprep.subr.bf16.mxu0 0
  %3383 = vmatpush2.bf16.msra.mxu0 0
  %3384 = vmatprep.subr.bf16.mxu0 0
  %3385 = vmatpush2.bf16.msra.mxu0 0
  %3386 = vmatprep.mubr.bf16.mxu0 0
  %3387 = vmatmul.mubr.bf16.gmra.mxu0 %v2223
  %v3388 = vpop.f32.mrf.mxu0
  %v3389 = vadd.f32 %v1288, %v3388
  %v3390 = vpop.f32.mrf.mxu0
  %v3391 = vadd.f32 %v1288, %v3390
  %v3392 = vpop.f32.mrf.mxu0
  %v3393 = vpop.f32.mrf.mxu0
  %3394 = vdwg.mxu0
  %v3401 = vcombine.low %v3307, %v3309
  %v3402 = vcombine.low %v3348, %v3350
  %v3403 = vcombine.low %v3389, %v3391
  %v3405 = vunpack.c.l.s4 1966171168
  %v3406 = vunpack.c.0.s8 %v3405
  %v3407 = vlaneseq
  %v3408 = vshrl.u32 %v3407, 7
  %v3409 = vsub.s32 %v3406, %v3408
  %v3410 = vrot.slane %v3401, %v3409
  %v3412 = vunpack.c.l.s4 1966171168
  %v3413 = vunpack.c.0.s8 %v3412
  %v3414 = vlaneseq
  %v3415 = vshrl.u32 %v3414, 7
  %v3416 = vsub.s32 %v3413, %v3415
  %v3417 = vrot.slane %v3402, %v3416
  %v3419 = vunpack.c.l.s4 1966171168
  %v3420 = vunpack.c.0.s8 %v3419
  %v3421 = vlaneseq
  %v3422 = vshrl.u32 %v3421, 7
  %v3423 = vsub.s32 %v3420, %v3422
  %v3424 = vrot.slane %v3403, %v3423
  %v3425 = vcombine.low %v3410, %v3417
  %v3427 = vunpack.c.l.s4 1966171168
  %v3428 = vunpack.c.0.s8 %v3427
  %v3429 = vlaneseq
  %v3430 = vshrl.u32 %v3429, 7
  %v3431 = vsub.s32 %v3428, %v3430
  %v3432 = vrot.slane %v3425, %v3431
  %v3434 = vunpack.c.l.s4 1966171168
  %v3435 = vunpack.c.0.s8 %v3434
  %v3436 = vlaneseq
  %v3437 = vshrl.u32 %v3436, 7
  %v3438 = vsub.s32 %v3435, %v3437
  %v3439 = vrot.slane %v3424, %v3438
  %v3440 = vcombine.low %v3432, %v3439
  %s3442 = scalar_lea.vmem %s3, 1
  %3443 = vst.msk [vmem:[%s3442] ss:$4 sm:$0x3f] %vm2398, %v3440
  %v3444 = vpack.c.bf16 %v3113, %v3111
  %v3445 = vpack.c.bf16 %v3117, %v3115
  %3446 = vmatprep.subr.bf16.mxu0 0
  %3447 = vmatpush1.bf16.msra.mxu0 0
  %3448 = vmatprep.subr.bf16.mxu0 0
  %3449 = vmatpush1.bf16.msra.mxu0 0
  %3450 = vmatprep.subr.bf16.mxu0 0
  %3451 = vmatpush1.bf16.msra.mxu0 0
  %3452 = vmatprep.subr.bf16.mxu0 0
  %3453 = vmatpush1.bf16.msra.mxu0 0
  %3454 = vmatprep.subr.bf16.mxu0 0
  %3455 = vmatpush1.bf16.msra.mxu0 0
  %3456 = vmatprep.subr.bf16.mxu0 0
  %3457 = vmatpush1.bf16.msra.mxu0 0
  %3458 = vmatprep.subr.bf16.mxu0 0
  %3459 = vmatpush1.bf16.msra.mxu0 %v3445
  %3460 = vmatprep.subr.bf16.mxu0 0
  %3461 = vmatpush1.bf16.msra.mxu0 %v3444
  %3462 = vmatprep.subr.bf16.mxu0 0
  %3463 = vmatpush2.bf16.msra.mxu0 0
  %3464 = vmatprep.subr.bf16.mxu0 0
  %3465 = vmatpush2.bf16.msra.mxu0 0
  %3466 = vmatprep.subr.bf16.mxu0 0
  %3467 = vmatpush2.bf16.msra.mxu0 0
  %3468 = vmatprep.subr.bf16.mxu0 0
  %3469 = vmatpush2.bf16.msra.mxu0 0
  %3470 = vmatprep.subr.bf16.mxu0 0
  %3471 = vmatpush2.bf16.msra.mxu0 0
  %3472 = vmatprep.subr.bf16.mxu0 0
  %3473 = vmatpush2.bf16.msra.mxu0 0
  %3474 = vmatprep.subr.bf16.mxu0 0
  %3475 = vmatpush2.bf16.msra.mxu0 0
  %3476 = vmatprep.subr.bf16.mxu0 0
  %3477 = vmatpush2.bf16.msra.mxu0 0
  %3478 = vmatprep.mubr.bf16.mxu0 0
  %3479 = vmatmul.mubr.bf16.gmra.mxu0 %v1293
  %v3480 = vpop.f32.mrf.mxu0
  %v3481 = vadd.f32 0.0, %v3480
  %v3482 = vpop.f32.mrf.mxu0
  %v3483 = vpop.f32.mrf.mxu0
  %v3484 = vadd.f32 0.0, %v3483
  %v3485 = vpop.f32.mrf.mxu0
  %3486 = vdwg.mxu0
  %v3487 = vpack.c.bf16 %v3114, %v3112
  %v3488 = vpack.c.bf16 %v3118, %v3116
  %3493 = vrot.lane.b32.xlu0 %v3444, 122
  %v3494 = vpop.permute.xlu0 %3493
  %3495 = vrot.lane.b32.xlu0 %v3487, 122
  %v3496 = vpop.permute.xlu0 %3495
  %3497 = vrot.lane.b32.xlu0 %v3445, 122
  %v3498 = vpop.permute.xlu0 %3497
  %3499 = vrot.lane.b32.xlu0 %v3488, 122
  %v3500 = vpop.permute.xlu0 %3499
  %v3501 = vsel %vm1352, %v3494, %v3496
  %v3502 = vsel %vm1352, %v3498, %v3500
  %3505 = vmatprep.subr.bf16.mxu0 0
  %3506 = vmatpush1.bf16.msra.mxu0 0
  %3507 = vmatprep.subr.bf16.mxu0 0
  %3508 = vmatpush1.bf16.msra.mxu0 0
  %3509 = vmatprep.subr.bf16.mxu0 0
  %3510 = vmatpush1.bf16.msra.mxu0 0
  %3511 = vmatprep.subr.bf16.mxu0 0
  %3512 = vmatpush1.bf16.msra.mxu0 0
  %3513 = vmatprep.subr.bf16.mxu0 0
  %3514 = vmatpush1.bf16.msra.mxu0 0
  %3515 = vmatprep.subr.bf16.mxu0 0
  %3516 = vmatpush1.bf16.msra.mxu0 0
  %3517 = vmatprep.subr.bf16.mxu0 0
  %3518 = vmatpush1.bf16.msra.mxu0 %v3502
  %3519 = vmatprep.subr.bf16.mxu0 0
  %3520 = vmatpush1.bf16.msra.mxu0 %v3501
  %3521 = vmatprep.subr.bf16.mxu0 0
  %3522 = vmatpush2.bf16.msra.mxu0 0
  %3523 = vmatprep.subr.bf16.mxu0 0
  %3524 = vmatpush2.bf16.msra.mxu0 0
  %3525 = vmatprep.subr.bf16.mxu0 0
  %3526 = vmatpush2.bf16.msra.mxu0 0
  %3527 = vmatprep.subr.bf16.mxu0 0
  %3528 = vmatpush2.bf16.msra.mxu0 0
  %3529 = vmatprep.subr.bf16.mxu0 0
  %3530 = vmatpush2.bf16.msra.mxu0 0
  %3531 = vmatprep.subr.bf16.mxu0 0
  %3532 = vmatpush2.bf16.msra.mxu0 0
  %3533 = vmatprep.subr.bf16.mxu0 0
  %3534 = vmatpush2.bf16.msra.mxu0 0
  %3535 = vmatprep.subr.bf16.mxu0 0
  %3536 = vmatpush2.bf16.msra.mxu0 0
  %3537 = vmatprep.mubr.bf16.mxu0 0
  %3538 = vmatmul.mubr.bf16.gmra.mxu0 %v1358
  %v3539 = vpop.f32.mrf.mxu0
  %v3540 = vadd.f32 0.0, %v3539
  %v3541 = vpop.f32.mrf.mxu0
  %v3542 = vpop.f32.mrf.mxu0
  %v3543 = vadd.f32 0.0, %v3542
  %v3544 = vpop.f32.mrf.mxu0
  %3545 = vdwg.mxu0
  %3547 = vset.pattern.permute.xlu0 0
  %3548 = vperm.xlu0 %3547, %v3481
  %v3549 = vpop.permute.xlu0 %3548
  %3552 = vset.pattern.permute.xlu0 0
  %3553 = vperm.xlu0 %3552, %v3484
  %v3554 = vpop.permute.xlu0 %3553
  %v3556 = vadd.f32 %v3549, %v3540
  %v3557 = vadd.f32 %v3554, %v3543
  %3558 = vset.pattern.permute.xlu0 1
  %3559 = vperm.xlu0 %3558, %v3481
  %v3560 = vpop.permute.xlu0 %3559
  %3562 = vset.pattern.permute.xlu0 1
  %3563 = vperm.xlu0 %3562, %v3484
  %v3564 = vpop.permute.xlu0 %3563
  %v3566 = vadd.f32 %v3560, %v3540
  %v3567 = vadd.f32 %v3564, %v3543
  %3568 = vset.pattern.permute.xlu0 2
  %3569 = vperm.xlu0 %3568, %v3481
  %v3570 = vpop.permute.xlu0 %3569
  %3572 = vset.pattern.permute.xlu0 2
  %3573 = vperm.xlu0 %3572, %v3484
  %v3574 = vpop.permute.xlu0 %3573
  %v3576 = vadd.f32 %v3570, %v3540
  %v3577 = vadd.f32 %v3574, %v3543
  %3578 = vset.pattern.permute.xlu0 3
  %3579 = vperm.xlu0 %3578, %v3481
  %v3580 = vpop.permute.xlu0 %3579
  %3582 = vset.pattern.permute.xlu0 3
  %3583 = vperm.xlu0 %3582, %v3484
  %v3584 = vpop.permute.xlu0 %3583
  %v3586 = vadd.f32 %v3580, %v3540
  %v3587 = vadd.f32 %v3584, %v3543
  %3588 = vset.pattern.permute.xlu0 4
  %3589 = vperm.xlu0 %3588, %v3481
  %v3590 = vpop.permute.xlu0 %3589
  %3592 = vset.pattern.permute.xlu0 4
  %3593 = vperm.xlu0 %3592, %v3484
  %v3594 = vpop.permute.xlu0 %3593
  %v3596 = vadd.f32 %v3590, %v3540
  %v3597 = vadd.f32 %v3594, %v3543
  %3598 = vset.pattern.permute.xlu0 5
  %3599 = vperm.xlu0 %3598, %v3481
  %v3600 = vpop.permute.xlu0 %3599
  %3602 = vset.pattern.permute.xlu0 5
  %3603 = vperm.xlu0 %3602, %v3484
  %v3604 = vpop.permute.xlu0 %3603
  %v3606 = vadd.f32 %v3600, %v3540
  %v3607 = vadd.f32 %v3604, %v3543
  %3608 = vmatprep.subr.bf16.mxu0 0
  %3609 = vmatpush1.bf16.msra.mxu0 0
  %3610 = vmatprep.subr.bf16.mxu0 0
  %3611 = vmatpush1.bf16.msra.mxu0 0
  %3612 = vmatprep.subr.bf16.mxu0 0
  %3613 = vmatpush1.bf16.msra.mxu0 0
  %3614 = vmatprep.subr.bf16.mxu0 0
  %3615 = vmatpush1.bf16.msra.mxu0 0
  %3616 = vmatprep.subr.bf16.mxu0 0
  %3617 = vmatpush1.bf16.msra.mxu0 0
  %3618 = vmatprep.subr.bf16.mxu0 0
  %3619 = vmatpush1.bf16.msra.mxu0 0
  %3620 = vmatprep.subr.bf16.mxu0 0
  %3621 = vmatpush1.bf16.msra.mxu0 0
  %3622 = vmatprep.subr.bf16.mxu0 %v3120
  %3623 = vmatpush1.bf16.msra.mxu0 %v3119
  %3624 = vmatprep.subr.bf16.mxu0 0
  %3625 = vmatpush2.bf16.msra.mxu0 0
  %3626 = vmatprep.subr.bf16.mxu0 0
  %3627 = vmatpush2.bf16.msra.mxu0 0
  %3628 = vmatprep.subr.bf16.mxu0 0
  %3629 = vmatpush2.bf16.msra.mxu0 0
  %3630 = vmatprep.subr.bf16.mxu0 0
  %3631 = vmatpush2.bf16.msra.mxu0 0
  %3632 = vmatprep.subr.bf16.mxu0 0
  %3633 = vmatpush2.bf16.msra.mxu0 0
  %3634 = vmatprep.subr.bf16.mxu0 0
  %3635 = vmatpush2.bf16.msra.mxu0 0
  %3636 = vmatprep.subr.bf16.mxu0 0
  %3637 = vmatpush2.bf16.msra.mxu0 0
  %3638 = vmatprep.subr.bf16.mxu0 0
  %3639 = vmatpush2.bf16.msra.mxu0 0
  %3640 = vmatprep.mubr.bf16.mxu0 0
  %3641 = vmatmul.mubr.bf16.gmra.mxu0 %v1466
  %v3642 = vpop.f32.mrf.mxu0
  %v3643 = vadd.f32 %v1126, %v3642
  %v3644 = vpop.f32.mrf.mxu0
  %v3645 = vadd.f32 %v1128, %v3644
  %v3646 = vpop.f32.mrf.mxu0
  %v3647 = vadd.f32 %v1130, %v3646
  %v3648 = vpop.f32.mrf.mxu0
  %v3649 = vadd.f32 %v1132, %v3648
  %3650 = vdwg.mxu0
  %3651 = vmatprep.subr.bf16.mxu0 0
  %3652 = vmatpush1.bf16.msra.mxu0 0
  %3653 = vmatprep.subr.bf16.mxu0 0
  %3654 = vmatpush1.bf16.msra.mxu0 0
  %3655 = vmatprep.subr.bf16.mxu0 0
  %3656 = vmatpush1.bf16.msra.mxu0 0
  %3657 = vmatprep.subr.bf16.mxu0 0
  %3658 = vmatpush1.bf16.msra.mxu0 0
  %3659 = vmatprep.subr.bf16.mxu0 0
  %3660 = vmatpush1.bf16.msra.mxu0 0
  %3661 = vmatprep.subr.bf16.mxu0 0
  %3662 = vmatpush1.bf16.msra.mxu0 0
  %3663 = vmatprep.subr.bf16.mxu0 0
  %3664 = vmatpush1.bf16.msra.mxu0 0
  %3665 = vmatprep.subr.bf16.mxu0 %v3122
  %3666 = vmatpush1.bf16.msra.mxu0 %v3121
  %3667 = vmatprep.subr.bf16.mxu0 0
  %3668 = vmatpush2.bf16.msra.mxu0 0
  %3669 = vmatprep.subr.bf16.mxu0 0
  %3670 = vmatpush2.bf16.msra.mxu0 0
  %3671 = vmatprep.subr.bf16.mxu0 0
  %3672 = vmatpush2.bf16.msra.mxu0 0
  %3673 = vmatprep.subr.bf16.mxu0 0
  %3674 = vmatpush2.bf16.msra.mxu0 0
  %3675 = vmatprep.subr.bf16.mxu0 0
  %3676 = vmatpush2.bf16.msra.mxu0 0
  %3677 = vmatprep.subr.bf16.mxu0 0
  %3678 = vmatpush2.bf16.msra.mxu0 0
  %3679 = vmatprep.subr.bf16.mxu0 0
  %3680 = vmatpush2.bf16.msra.mxu0 0
  %3681 = vmatprep.subr.bf16.mxu0 0
  %3682 = vmatpush2.bf16.msra.mxu0 0
  %3683 = vmatprep.mubr.bf16.mxu0 0
  %3684 = vmatmul.mubr.bf16.gmra.mxu0 %v1466
  %v3685 = vpop.f32.mrf.mxu0
  %v3686 = vadd.f32 %v1169, %v3685
  %v3687 = vpop.f32.mrf.mxu0
  %v3688 = vadd.f32 %v1171, %v3687
  %v3689 = vpop.f32.mrf.mxu0
  %v3690 = vadd.f32 %v1173, %v3689
  %v3691 = vpop.f32.mrf.mxu0
  %v3692 = vadd.f32 %v1175, %v3691
  %3693 = vdwg.mxu0
  %3694 = vmatprep.subr.bf16.mxu0 0
  %3695 = vmatpush1.bf16.msra.mxu0 0
  %3696 = vmatprep.subr.bf16.mxu0 0
  %3697 = vmatpush1.bf16.msra.mxu0 0
  %3698 = vmatprep.subr.bf16.mxu0 0
  %3699 = vmatpush1.bf16.msra.mxu0 0
  %3700 = vmatprep.subr.bf16.mxu0 0
  %3701 = vmatpush1.bf16.msra.mxu0 0
  %3702 = vmatprep.subr.bf16.mxu0 0
  %3703 = vmatpush1.bf16.msra.mxu0 0
  %3704 = vmatprep.subr.bf16.mxu0 0
  %3705 = vmatpush1.bf16.msra.mxu0 0
  %3706 = vmatprep.subr.bf16.mxu0 0
  %3707 = vmatpush1.bf16.msra.mxu0 0
  %3708 = vmatprep.subr.bf16.mxu0 %v3124
  %3709 = vmatpush1.bf16.msra.mxu0 %v3123
  %3710 = vmatprep.subr.bf16.mxu0 0
  %3711 = vmatpush2.bf16.msra.mxu0 0
  %3712 = vmatprep.subr.bf16.mxu0 0
  %3713 = vmatpush2.bf16.msra.mxu0 0
  %3714 = vmatprep.subr.bf16.mxu0 0
  %3715 = vmatpush2.bf16.msra.mxu0 0
  %3716 = vmatprep.subr.bf16.mxu0 0
  %3717 = vmatpush2.bf16.msra.mxu0 0
  %3718 = vmatprep.subr.bf16.mxu0 0
  %3719 = vmatpush2.bf16.msra.mxu0 0
  %3720 = vmatprep.subr.bf16.mxu0 0
  %3721 = vmatpush2.bf16.msra.mxu0 0
  %3722 = vmatprep.subr.bf16.mxu0 0
  %3723 = vmatpush2.bf16.msra.mxu0 0
  %3724 = vmatprep.subr.bf16.mxu0 0
  %3725 = vmatpush2.bf16.msra.mxu0 0
  %3726 = vmatprep.mubr.bf16.mxu0 0
  %3727 = vmatmul.mubr.bf16.gmra.mxu0 %v1466
  %v3728 = vpop.f32.mrf.mxu0
  %v3729 = vadd.f32 %v1212, %v3728
  %v3730 = vpop.f32.mrf.mxu0
  %v3731 = vadd.f32 %v1214, %v3730
  %v3732 = vpop.f32.mrf.mxu0
  %v3733 = vadd.f32 %v1216, %v3732
  %v3734 = vpop.f32.mrf.mxu0
  %v3735 = vadd.f32 %v1218, %v3734
  %3736 = vdwg.mxu0
  %v3737 = vadd.f32 %v3643, %v3556
  %v3738 = vadd.f32 %v3645, %v3566
  %v3739 = vadd.f32 %v3686, %v3576
  %v3740 = vadd.f32 %v3688, %v3586
  %v3741 = vadd.f32 %v3729, %v3596
  %v3742 = vadd.f32 %v3731, %v3606
  %v3743 = vadd.f32 %v3647, %v3557
  %v3744 = vadd.f32 %v3649, %v3567
  %v3745 = vadd.f32 %v3690, %v3577
  %v3746 = vadd.f32 %v3692, %v3587
  %v3747 = vadd.f32 %v3733, %v3597
  %v3748 = vadd.f32 %v3735, %v3607
  %v3749 = vmax.f32 %v3737, 0.0
  %v3750 = vmax.f32 %v3738, 0.0
  %v3751 = vmax.f32 %v3739, 0.0
  %v3752 = vmax.f32 %v3740, 0.0
  %v3753 = vmax.f32 %v3741, 0.0
  %v3754 = vmax.f32 %v3742, 0.0
  %v3755 = vmax.f32 %v3743, 0.0
  %v3756 = vmax.f32 %v3744, 0.0
  %v3757 = vmax.f32 %v3745, 0.0
  %v3758 = vmax.f32 %v3746, 0.0
  %v3759 = vmax.f32 %v3747, 0.0
  %v3760 = vmax.f32 %v3748, 0.0
  %v3761 = vpack.c.bf16 %v3755, %v3749
  %v3762 = vpack.c.bf16 %v3756, %v3750
  %v3763 = vpack.c.bf16 %v3757, %v3751
  %v3764 = vpack.c.bf16 %v3758, %v3752
  %v3765 = vpack.c.bf16 %v3759, %v3753
  %v3766 = vpack.c.bf16 %v3760, %v3754
  %3767 = vmatprep.subr.bf16.mxu0 0
  %3768 = vmatpush1.bf16.msra.mxu0 0
  %3769 = vmatprep.subr.bf16.mxu0 0
  %3770 = vmatpush1.bf16.msra.mxu0 0
  %3771 = vmatprep.subr.bf16.mxu0 0
  %3772 = vmatpush1.bf16.msra.mxu0 0
  %3773 = vmatprep.subr.bf16.mxu0 0
  %3774 = vmatpush1.bf16.msra.mxu0 0
  %3775 = vmatprep.subr.bf16.mxu0 0
  %3776 = vmatpush1.bf16.msra.mxu0 0
  %3777 = vmatprep.subr.bf16.mxu0 0
  %3778 = vmatpush1.bf16.msra.mxu0 0
  %3779 = vmatprep.subr.bf16.mxu0 0
  %3780 = vmatpush1.bf16.msra.mxu0 0
  %3781 = vmatprep.subr.bf16.mxu0 %v3762
  %3782 = vmatpush1.bf16.msra.mxu0 %v3761
  %3783 = vmatprep.subr.bf16.mxu0 0
  %3784 = vmatpush2.bf16.msra.mxu0 0
  %3785 = vmatprep.subr.bf16.mxu0 0
  %3786 = vmatpush2.bf16.msra.mxu0 0
  %3787 = vmatprep.subr.bf16.mxu0 0
  %3788 = vmatpush2.bf16.msra.mxu0 0
  %3789 = vmatprep.subr.bf16.mxu0 0
  %3790 = vmatpush2.bf16.msra.mxu0 0
  %3791 = vmatprep.subr.bf16.mxu0 0
  %3792 = vmatpush2.bf16.msra.mxu0 0
  %3793 = vmatprep.subr.bf16.mxu0 0
  %3794 = vmatpush2.bf16.msra.mxu0 0
  %3795 = vmatprep.subr.bf16.mxu0 0
  %3796 = vmatpush2.bf16.msra.mxu0 0
  %3797 = vmatprep.subr.bf16.mxu0 0
  %3798 = vmatpush2.bf16.msra.mxu0 0
  %3799 = vmatprep.mubr.bf16.mxu0 0
  %3800 = vmatmul.mubr.bf16.gmra.mxu0 %v1629
  %v3801 = vpop.f32.mrf.mxu0
  %v3802 = vadd.f32 %v1228, %v3801
  %v3803 = vpop.f32.mrf.mxu0
  %v3804 = vadd.f32 %v1228, %v3803
  %v3805 = vpop.f32.mrf.mxu0
  %v3806 = vadd.f32 %v1233, %v3805
  %v3807 = vpop.f32.mrf.mxu0
  %v3808 = vadd.f32 %v1233, %v3807
  %3809 = vdwg.mxu0
  %3810 = vmatprep.subr.bf16.mxu0 0
  %3811 = vmatpush1.bf16.msra.mxu0 0
  %3812 = vmatprep.subr.bf16.mxu0 0
  %3813 = vmatpush1.bf16.msra.mxu0 0
  %3814 = vmatprep.subr.bf16.mxu0 0
  %3815 = vmatpush1.bf16.msra.mxu0 0
  %3816 = vmatprep.subr.bf16.mxu0 0
  %3817 = vmatpush1.bf16.msra.mxu0 0
  %3818 = vmatprep.subr.bf16.mxu0 0
  %3819 = vmatpush1.bf16.msra.mxu0 0
  %3820 = vmatprep.subr.bf16.mxu0 0
  %3821 = vmatpush1.bf16.msra.mxu0 0
  %3822 = vmatprep.subr.bf16.mxu0 0
  %3823 = vmatpush1.bf16.msra.mxu0 0
  %3824 = vmatprep.subr.bf16.mxu0 %v3764
  %3825 = vmatpush1.bf16.msra.mxu0 %v3763
  %3826 = vmatprep.subr.bf16.mxu0 0
  %3827 = vmatpush2.bf16.msra.mxu0 0
  %3828 = vmatprep.subr.bf16.mxu0 0
  %3829 = vmatpush2.bf16.msra.mxu0 0
  %3830 = vmatprep.subr.bf16.mxu0 0
  %3831 = vmatpush2.bf16.msra.mxu0 0
  %3832 = vmatprep.subr.bf16.mxu0 0
  %3833 = vmatpush2.bf16.msra.mxu0 0
  %3834 = vmatprep.subr.bf16.mxu0 0
  %3835 = vmatpush2.bf16.msra.mxu0 0
  %3836 = vmatprep.subr.bf16.mxu0 0
  %3837 = vmatpush2.bf16.msra.mxu0 0
  %3838 = vmatprep.subr.bf16.mxu0 0
  %3839 = vmatpush2.bf16.msra.mxu0 0
  %3840 = vmatprep.subr.bf16.mxu0 0
  %3841 = vmatpush2.bf16.msra.mxu0 0
  %3842 = vmatprep.mubr.bf16.mxu0 0
  %3843 = vmatmul.mubr.bf16.gmra.mxu0 %v1629
  %v3844 = vpop.f32.mrf.mxu0
  %v3845 = vadd.f32 %v1228, %v3844
  %v3846 = vpop.f32.mrf.mxu0
  %v3847 = vadd.f32 %v1228, %v3846
  %v3848 = vpop.f32.mrf.mxu0
  %v3849 = vadd.f32 %v1233, %v3848
  %v3850 = vpop.f32.mrf.mxu0
  %v3851 = vadd.f32 %v1233, %v3850
  %3852 = vdwg.mxu0
  %3853 = vmatprep.subr.bf16.mxu0 0
  %3854 = vmatpush1.bf16.msra.mxu0 0
  %3855 = vmatprep.subr.bf16.mxu0 0
  %3856 = vmatpush1.bf16.msra.mxu0 0
  %3857 = vmatprep.subr.bf16.mxu0 0
  %3858 = vmatpush1.bf16.msra.mxu0 0
  %3859 = vmatprep.subr.bf16.mxu0 0
  %3860 = vmatpush1.bf16.msra.mxu0 0
  %3861 = vmatprep.subr.bf16.mxu0 0
  %3862 = vmatpush1.bf16.msra.mxu0 0
  %3863 = vmatprep.subr.bf16.mxu0 0
  %3864 = vmatpush1.bf16.msra.mxu0 0
  %3865 = vmatprep.subr.bf16.mxu0 0
  %3866 = vmatpush1.bf16.msra.mxu0 0
  %3867 = vmatprep.subr.bf16.mxu0 %v3766
  %3868 = vmatpush1.bf16.msra.mxu0 %v3765
  %3869 = vmatprep.subr.bf16.mxu0 0
  %3870 = vmatpush2.bf16.msra.mxu0 0
  %3871 = vmatprep.subr.bf16.mxu0 0
  %3872 = vmatpush2.bf16.msra.mxu0 0
  %3873 = vmatprep.subr.bf16.mxu0 0
  %3874 = vmatpush2.bf16.msra.mxu0 0
  %3875 = vmatprep.subr.bf16.mxu0 0
  %3876 = vmatpush2.bf16.msra.mxu0 0
  %3877 = vmatprep.subr.bf16.mxu0 0
  %3878 = vmatpush2.bf16.msra.mxu0 0
  %3879 = vmatprep.subr.bf16.mxu0 0
  %3880 = vmatpush2.bf16.msra.mxu0 0
  %3881 = vmatprep.subr.bf16.mxu0 0
  %3882 = vmatpush2.bf16.msra.mxu0 0
  %3883 = vmatprep.subr.bf16.mxu0 0
  %3884 = vmatpush2.bf16.msra.mxu0 0
  %3885 = vmatprep.mubr.bf16.mxu0 0
  %3886 = vmatmul.mubr.bf16.gmra.mxu0 %v1629
  %v3887 = vpop.f32.mrf.mxu0
  %v3888 = vadd.f32 %v1228, %v3887
  %v3889 = vpop.f32.mrf.mxu0
  %v3890 = vadd.f32 %v1228, %v3889
  %v3891 = vpop.f32.mrf.mxu0
  %v3892 = vadd.f32 %v1233, %v3891
  %v3893 = vpop.f32.mrf.mxu0
  %v3894 = vadd.f32 %v1233, %v3893
  %3895 = vdwg.mxu0
  %v3896 = vmax.f32 %v3802, 0.0
  %v3897 = vmax.f32 %v3804, 0.0
  %v3898 = vmax.f32 %v3845, 0.0
  %v3899 = vmax.f32 %v3847, 0.0
  %v3900 = vmax.f32 %v3888, 0.0
  %v3901 = vmax.f32 %v3890, 0.0
  %v3902 = vmax.f32 %v3806, 0.0
  %v3903 = vmax.f32 %v3808, 0.0
  %v3904 = vmax.f32 %v3849, 0.0
  %v3905 = vmax.f32 %v3851, 0.0
  %v3906 = vmax.f32 %v3892, 0.0
  %v3907 = vmax.f32 %v3894, 0.0
  %v3908 = vpack.c.bf16 %v3902, %v3896
  %v3909 = vpack.c.bf16 %v3903, %v3897
  %v3910 = vpack.c.bf16 %v3904, %v3898
  %v3911 = vpack.c.bf16 %v3905, %v3899
  %v3912 = vpack.c.bf16 %v3906, %v3900
  %v3913 = vpack.c.bf16 %v3907, %v3901
  %3914 = vmatprep.subr.bf16.mxu0 0
  %3915 = vmatpush1.bf16.msra.mxu0 0
  %3916 = vmatprep.subr.bf16.mxu0 0
  %3917 = vmatpush1.bf16.msra.mxu0 0
  %3918 = vmatprep.subr.bf16.mxu0 0
  %3919 = vmatpush1.bf16.msra.mxu0 0
  %3920 = vmatprep.subr.bf16.mxu0 0
  %3921 = vmatpush1.bf16.msra.mxu0 0
  %3922 = vmatprep.subr.bf16.mxu0 0
  %3923 = vmatpush1.bf16.msra.mxu0 0
  %3924 = vmatprep.subr.bf16.mxu0 0
  %3925 = vmatpush1.bf16.msra.mxu0 0
  %3926 = vmatprep.subr.bf16.mxu0 0
  %3927 = vmatpush1.bf16.msra.mxu0 0
  %3928 = vmatprep.subr.bf16.mxu0 %v3909
  %3929 = vmatpush1.bf16.msra.mxu0 %v3908
  %3930 = vmatprep.subr.bf16.mxu0 0
  %3931 = vmatpush2.bf16.msra.mxu0 0
  %3932 = vmatprep.subr.bf16.mxu0 0
  %3933 = vmatpush2.bf16.msra.mxu0 0
  %3934 = vmatprep.subr.bf16.mxu0 0
  %3935 = vmatpush2.bf16.msra.mxu0 0
  %3936 = vmatprep.subr.bf16.mxu0 0
  %3937 = vmatpush2.bf16.msra.mxu0 0
  %3938 = vmatprep.subr.bf16.mxu0 0
  %3939 = vmatpush2.bf16.msra.mxu0 0
  %3940 = vmatprep.subr.bf16.mxu0 0
  %3941 = vmatpush2.bf16.msra.mxu0 0
  %3942 = vmatprep.subr.bf16.mxu0 0
  %3943 = vmatpush2.bf16.msra.mxu0 0
  %3944 = vmatprep.subr.bf16.mxu0 0
  %3945 = vmatpush2.bf16.msra.mxu0 0
  %3946 = vmatprep.mubr.bf16.mxu0 0
  %3947 = vmatmul.mubr.bf16.gmra.mxu0 %v2072
  %v3948 = vpop.f32.mrf.mxu0
  %v3949 = vadd.f32 %v1278, %v3948
  %v3950 = vpop.f32.mrf.mxu0
  %v3951 = vadd.f32 %v1278, %v3950
  %v3952 = vpop.f32.mrf.mxu0
  %v3953 = vadd.f32 %v1283, %v3952
  %v3954 = vpop.f32.mrf.mxu0
  %v3955 = vadd.f32 %v1283, %v3954
  %3956 = vdwg.mxu0
  %3957 = vmatprep.subr.bf16.mxu0 0
  %3958 = vmatpush1.bf16.msra.mxu0 0
  %3959 = vmatprep.subr.bf16.mxu0 0
  %3960 = vmatpush1.bf16.msra.mxu0 0
  %3961 = vmatprep.subr.bf16.mxu0 0
  %3962 = vmatpush1.bf16.msra.mxu0 0
  %3963 = vmatprep.subr.bf16.mxu0 0
  %3964 = vmatpush1.bf16.msra.mxu0 0
  %3965 = vmatprep.subr.bf16.mxu0 0
  %3966 = vmatpush1.bf16.msra.mxu0 0
  %3967 = vmatprep.subr.bf16.mxu0 0
  %3968 = vmatpush1.bf16.msra.mxu0 0
  %3969 = vmatprep.subr.bf16.mxu0 0
  %3970 = vmatpush1.bf16.msra.mxu0 0
  %3971 = vmatprep.subr.bf16.mxu0 %v3911
  %3972 = vmatpush1.bf16.msra.mxu0 %v3910
  %3973 = vmatprep.subr.bf16.mxu0 0
  %3974 = vmatpush2.bf16.msra.mxu0 0
  %3975 = vmatprep.subr.bf16.mxu0 0
  %3976 = vmatpush2.bf16.msra.mxu0 0
  %3977 = vmatprep.subr.bf16.mxu0 0
  %3978 = vmatpush2.bf16.msra.mxu0 0
  %3979 = vmatprep.subr.bf16.mxu0 0
  %3980 = vmatpush2.bf16.msra.mxu0 0
  %3981 = vmatprep.subr.bf16.mxu0 0
  %3982 = vmatpush2.bf16.msra.mxu0 0
  %3983 = vmatprep.subr.bf16.mxu0 0
  %3984 = vmatpush2.bf16.msra.mxu0 0
  %3985 = vmatprep.subr.bf16.mxu0 0
  %3986 = vmatpush2.bf16.msra.mxu0 0
  %3987 = vmatprep.subr.bf16.mxu0 0
  %3988 = vmatpush2.bf16.msra.mxu0 0
  %3989 = vmatprep.mubr.bf16.mxu0 0
  %3990 = vmatmul.mubr.bf16.gmra.mxu0 %v2072
  %v3991 = vpop.f32.mrf.mxu0
  %v3992 = vadd.f32 %v1278, %v3991
  %v3993 = vpop.f32.mrf.mxu0
  %v3994 = vadd.f32 %v1278, %v3993
  %v3995 = vpop.f32.mrf.mxu0
  %v3996 = vadd.f32 %v1283, %v3995
  %v3997 = vpop.f32.mrf.mxu0
  %v3998 = vadd.f32 %v1283, %v3997
  %3999 = vdwg.mxu0
  %4000 = vmatprep.subr.bf16.mxu0 0
  %4001 = vmatpush1.bf16.msra.mxu0 0
  %4002 = vmatprep.subr.bf16.mxu0 0
  %4003 = vmatpush1.bf16.msra.mxu0 0
  %4004 = vmatprep.subr.bf16.mxu0 0
  %4005 = vmatpush1.bf16.msra.mxu0 0
  %4006 = vmatprep.subr.bf16.mxu0 0
  %4007 = vmatpush1.bf16.msra.mxu0 0
  %4008 = vmatprep.subr.bf16.mxu0 0
  %4009 = vmatpush1.bf16.msra.mxu0 0
  %4010 = vmatprep.subr.bf16.mxu0 0
  %4011 = vmatpush1.bf16.msra.mxu0 0
  %4012 = vmatprep.subr.bf16.mxu0 0
  %4013 = vmatpush1.bf16.msra.mxu0 0
  %4014 = vmatprep.subr.bf16.mxu0 %v3913
  %4015 = vmatpush1.bf16.msra.mxu0 %v3912
  %4016 = vmatprep.subr.bf16.mxu0 0
  %4017 = vmatpush2.bf16.msra.mxu0 0
  %4018 = vmatprep.subr.bf16.mxu0 0
  %4019 = vmatpush2.bf16.msra.mxu0 0
  %4020 = vmatprep.subr.bf16.mxu0 0
  %4021 = vmatpush2.bf16.msra.mxu0 0
  %4022 = vmatprep.subr.bf16.mxu0 0
  %4023 = vmatpush2.bf16.msra.mxu0 0
  %4024 = vmatprep.subr.bf16.mxu0 0
  %4025 = vmatpush2.bf16.msra.mxu0 0
  %4026 = vmatprep.subr.bf16.mxu0 0
  %4027 = vmatpush2.bf16.msra.mxu0 0
  %4028 = vmatprep.subr.bf16.mxu0 0
  %4029 = vmatpush2.bf16.msra.mxu0 0
  %4030 = vmatprep.subr.bf16.mxu0 0
  %4031 = vmatpush2.bf16.msra.mxu0 0
  %4032 = vmatprep.mubr.bf16.mxu0 0
  %4033 = vmatmul.mubr.bf16.gmra.mxu0 %v2072
  %v4034 = vpop.f32.mrf.mxu0
  %v4035 = vadd.f32 %v1278, %v4034
  %v4036 = vpop.f32.mrf.mxu0
  %v4037 = vadd.f32 %v1278, %v4036
  %v4038 = vpop.f32.mrf.mxu0
  %v4039 = vadd.f32 %v1283, %v4038
  %v4040 = vpop.f32.mrf.mxu0
  %v4041 = vadd.f32 %v1283, %v4040
  %4042 = vdwg.mxu0
  %v4043 = vmax.f32 %v3949, 0.0
  %v4044 = vmax.f32 %v3951, 0.0
  %v4045 = vmax.f32 %v3992, 0.0
  %v4046 = vmax.f32 %v3994, 0.0
  %v4047 = vmax.f32 %v4035, 0.0
  %v4048 = vmax.f32 %v4037, 0.0
  %v4049 = vmax.f32 %v3953, 0.0
  %v4050 = vmax.f32 %v3955, 0.0
  %v4051 = vmax.f32 %v3996, 0.0
  %v4052 = vmax.f32 %v3998, 0.0
  %v4053 = vmax.f32 %v4039, 0.0
  %v4054 = vmax.f32 %v4041, 0.0
  %v4055 = vpack.c.bf16 %v4049, %v4043
  %v4056 = vpack.c.bf16 %v4050, %v4044
  %v4057 = vpack.c.bf16 %v4051, %v4045
  %v4058 = vpack.c.bf16 %v4052, %v4046
  %v4059 = vpack.c.bf16 %v4053, %v4047
  %v4060 = vpack.c.bf16 %v4054, %v4048
  %4061 = vmatprep.subr.bf16.mxu0 0
  %4062 = vmatpush1.bf16.msra.mxu0 0
  %4063 = vmatprep.subr.bf16.mxu0 0
  %4064 = vmatpush1.bf16.msra.mxu0 0
  %4065 = vmatprep.subr.bf16.mxu0 0
  %4066 = vmatpush1.bf16.msra.mxu0 0
  %4067 = vmatprep.subr.bf16.mxu0 0
  %4068 = vmatpush1.bf16.msra.mxu0 0
  %4069 = vmatprep.subr.bf16.mxu0 0
  %4070 = vmatpush1.bf16.msra.mxu0 0
  %4071 = vmatprep.subr.bf16.mxu0 0
  %4072 = vmatpush1.bf16.msra.mxu0 0
  %4073 = vmatprep.subr.bf16.mxu0 0
  %4074 = vmatpush1.bf16.msra.mxu0 0
  %4075 = vmatprep.subr.bf16.mxu0 %v4056
  %4076 = vmatpush1.bf16.msra.mxu0 %v4055
  %4077 = vmatprep.subr.bf16.mxu0 0
  %4078 = vmatpush2.bf16.msra.mxu0 0
  %4079 = vmatprep.subr.bf16.mxu0 0
  %4080 = vmatpush2.bf16.msra.mxu0 0
  %4081 = vmatprep.subr.bf16.mxu0 0
  %4082 = vmatpush2.bf16.msra.mxu0 0
  %4083 = vmatprep.subr.bf16.mxu0 0
  %4084 = vmatpush2.bf16.msra.mxu0 0
  %4085 = vmatprep.subr.bf16.mxu0 0
  %4086 = vmatpush2.bf16.msra.mxu0 0
  %4087 = vmatprep.subr.bf16.mxu0 0
  %4088 = vmatpush2.bf16.msra.mxu0 0
  %4089 = vmatprep.subr.bf16.mxu0 0
  %4090 = vmatpush2.bf16.msra.mxu0 0
  %4091 = vmatprep.subr.bf16.mxu0 0
  %4092 = vmatpush2.bf16.msra.mxu0 0
  %4093 = vmatprep.mubr.bf16.mxu0 0
  %4094 = vmatmul.mubr.bf16.gmra.mxu0 %v2223
  %v4095 = vpop.f32.mrf.mxu0
  %v4096 = vadd.f32 %v1288, %v4095
  %v4097 = vpop.f32.mrf.mxu0
  %v4098 = vadd.f32 %v1288, %v4097
  %v4099 = vpop.f32.mrf.mxu0
  %v4100 = vpop.f32.mrf.mxu0
  %4101 = vdwg.mxu0
  %4102 = vmatprep.subr.bf16.mxu0 0
  %4103 = vmatpush1.bf16.msra.mxu0 0
  %4104 = vmatprep.subr.bf16.mxu0 0
  %4105 = vmatpush1.bf16.msra.mxu0 0
  %4106 = vmatprep.subr.bf16.mxu0 0
  %4107 = vmatpush1.bf16.msra.mxu0 0
  %4108 = vmatprep.subr.bf16.mxu0 0
  %4109 = vmatpush1.bf16.msra.mxu0 0
  %4110 = vmatprep.subr.bf16.mxu0 0
  %4111 = vmatpush1.bf16.msra.mxu0 0
  %4112 = vmatprep.subr.bf16.mxu0 0
  %4113 = vmatpush1.bf16.msra.mxu0 0
  %4114 = vmatprep.subr.bf16.mxu0 0
  %4115 = vmatpush1.bf16.msra.mxu0 0
  %4116 = vmatprep.subr.bf16.mxu0 %v4058
  %4117 = vmatpush1.bf16.msra.mxu0 %v4057
  %4118 = vmatprep.subr.bf16.mxu0 0
  %4119 = vmatpush2.bf16.msra.mxu0 0
  %4120 = vmatprep.subr.bf16.mxu0 0
  %4121 = vmatpush2.bf16.msra.mxu0 0
  %4122 = vmatprep.subr.bf16.mxu0 0
  %4123 = vmatpush2.bf16.msra.mxu0 0
  %4124 = vmatprep.subr.bf16.mxu0 0
  %4125 = vmatpush2.bf16.msra.mxu0 0
  %4126 = vmatprep.subr.bf16.mxu0 0
  %4127 = vmatpush2.bf16.msra.mxu0 0
  %4128 = vmatprep.subr.bf16.mxu0 0
  %4129 = vmatpush2.bf16.msra.mxu0 0
  %4130 = vmatprep.subr.bf16.mxu0 0
  %4131 = vmatpush2.bf16.msra.mxu0 0
  %4132 = vmatprep.subr.bf16.mxu0 0
  %4133 = vmatpush2.bf16.msra.mxu0 0
  %4134 = vmatprep.mubr.bf16.mxu0 0
  %4135 = vmatmul.mubr.bf16.gmra.mxu0 %v2223
  %v4136 = vpop.f32.mrf.mxu0
  %v4137 = vadd.f32 %v1288, %v4136
  %v4138 = vpop.f32.mrf.mxu0
  %v4139 = vadd.f32 %v1288, %v4138
  %v4140 = vpop.f32.mrf.mxu0
  %v4141 = vpop.f32.mrf.mxu0
  %4142 = vdwg.mxu0
  %4143 = vmatprep.subr.bf16.mxu0 0
  %4144 = vmatpush1.bf16.msra.mxu0 0
  %4145 = vmatprep.subr.bf16.mxu0 0
  %4146 = vmatpush1.bf16.msra.mxu0 0
  %4147 = vmatprep.subr.bf16.mxu0 0
  %4148 = vmatpush1.bf16.msra.mxu0 0
  %4149 = vmatprep.subr.bf16.mxu0 0
  %4150 = vmatpush1.bf16.msra.mxu0 0
  %4151 = vmatprep.subr.bf16.mxu0 0
  %4152 = vmatpush1.bf16.msra.mxu0 0
  %4153 = vmatprep.subr.bf16.mxu0 0
  %4154 = vmatpush1.bf16.msra.mxu0 0
  %4155 = vmatprep.subr.bf16.mxu0 0
  %4156 = vmatpush1.bf16.msra.mxu0 0
  %4157 = vmatprep.subr.bf16.mxu0 %v4060
  %4158 = vmatpush1.bf16.msra.mxu0 %v4059
  %4159 = vmatprep.subr.bf16.mxu0 0
  %4160 = vmatpush2.bf16.msra.mxu0 0
  %4161 = vmatprep.subr.bf16.mxu0 0
  %4162 = vmatpush2.bf16.msra.mxu0 0
  %4163 = vmatprep.subr.bf16.mxu0 0
  %4164 = vmatpush2.bf16.msra.mxu0 0
  %4165 = vmatprep.subr.bf16.mxu0 0
  %4166 = vmatpush2.bf16.msra.mxu0 0
  %4167 = vmatprep.subr.bf16.mxu0 0
  %4168 = vmatpush2.bf16.msra.mxu0 0
  %4169 = vmatprep.subr.bf16.mxu0 0
  %4170 = vmatpush2.bf16.msra.mxu0 0
  %4171 = vmatprep.subr.bf16.mxu0 0
  %4172 = vmatpush2.bf16.msra.mxu0 0
  %4173 = vmatprep.subr.bf16.mxu0 0
  %4174 = vmatpush2.bf16.msra.mxu0 0
  %4175 = vmatprep.mubr.bf16.mxu0 0
  %4176 = vmatmul.mubr.bf16.gmra.mxu0 %v2223
  %v4177 = vpop.f32.mrf.mxu0
  %v4178 = vadd.f32 %v1288, %v4177
  %v4179 = vpop.f32.mrf.mxu0
  %v4180 = vadd.f32 %v1288, %v4179
  %v4181 = vpop.f32.mrf.mxu0
  %v4182 = vpop.f32.mrf.mxu0
  %4183 = vdwg.mxu0
  %v4190 = vcombine.low %v4096, %v4098
  %v4191 = vcombine.low %v4137, %v4139
  %v4192 = vcombine.low %v4178, %v4180
  %v4194 = vunpack.c.l.s4 1966171168
  %v4195 = vunpack.c.0.s8 %v4194
  %v4196 = vlaneseq
  %v4197 = vshrl.u32 %v4196, 7
  %v4198 = vsub.s32 %v4195, %v4197
  %v4199 = vrot.slane %v4190, %v4198
  %v4201 = vunpack.c.l.s4 1966171168
  %v4202 = vunpack.c.0.s8 %v4201
  %v4203 = vlaneseq
  %v4204 = vshrl.u32 %v4203, 7
  %v4205 = vsub.s32 %v4202, %v4204
  %v4206 = vrot.slane %v4191, %v4205
  %v4208 = vunpack.c.l.s4 1966171168
  %v4209 = vunpack.c.0.s8 %v4208
  %v4210 = vlaneseq
  %v4211 = vshrl.u32 %v4210, 7
  %v4212 = vsub.s32 %v4209, %v4211
  %v4213 = vrot.slane %v4192, %v4212
  %v4214 = vcombine.low %v4199, %v4206
  %v4216 = vunpack.c.l.s4 1966171168
  %v4217 = vunpack.c.0.s8 %v4216
  %v4218 = vlaneseq
  %v4219 = vshrl.u32 %v4218, 7
  %v4220 = vsub.s32 %v4217, %v4219
  %v4221 = vrot.slane %v4214, %v4220
  %v4223 = vunpack.c.l.s4 1966171168
  %v4224 = vunpack.c.0.s8 %v4223
  %v4225 = vlaneseq
  %v4226 = vshrl.u32 %v4225, 7
  %v4227 = vsub.s32 %v4224, %v4226
  %v4228 = vrot.slane %v4213, %v4227
  %v4229 = vcombine.low %v4221, %v4228
  %s4231 = scalar_lea.vmem %s3, 2
  %4232 = vst.msk [vmem:[%s4231] ss:$4 sm:$0x3f] %vm2398, %v4229
  // Predicated region
  $region14: #{assignment_similarity_net.1} parent=0 // pred_check
    _
  $region15: #{assignment_similarity_net.1} parent=0 // pred_check_branch
    %4234 = sbr.rel (0) target = $region17
  $region16: #{assignment_similarity_net.1} parent=0 // pred_region
    _
  $region17: #{assignment_similarity_net.1} parent=0 // pred_fallthru
    _
  // Predicated region
  $region18: #{assignment_similarity_net.1} parent=0 // pred_check
    _
  $region19: #{assignment_similarity_net.1} parent=0 // pred_check_branch
    %4236 = sbr.rel (0) target = $region21
  $region20: #{assignment_similarity_net.1} parent=0 // pred_region
    _
  $region21: #{assignment_similarity_net.1} parent=0 // pred_fallthru
    _

</llo_original>
